<compile_context>
chip_gen: v7x
topology: tpu7x:2x2x1
jax: 0.10.0
libtpu: 0.0.40
codegen_flags: <defaults>
</compile_context>

<pallas_src>
import math

import jax
import jax.numpy as jnp
from jax import lax
from jax.experimental import pallas as pl
from jax.experimental.pallas import tpu as pltpu

MATMUL_DTYPE = jnp.bfloat16   # MXU operand / activation I/O dtype (f32 accumulation)


def embedding_kernel(x_ref, dw_w_ref, w0_ref, b0_ref, w1_ref, b1_ref, out_ref):
    """(TB, L, D) tile: 5-tap depthwise conv along L + fused pointwise/highway matmuls.

    x_ref    : (TB, L, D) bf16 activations
    dw_w_ref : (K, D)     f32  depthwise taps (center width column of the 5x5 kernel)
    w0_ref   : (D, 3D)    bf16 [pointwise | pointwise@gate0 | pointwise@linear0]
    b0_ref   : (1, 3D)    f32  matching fused biases (depthwise bias folded in)
    w1_ref   : (D, 2D)    bf16 [gate1 | linear1]
    b1_ref   : (1, 2D)    f32
    out_ref  : (TB, L, D) f32
    """
    TB, L, D = x_ref.shape
    K = dw_w_ref.shape[0]
    pad = K // 2
    M = TB * L

    # Flatten batch*seq into one M-row slab -> large lane-dense (M, D) matmuls.
    x2 = x_ref[...].astype(jnp.float32).reshape(M, D)
    dw_w = dw_w_ref[...]                                   # (K, D) f32

    # Depthwise conv along L via pltpu.roll (XLU) + iota masks at sequence edges.
    # No halo scratch, no store->load round trip.  (Kept f32: safe on v5e's VALU;
    # the conv is a tiny fraction of the work.)
    pos = lax.broadcasted_iota(jnp.int32, (M, 1), 0) % L   # within-sequence position
    acc = None
    for k in range(K):                                     # static unroll, K = 5
        o = k - pad                                        # tap offset in [-2, 2]
        if o == 0:
            contrib = x2
        else:
            shifted = pltpu.roll(x2, shift=(-o) % M, axis=0)    # row i <- row (i+o) mod M
            valid = (pos + o >= 0) & (pos + o < L)              # zero taps across seq edges
            contrib = jnp.where(valid, shifted, jnp.zeros_like(shifted))
        term = contrib * dw_w[k][None, :]
        acc = term if acc is None else acc + term
    # depthwise bias is folded into b0 at pack time.

    # Pointwise 1x1 conv fused with highway layer 0: one (M, D)@(D, 3D) MXU pass
    # produces [h | gate-logits | pre-relu-linear].
    z0 = jnp.dot(acc.astype(MATMUL_DTYPE), w0_ref[...],
                 preferred_element_type=jnp.float32) + b0_ref[...]
    h = z0[:, :D]
    gate = jax.nn.sigmoid(z0[:, D:2 * D])
    nonlinear = jnp.maximum(z0[:, 2 * D:], 0.0)
    h = h + gate * (nonlinear - h)                          # == g*nl + (1-g)*h

    # Highway layer 1: gate + linear fused into one (D, 2D) matmul.
    z1 = jnp.dot(h.astype(MATMUL_DTYPE), w1_ref[...],
                 preferred_element_type=jnp.float32) + b1_ref[...]
    gate = jax.nn.sigmoid(z1[:, :D])
    nonlinear = jnp.maximum(z1[:, D:], 0.0)
    h = h + gate * (nonlinear - h)

    out_ref[...] = h.reshape(TB, L, D).astype(out_ref.dtype)


def _vmem_capacity_bytes():
    try:
        return int(pltpu.get_tpu_info().vmem_capacity_bytes)
    except Exception:
        return 64 * 2**20        # safe floor (v7x physical VMEM per TensorCore)


def _vmem_estimate(tb, L, D, K):
    """Generous per-step VMEM usage estimate for tile-batch `tb`."""
    m = tb * L
    act = 2 * (m * D * 2) + 2 * (m * D * 4)                 # bf16 in + f32 out, double-buffered
    weights = 2 * (K * D * 4 + D * 3 * D * 2 + 3 * D * 4 + D * 2 * D * 2 + 2 * D * 4)
    live = 16 * m * D * 4                                   # f32 temporaries (acc, z0, z1, h, ...)
    return act + weights + live


def _choose_tile_batch(B, L, D, K, budget, target_m=256):
    """Smallest divisor of B reaching M = TB*L >= target_m that fits the VMEM budget."""
    divisors = [t for t in range(1, B + 1) if B % t == 0]
    fitting = [t for t in divisors if _vmem_estimate(t, L, D, K) <= budget] or [1]
    for t in fitting:
        if t * L >= target_m:
            return t
    return fitting[-1]


def embedding_forward(wd_emb, params, *, tile_batch=None):
    """wd_emb: (B, L, D).  Returns (B, L, D) float32.  Needs L % 8 == 0, D % 128 == 0."""
    B, L, D = wd_emb.shape
    K = params["dw_w"].shape[0]
    assert L % 8 == 0 and D % 128 == 0, "pad L to a multiple of 8 / D to 128 in the caller"

    cap = _vmem_capacity_bytes()
    budget = int(0.80 * cap)                 # ~100 MiB on v5e/v6e, ~51 MiB on v7x
    TB = tile_batch or _choose_tile_batch(B, L, D, K, budget)
    vmem_limit = int(min(int(0.85 * cap),
                         max(32 * 2**20, 4 * _vmem_estimate(TB, L, D, K))))

    x_bf = wd_emb.astype(MATMUL_DTYPE)       # bf16 activation I/O: halves HBM traffic

    grid_spec = pltpu.PrefetchScalarGridSpec(
        num_scalar_prefetch=0,
        grid=(B // TB,),
        in_specs=[
            # fused-batch activation tile (double-buffered by the pipeline)
            pl.BlockSpec((TB, L, D), lambda b: (b, 0, 0)),
            # weights: full blocks, constant index_map -> fetched once, stay resident
            pl.BlockSpec((K, D), lambda b: (0, 0)),
            pl.BlockSpec((D, 3 * D), lambda b: (0, 0)),
            pl.BlockSpec((1, 3 * D), lambda b: (0, 0)),
            pl.BlockSpec((D, 2 * D), lambda b: (0, 0)),
            pl.BlockSpec((1, 2 * D), lambda b: (0, 0)),
        ],
        out_specs=pl.BlockSpec((TB, L, D), lambda b: (b, 0, 0)),
    )

    return pl.pallas_call(
        embedding_kernel,
        out_shape=jax.ShapeDtypeStruct((B, L, D), jnp.float32),
        grid_spec=grid_spec,
        compiler_params=pltpu.CompilerParams(
            dimension_semantics=("parallel",),
            vmem_limit_bytes=vmem_limit,
        ),
    )(x_bf,
      params["dw_w"], params["w0"], params["b0"], params["w1"], params["b1"])


def init_params(key, D, K=5):
    """Raw parameters with the same layout / init as the PyTorch module."""
    ks = jax.random.split(key, 6)
    # Depthwise Conv2d weight (D, 1, K, K), kaiming_normal (fan_in = K*K), bias 0.
    dw_full = jax.random.normal(ks[0], (D, 1, K, K), jnp.float32) * math.sqrt(2.0 / (K * K))
    dw_b = jnp.zeros((D,), jnp.float32)
    # Pointwise Conv2d weight (D, D, 1, 1), kaiming_normal (fan_in = D), bias 0.
    pw_full = jax.random.normal(ks[1], (D, D, 1, 1), jnp.float32) * math.sqrt(2.0 / D)
    pw_b = jnp.zeros((D,), jnp.float32)
    # Highway linears: default nn.Linear init, uniform(-1/sqrt(D), 1/sqrt(D)).
    bound = 1.0 / math.sqrt(D)
    g_w = jax.random.uniform(ks[2], (2, D, D), jnp.float32, -bound, bound)   # (layer, out, in)
    g_b = jax.random.uniform(ks[3], (2, D), jnp.float32, -bound, bound)
    l_w = jax.random.uniform(ks[4], (2, D, D), jnp.float32, -bound, bound)
    l_b = jax.random.uniform(ks[5], (2, D), jnp.float32, -bound, bound)
    return dict(dw_full=dw_full, dw_b=dw_b, pw_full=pw_full, pw_b=pw_b,
                g_w=g_w, g_b=g_b, l_w=l_w, l_b=l_b)


def pack_params(raw, matmul_dtype=MATMUL_DTYPE):
    """Fold / fuse / cast parameters for the kernel (and the reference)."""
    D = raw["pw_full"].shape[0]
    K = raw["dw_full"].shape[2]
    # Input width is 1 (padded by 2), so only the center width column of the 5x5
    # depthwise kernel ever touches real data.
    dw_w = jnp.transpose(raw["dw_full"][:, 0, :, K // 2])                 # (K, D)
    pw_wt = jnp.transpose(raw["pw_full"][:, :, 0, 0])                     # (in, out) f32
    pw_b = raw["pw_b"] + raw["dw_b"] @ pw_wt                              # depthwise bias folded
    g_wt = jnp.transpose(raw["g_w"], (0, 2, 1))                           # (layer, in, out)
    l_wt = jnp.transpose(raw["l_w"], (0, 2, 1))
    # Fuse the pointwise conv with highway layer 0 (gate + linear) -> (D, 3D).
    w0 = jnp.concatenate([pw_wt, pw_wt @ g_wt[0], pw_wt @ l_wt[0]], axis=1)
    b0 = jnp.concatenate([pw_b,
                          pw_b @ g_wt[0] + raw["g_b"][0],
                          pw_b @ l_wt[0] + raw["l_b"][0]])[None, :]        # (1, 3D)
    # Highway layer 1: gate + linear side by side -> (D, 2D).
    w1 = jnp.concatenate([g_wt[1], l_wt[1]], axis=1)
    b1 = jnp.concatenate([raw["g_b"][1], raw["l_b"][1]])[None, :]          # (1, 2D)
    return {"dw_w": dw_w.astype(jnp.float32),
            "w0": w0.astype(matmul_dtype), "b0": b0.astype(jnp.float32),
            "w1": w1.astype(matmul_dtype), "b1": b1.astype(jnp.float32)}


def embedding_reference(x_bf16, p):
    """Pure-JAX reference with the kernel's exact dtype / fusion semantics."""
    B, L, D = x_bf16.shape
    K = p["dw_w"].shape[0]
    pad = K // 2
    xp = jnp.pad(x_bf16, ((0, 0), (pad, pad), (0, 0)))
    acc = sum(xp[:, k:k + L, :].astype(jnp.float32) * p["dw_w"][k][None, None, :]
              for k in range(K))
    acc = acc.reshape(B * L, D)
    z0 = jnp.dot(acc.astype(p["w0"].dtype), p["w0"],
                 preferred_element_type=jnp.float32) + p["b0"]
    h = z0[:, :D]
    h = h + jax.nn.sigmoid(z0[:, D:2 * D]) * (jnp.maximum(z0[:, 2 * D:], 0.0) - h)
    z1 = jnp.dot(h.astype(p["w1"].dtype), p["w1"],
                 preferred_element_type=jnp.float32) + p["b1"]
    h = h + jax.nn.sigmoid(z1[:, :D]) * (jnp.maximum(z1[:, D:], 0.0) - h)
    return h.reshape(B, L, D).astype(jnp.float32)


if __name__ == "__main__":
    # Small shapes consistent with the module; L multiple of 8 and D multiple of 128
    # keep the (TB*L, D) slab reshapes layout-free and the stores lane-dense.
    B, L, D = 8, 64, 128
    key = jax.random.PRNGKey(0)
    k_x, k_p = jax.random.split(key)
    wd_emb = jax.random.normal(k_x, (B, L, D), jnp.float32)
    params = pack_params(init_params(k_p, D))

    out = jax.block_until_ready(embedding_forward(wd_emb, params))
    ref = jax.block_until_ready(embedding_reference(wd_emb.astype(MATMUL_DTYPE), params))

    assert out.shape == (B, L, D) and out.dtype == jnp.float32
    max_err = float(jnp.max(jnp.abs(out - ref)))
    assert jnp.allclose(out, ref, atol=5e-3, rtol=5e-3), f"mismatch: {max_err}"
    print("KERNEL_OK")
</pallas_src>

<mosaic_0001>
module attributes {stable_mosaic.version = 11 : i64} {
  func.func @embedding_kernel(%arg0: i32, %arg1: memref<4x64x128xbf16, #tpu.memory_space<vmem>>, %arg2: memref<5x128xf32, #tpu.memory_space<vmem>>, %arg3: memref<128x384xbf16, #tpu.memory_space<vmem>>, %arg4: memref<1x384xf32, #tpu.memory_space<vmem>>, %arg5: memref<128x256xbf16, #tpu.memory_space<vmem>>, %arg6: memref<1x256xf32, #tpu.memory_space<vmem>>, %arg7: memref<4x64x128xf32, #tpu.memory_space<vmem>>) attributes {dimension_semantics = [#tpu.dimension_semantics<parallel>], iteration_bounds = array<i64: 2>, scalar_prefetch = 0 : i64, scratch_operands = 0 : i64, tpu.core_type = #tpu.core_type<tc>, window_params = [{transform_indices = @transform_0, window_bounds = array<i64: 4, 64, 128>}, {pipeline_mode = #tpu.pipeline_mode<synchronous>, transform_indices = @transform_1, window_bounds = array<i64: 5, 128>}, {pipeline_mode = #tpu.pipeline_mode<synchronous>, transform_indices = @transform_2, window_bounds = array<i64: 128, 384>}, {pipeline_mode = #tpu.pipeline_mode<synchronous>, transform_indices = @transform_3, window_bounds = array<i64: 1, 384>}, {pipeline_mode = #tpu.pipeline_mode<synchronous>, transform_indices = @transform_4, window_bounds = array<i64: 128, 256>}, {pipeline_mode = #tpu.pipeline_mode<synchronous>, transform_indices = @transform_5, window_bounds = array<i64: 1, 256>}, {transform_indices = @transform_6, window_bounds = array<i64: 4, 64, 128>}]} {
    %c0 = arith.constant 0 : index
    %c0_0 = arith.constant 0 : index
    %c0_1 = arith.constant 0 : index
    %0 = vector.load %arg1[%c0, %c0_0, %c0_1] : memref<4x64x128xbf16, #tpu.memory_space<vmem>>, vector<4x64x128xbf16>
    %1 = arith.extf %0 : vector<4x64x128xbf16> to vector<4x64x128xf32>
    %2 = vector.shape_cast %1 : vector<4x64x128xf32> to vector<256x128xf32>
    %c0_2 = arith.constant 0 : index
    %c0_3 = arith.constant 0 : index
    %3 = vector.load %arg2[%c0_2, %c0_3] : memref<5x128xf32, #tpu.memory_space<vmem>>, vector<5x128xf32>
    %4 = tpu.iota {dimensions = array<i32: 0>} : vector<256x1xi32>
    %c64_i32 = arith.constant 64 : i32
    %c0_i32 = arith.constant 0 : i32
    %5 = arith.cmpi eq, %c64_i32, %c0_i32 : i32
    %c1_i32 = arith.constant 1 : i32
    %6 = arith.select %5, %c1_i32, %c64_i32 : i32
    %7 = vector.broadcast %6 : i32 to vector<256x1xi32>
    %8 = arith.remsi %4, %7 : vector<256x1xi32>
    %c0_i32_4 = arith.constant 0 : i32
    %9 = vector.broadcast %c0_i32_4 : i32 to vector<256x1xi32>
    %10 = arith.cmpi ne, %8, %9 : vector<256x1xi32>
    %c0_i32_5 = arith.constant 0 : i32
    %11 = vector.broadcast %c0_i32_5 : i32 to vector<256x1xi32>
    %12 = arith.cmpi slt, %8, %11 : vector<256x1xi32>
    %c0_i32_6 = arith.constant 0 : i32
    %13 = arith.cmpi slt, %6, %c0_i32_6 : i32
    %14 = vector.broadcast %13 : i1 to vector<256x1xi1>
    %15 = vector.broadcast %14 : vector<256x1xi1> to vector<256x1xi1>
    %16 = arith.xori %12, %15 : vector<256x1xi1>
    %17 = arith.andi %16, %10 : vector<256x1xi1>
    %18 = vector.broadcast %6 : i32 to vector<256x1xi32>
    %19 = arith.addi %8, %18 : vector<256x1xi32>
    %20 = arith.select %17, %19, %8 : vector<256x1xi1>, vector<256x1xi32>
    %c2_i32 = arith.constant 2 : i32
    %21 = tpu.dynamic_rotate %2 by %c2_i32 dim 0 : vector<256x128xf32>, i32 -> vector<256x128xf32>
    %c-2_i32 = arith.constant -2 : i32
    %22 = vector.broadcast %c-2_i32 : i32 to vector<256x1xi32>
    %23 = arith.addi %20, %22 : vector<256x1xi32>
    %c0_i32_7 = arith.constant 0 : i32
    %24 = vector.broadcast %c0_i32_7 : i32 to vector<256x1xi32>
    %25 = arith.cmpi sge, %23, %24 : vector<256x1xi32>
    %c-2_i32_8 = arith.constant -2 : i32
    %26 = vector.broadcast %c-2_i32_8 : i32 to vector<256x1xi32>
    %27 = arith.addi %20, %26 : vector<256x1xi32>
    %c64_i32_9 = arith.constant 64 : i32
    %28 = vector.broadcast %c64_i32_9 : i32 to vector<256x1xi32>
    %29 = arith.cmpi slt, %27, %28 : vector<256x1xi32>
    %30 = arith.andi %25, %29 : vector<256x1xi1>
    %cst = arith.constant 0.000000e+00 : f32
    %31 = vector.broadcast %cst : f32 to vector<256x128xf32>
    %32 = vector.shape_cast %30 : vector<256x1xi1> to vector<256x1xi1>
    %33 = vector.broadcast %32 : vector<256x1xi1> to vector<256x128xi1>
    %34 = arith.select %33, %21, %31 : vector<256x128xi1>, vector<256x128xf32>
    %35 = vector.extract_strided_slice %3 {offsets = [0, 0], sizes = [1, 128], strides = [1, 1]} : vector<5x128xf32> to vector<1x128xf32>
    %36 = vector.shape_cast %35 : vector<1x128xf32> to vector<128xf32>
    %37 = vector.shape_cast %36 : vector<128xf32> to vector<1x128xf32>
    %38 = vector.broadcast %37 : vector<1x128xf32> to vector<256x128xf32>
    %39 = arith.mulf %34, %38 : vector<256x128xf32>
    %c1_i32_10 = arith.constant 1 : i32
    %40 = tpu.dynamic_rotate %2 by %c1_i32_10 dim 0 : vector<256x128xf32>, i32 -> vector<256x128xf32>
    %c-1_i32 = arith.constant -1 : i32
    %41 = vector.broadcast %c-1_i32 : i32 to vector<256x1xi32>
    %42 = arith.addi %20, %41 : vector<256x1xi32>
    %c0_i32_11 = arith.constant 0 : i32
    %43 = vector.broadcast %c0_i32_11 : i32 to vector<256x1xi32>
    %44 = arith.cmpi sge, %42, %43 : vector<256x1xi32>
    %c-1_i32_12 = arith.constant -1 : i32
    %45 = vector.broadcast %c-1_i32_12 : i32 to vector<256x1xi32>
    %46 = arith.addi %20, %45 : vector<256x1xi32>
    %c64_i32_13 = arith.constant 64 : i32
    %47 = vector.broadcast %c64_i32_13 : i32 to vector<256x1xi32>
    %48 = arith.cmpi slt, %46, %47 : vector<256x1xi32>
    %49 = arith.andi %44, %48 : vector<256x1xi1>
    %cst_14 = arith.constant 0.000000e+00 : f32
    %50 = vector.broadcast %cst_14 : f32 to vector<256x128xf32>
    %51 = vector.shape_cast %49 : vector<256x1xi1> to vector<256x1xi1>
    %52 = vector.broadcast %51 : vector<256x1xi1> to vector<256x128xi1>
    %53 = arith.select %52, %40, %50 : vector<256x128xi1>, vector<256x128xf32>
    %54 = vector.extract_strided_slice %3 {offsets = [1, 0], sizes = [1, 128], strides = [1, 1]} : vector<5x128xf32> to vector<1x128xf32>
    %55 = vector.shape_cast %54 : vector<1x128xf32> to vector<128xf32>
    %56 = vector.shape_cast %55 : vector<128xf32> to vector<1x128xf32>
    %57 = vector.broadcast %56 : vector<1x128xf32> to vector<256x128xf32>
    %58 = arith.mulf %53, %57 : vector<256x128xf32>
    %59 = arith.addf %39, %58 : vector<256x128xf32>
    %60 = vector.extract_strided_slice %3 {offsets = [2, 0], sizes = [1, 128], strides = [1, 1]} : vector<5x128xf32> to vector<1x128xf32>
    %61 = vector.shape_cast %60 : vector<1x128xf32> to vector<128xf32>
    %62 = vector.shape_cast %61 : vector<128xf32> to vector<1x128xf32>
    %63 = vector.broadcast %62 : vector<1x128xf32> to vector<256x128xf32>
    %64 = arith.mulf %2, %63 : vector<256x128xf32>
    %65 = arith.addf %59, %64 : vector<256x128xf32>
    %c255_i32 = arith.constant 255 : i32
    %66 = tpu.dynamic_rotate %2 by %c255_i32 dim 0 : vector<256x128xf32>, i32 -> vector<256x128xf32>
    %c1_i32_15 = arith.constant 1 : i32
    %67 = vector.broadcast %c1_i32_15 : i32 to vector<256x1xi32>
    %68 = arith.addi %20, %67 : vector<256x1xi32>
    %c0_i32_16 = arith.constant 0 : i32
    %69 = vector.broadcast %c0_i32_16 : i32 to vector<256x1xi32>
    %70 = arith.cmpi sge, %68, %69 : vector<256x1xi32>
    %c1_i32_17 = arith.constant 1 : i32
    %71 = vector.broadcast %c1_i32_17 : i32 to vector<256x1xi32>
    %72 = arith.addi %20, %71 : vector<256x1xi32>
    %c64_i32_18 = arith.constant 64 : i32
    %73 = vector.broadcast %c64_i32_18 : i32 to vector<256x1xi32>
    %74 = arith.cmpi slt, %72, %73 : vector<256x1xi32>
    %75 = arith.andi %70, %74 : vector<256x1xi1>
    %cst_19 = arith.constant 0.000000e+00 : f32
    %76 = vector.broadcast %cst_19 : f32 to vector<256x128xf32>
    %77 = vector.shape_cast %75 : vector<256x1xi1> to vector<256x1xi1>
    %78 = vector.broadcast %77 : vector<256x1xi1> to vector<256x128xi1>
    %79 = arith.select %78, %66, %76 : vector<256x128xi1>, vector<256x128xf32>
    %80 = vector.extract_strided_slice %3 {offsets = [3, 0], sizes = [1, 128], strides = [1, 1]} : vector<5x128xf32> to vector<1x128xf32>
    %81 = vector.shape_cast %80 : vector<1x128xf32> to vector<128xf32>
    %82 = vector.shape_cast %81 : vector<128xf32> to vector<1x128xf32>
    %83 = vector.broadcast %82 : vector<1x128xf32> to vector<256x128xf32>
    %84 = arith.mulf %79, %83 : vector<256x128xf32>
    %85 = arith.addf %65, %84 : vector<256x128xf32>
    %c254_i32 = arith.constant 254 : i32
    %86 = tpu.dynamic_rotate %2 by %c254_i32 dim 0 : vector<256x128xf32>, i32 -> vector<256x128xf32>
    %c2_i32_20 = arith.constant 2 : i32
    %87 = vector.broadcast %c2_i32_20 : i32 to vector<256x1xi32>
    %88 = arith.addi %20, %87 : vector<256x1xi32>
    %c0_i32_21 = arith.constant 0 : i32
    %89 = vector.broadcast %c0_i32_21 : i32 to vector<256x1xi32>
    %90 = arith.cmpi sge, %88, %89 : vector<256x1xi32>
    %c2_i32_22 = arith.constant 2 : i32
    %91 = vector.broadcast %c2_i32_22 : i32 to vector<256x1xi32>
    %92 = arith.addi %20, %91 : vector<256x1xi32>
    %c64_i32_23 = arith.constant 64 : i32
    %93 = vector.broadcast %c64_i32_23 : i32 to vector<256x1xi32>
    %94 = arith.cmpi slt, %92, %93 : vector<256x1xi32>
    %95 = arith.andi %90, %94 : vector<256x1xi1>
    %cst_24 = arith.constant 0.000000e+00 : f32
    %96 = vector.broadcast %cst_24 : f32 to vector<256x128xf32>
    %97 = vector.shape_cast %95 : vector<256x1xi1> to vector<256x1xi1>
    %98 = vector.broadcast %97 : vector<256x1xi1> to vector<256x128xi1>
    %99 = arith.select %98, %86, %96 : vector<256x128xi1>, vector<256x128xf32>
    %100 = vector.extract_strided_slice %3 {offsets = [4, 0], sizes = [1, 128], strides = [1, 1]} : vector<5x128xf32> to vector<1x128xf32>
    %101 = vector.shape_cast %100 : vector<1x128xf32> to vector<128xf32>
    %102 = vector.shape_cast %101 : vector<128xf32> to vector<1x128xf32>
    %103 = vector.broadcast %102 : vector<1x128xf32> to vector<256x128xf32>
    %104 = arith.mulf %99, %103 : vector<256x128xf32>
    %105 = arith.addf %85, %104 : vector<256x128xf32>
    %106 = arith.truncf %105 : vector<256x128xf32> to vector<256x128xbf16>
    %c0_25 = arith.constant 0 : index
    %c0_26 = arith.constant 0 : index
    %107 = vector.load %arg3[%c0_25, %c0_26] : memref<128x384xbf16, #tpu.memory_space<vmem>>, vector<128x384xbf16>
    %cst_27 = arith.constant dense<0.000000e+00> : vector<256x384xf32>
    %108 = tpu.matmul %106, %107, %cst_27 {dimension_numbers = #tpu.dot_dimension_numbers<[1], [0], [0], [1], [0, 0, 1, 1], [], []>} : vector<256x128xbf16>, vector<128x384xbf16>, vector<256x384xf32> -> vector<256x384xf32>
    %c0_28 = arith.constant 0 : index
    %c0_29 = arith.constant 0 : index
    %109 = vector.load %arg4[%c0_28, %c0_29] : memref<1x384xf32, #tpu.memory_space<vmem>>, vector<1x384xf32>
    %110 = vector.broadcast %109 : vector<1x384xf32> to vector<256x384xf32>
    %111 = arith.addf %108, %110 : vector<256x384xf32>
    %112 = vector.extract_strided_slice %111 {offsets = [0, 0], sizes = [256, 128], strides = [1, 1]} : vector<256x384xf32> to vector<256x128xf32>
    %113 = vector.extract_strided_slice %111 {offsets = [0, 128], sizes = [256, 128], strides = [1, 1]} : vector<256x384xf32> to vector<256x128xf32>
    %114 = arith.negf %113 : vector<256x128xf32>
    %115 = math.exp %114 : vector<256x128xf32>
    %cst_30 = arith.constant 1.000000e+00 : f32
    %116 = vector.broadcast %cst_30 : f32 to vector<256x128xf32>
    %117 = arith.addf %116, %115 : vector<256x128xf32>
    %118 = arith.divf %116, %117 : vector<256x128xf32>
    %119 = vector.extract_strided_slice %111 {offsets = [0, 256], sizes = [256, 128], strides = [1, 1]} : vector<256x384xf32> to vector<256x128xf32>
    %cst_31 = arith.constant 0.000000e+00 : f32
    %120 = vector.broadcast %cst_31 : f32 to vector<256x128xf32>
    %121 = arith.maximumf %119, %120 : vector<256x128xf32>
    %122 = arith.subf %121, %112 : vector<256x128xf32>
    %123 = arith.mulf %118, %122 : vector<256x128xf32>
    %124 = arith.addf %112, %123 : vector<256x128xf32>
    %125 = arith.truncf %124 : vector<256x128xf32> to vector<256x128xbf16>
    %c0_32 = arith.constant 0 : index
    %c0_33 = arith.constant 0 : index
    %126 = vector.load %arg5[%c0_32, %c0_33] : memref<128x256xbf16, #tpu.memory_space<vmem>>, vector<128x256xbf16>
    %cst_34 = arith.constant dense<0.000000e+00> : vector<256x256xf32>
    %127 = tpu.matmul %125, %126, %cst_34 {dimension_numbers = #tpu.dot_dimension_numbers<[1], [0], [0], [1], [0, 0, 1, 1], [], []>} : vector<256x128xbf16>, vector<128x256xbf16>, vector<256x256xf32> -> vector<256x256xf32>
    %c0_35 = arith.constant 0 : index
    %c0_36 = arith.constant 0 : index
    %128 = vector.load %arg6[%c0_35, %c0_36] : memref<1x256xf32, #tpu.memory_space<vmem>>, vector<1x256xf32>
    %129 = vector.broadcast %128 : vector<1x256xf32> to vector<256x256xf32>
    %130 = arith.addf %127, %129 : vector<256x256xf32>
    %131 = vector.extract_strided_slice %130 {offsets = [0, 0], sizes = [256, 128], strides = [1, 1]} : vector<256x256xf32> to vector<256x128xf32>
    %132 = arith.negf %131 : vector<256x128xf32>
    %133 = math.exp %132 : vector<256x128xf32>
    %cst_37 = arith.constant 1.000000e+00 : f32
    %134 = vector.broadcast %cst_37 : f32 to vector<256x128xf32>
    %135 = arith.addf %134, %133 : vector<256x128xf32>
    %136 = arith.divf %134, %135 : vector<256x128xf32>
    %137 = vector.extract_strided_slice %130 {offsets = [0, 128], sizes = [256, 128], strides = [1, 1]} : vector<256x256xf32> to vector<256x128xf32>
    %cst_38 = arith.constant 0.000000e+00 : f32
    %138 = vector.broadcast %cst_38 : f32 to vector<256x128xf32>
    %139 = arith.maximumf %137, %138 : vector<256x128xf32>
    %140 = arith.subf %139, %124 : vector<256x128xf32>
    %141 = arith.mulf %136, %140 : vector<256x128xf32>
    %142 = arith.addf %124, %141 : vector<256x128xf32>
    %143 = vector.shape_cast %142 : vector<256x128xf32> to vector<4x64x128xf32>
    %c0_39 = arith.constant 0 : index
    %c0_40 = arith.constant 0 : index
    %c0_41 = arith.constant 0 : index
    %144 = vector.load %arg7[%c0_39, %c0_40, %c0_41] : memref<4x64x128xf32, #tpu.memory_space<vmem>>, vector<4x64x128xf32>
    tpu.vector_store %arg7[%c0_39, %c0_40, %c0_41], %143 {strides = array<i32>} : memref<4x64x128xf32, #tpu.memory_space<vmem>>, vector<4x64x128xf32>,
    return
  }
  func.func @transform_0(%arg0: i32) -> (i32, i32, i32) {
    %c0_i32 = arith.constant 0 : i32
    %c0_i32_0 = arith.constant 0 : i32
    %c0_i32_1 = arith.constant 0 : i32
    return %arg0, %c0_i32, %c0_i32_0 : i32, i32, i32
  }
  func.func @transform_1(%arg0: i32) -> (i32, i32) {
    %c0_i32 = arith.constant 0 : i32
    %c0_i32_0 = arith.constant 0 : i32
    %c0_i32_1 = arith.constant 0 : i32
    return %c0_i32, %c0_i32_0 : i32, i32
  }
  func.func @transform_2(%arg0: i32) -> (i32, i32) {
    %c0_i32 = arith.constant 0 : i32
    %c0_i32_0 = arith.constant 0 : i32
    %c0_i32_1 = arith.constant 0 : i32
    return %c0_i32, %c0_i32_0 : i32, i32
  }
  func.func @transform_3(%arg0: i32) -> (i32, i32) {
    %c0_i32 = arith.constant 0 : i32
    %c0_i32_0 = arith.constant 0 : i32
    %c0_i32_1 = arith.constant 0 : i32
    return %c0_i32, %c0_i32_0 : i32, i32
  }
  func.func @transform_4(%arg0: i32) -> (i32, i32) {
    %c0_i32 = arith.constant 0 : i32
    %c0_i32_0 = arith.constant 0 : i32
    %c0_i32_1 = arith.constant 0 : i32
    return %c0_i32, %c0_i32_0 : i32, i32
  }
  func.func @transform_5(%arg0: i32) -> (i32, i32) {
    %c0_i32 = arith.constant 0 : i32
    %c0_i32_0 = arith.constant 0 : i32
    %c0_i32_1 = arith.constant 0 : i32
    return %c0_i32, %c0_i32_0 : i32, i32
  }
  func.func @transform_6(%arg0: i32) -> (i32, i32, i32) {
    %c0_i32 = arith.constant 0 : i32
    %c0_i32_0 = arith.constant 0 : i32
    %c0_i32_1 = arith.constant 0 : i32
    return %arg0, %c0_i32, %c0_i32_0 : i32, i32, i32
  }
}

</mosaic_0001>

<llo_original>
// kernel: tpu_custom_call.1
$region0: #{tpu_custom_call.1}
  #allocation0 [shape = 'u32[]', space=smem, size = 0x4, offset = 0x4, fixed_abs, tag = 'smem constant byte address 0x4 - core index']
  #allocation1 [shape = 'u32[144,128]{1,0:T(1,128)}', space=vmem, size = 0x12000, scoped, tag = 'internal scratch']
  %s0 = inlined_call_operand.hbm [shape: bf16[8,64,128], index: 0, kind: input, shape index: {}]
  %s1 = inlined_call_operand.hbm [shape: f32[5,128], index: 1, kind: input, shape index: {}]
  %s2 = inlined_call_operand.hbm [shape: bf16[128,384], index: 2, kind: input, shape index: {}]
  %s3 = inlined_call_operand.vmem [shape: f32[1,384], index: 3, kind: input, shape index: {}]
  %s4 = inlined_call_operand.hbm [shape: bf16[128,256], index: 4, kind: input, shape index: {}]
  %s5 = inlined_call_operand.vmem [shape: f32[1,256], index: 5, kind: input, shape index: {}]
  %s6 = inlined_call_operand.hbm [shape: f32[8,64,128], index: 6, kind: output, shape index: {}]
  %s7 = sld [smem:[#allocation0]]
  $region73: #{tpu_custom_call.1} parent=0
    _
  %s9 = ssub.s32 1, %s7
  %s10 = scalar_select 0, %s9, %s7
  $region1: #{tpu_custom_call.1} parent=0
    #allocation2 [shape = 'u8[131072]{0}', space=vmem, size = 0x20000, scoped, tag = 'input window, operand 0']
    #allocation3 [shape = 's32[2]{0}', space=sflag, size = 0x8, scoped, tag = 'scoped memory for tpu_custom_call.1']
    #allocation4 [shape = 's32[2]{0}', space=sflag, size = 0x8, scoped, tag = 'scoped memory for tpu_custom_call.1']
    #allocation5 [shape = 'u8[4096]{0}', space=vmem, size = 0x1000, scoped, tag = 'input window, operand 1, single buffered']
    #allocation6 [shape = 's32[1]{0}', space=sflag, size = 0x4, scoped, tag = 'scoped memory for tpu_custom_call.1']
    #allocation7 [shape = 'u8[98304]{0}', space=vmem, size = 0x18000, scoped, tag = 'input window, operand 2, single buffered']
    #allocation8 [shape = 'u8[65536]{0}', space=vmem, size = 0x10000, scoped, tag = 'input window, operand 4, single buffered']
    #allocation9 [shape = 's32[1]{0}', space=sflag, size = 0x4, scoped, tag = 'scoped memory for tpu_custom_call.1']
    #allocation10 [shape = 'u8[262144]{0}', space=vmem, size = 0x40000, scoped, tag = 'output window, operand 0']
    %11 = vsyncpa [#allocation3], 0
    %s12 = scalar_lea.sflag [#allocation3], 1
    %13 = vsyncpa %s12, 0
    %14 = vsyncpa [#allocation6], 0
    %15 = vsyncpa [#allocation9], 0
    %16 = vsyncpa [#allocation4], 0
    %s17 = scalar_lea.sflag [#allocation4], 1
    %18 = vsyncpa %s17, 0
    loop: start=0, step=1, limit=4
    $region2: #{tpu_custom_call.1} parent=1 // loop_pre_header
      _
    $region3: #{tpu_custom_call.1} parent=1 // loop_header
      %s20 = sphi 0, %s24
      %p21 = scmp.ge.s32.totalorder %s20, 4
      %s30 = sphi 0, %s32
      %s33 = sphi 0, %s30
      %s34 = sphi 0, %s33
      %s50 = sphi 0, %s34
      %s54 = sphi 0, %s54
      %s56 = sphi 0, %s54
      %s57 = sphi 0, %s56
      %s71 = sphi 0, %s57
      %s75 = sphi 0, %s75
      %s77 = sphi 0, %s75
      %s78 = sphi 0, %s77
      %s92 = sphi 0, %s78
      %s96 = sphi 0, %s96
      %s98 = sphi 0, %s96
      %s99 = sphi 0, %s98
      %s113 = sphi 0, %s99
      %s117 = sphi 0, %s117
      %s119 = sphi 0, %s117
      %s120 = sphi 0, %s119
      %s134 = sphi 0, %s120
      %s138 = sphi 0, %s138
      %s140 = sphi 0, %s138
      %s141 = sphi 0, %s140
      %s155 = sphi 0, %s141
      %s161 = sphi 0, %s163
      %s164 = sphi 0, %s161
      %s165 = sphi 0, %s164
      %s181 = sphi 0, %s165
    $region4: #{tpu_custom_call.1} parent=1 // loop_header_branch
      %23 = sbr.rel (%p21) target = $region8
    $region5: #{tpu_custom_call.1} parent=1 // loop_body
      %s25 = ssub.s32 %s20, 1
      %s26 = ssub.s32 %s20, 2
      %s27 = sadd.s32 %s20, 1
      %s28 = ssub.s32 %s20, %s27
      %p29 = scmp.eq.s32.totalorder %s28, 0
      %s31 = sadd.s32 %s30, 1
      %s32 = scalar_select %p29, %s30, %s31
      %p35 = pneg %p29
      %p36 = scmp.eq.s32.totalorder %s20, 1
      %p37 = por %p35, %p36
      %p38 = scmp.ne.s32.totalorder %s30, %s33
      %p39 = scmp.eq.s32.totalorder %s20, 0
      %p40 = por %p38, %p39
      %p41 = scmp.ne.s32.totalorder %s30, %s33
      %p42 = scmp.eq.s32.totalorder %s25, 1
      %p43 = por %p41, %p42
      %p44 = scmp.ne.s32.totalorder %s33, %s34
      %p45 = scmp.eq.s32.totalorder %s25, 0
      %p46 = por %p44, %p45
      %p47 = scmp.ne.s32.totalorder %s33, %s34
      %p48 = scmp.eq.s32.totalorder %s26, 1
      %p49 = por %p47, %p48
      %p51 = scmp.ne.s32.totalorder %s34, %s50
      %p52 = scmp.eq.s32.totalorder %s26, 0
      %p53 = por %p51, %p52
      %s55 = sadd.s32 %s54, 1
      %p58 = scmp.eq.s32.totalorder %s20, 1
      %p59 = scmp.ne.s32.totalorder %s54, %s56
      %p60 = scmp.eq.s32.totalorder %s20, 0
      %p61 = por %p59, %p60
      %p62 = scmp.ne.s32.totalorder %s54, %s56
      %p63 = scmp.eq.s32.totalorder %s25, 1
      %p64 = por %p62, %p63
      %p65 = scmp.ne.s32.totalorder %s56, %s57
      %p66 = scmp.eq.s32.totalorder %s25, 0
      %p67 = por %p65, %p66
      %p68 = scmp.ne.s32.totalorder %s56, %s57
      %p69 = scmp.eq.s32.totalorder %s26, 1
      %p70 = por %p68, %p69
      %p72 = scmp.ne.s32.totalorder %s57, %s71
      %p73 = scmp.eq.s32.totalorder %s26, 0
      %p74 = por %p72, %p73
      %s76 = sadd.s32 %s75, 1
      %p79 = scmp.eq.s32.totalorder %s20, 1
      %p80 = scmp.ne.s32.totalorder %s75, %s77
      %p81 = scmp.eq.s32.totalorder %s20, 0
      %p82 = por %p80, %p81
      %p83 = scmp.ne.s32.totalorder %s75, %s77
      %p84 = scmp.eq.s32.totalorder %s25, 1
      %p85 = por %p83, %p84
      %p86 = scmp.ne.s32.totalorder %s77, %s78
      %p87 = scmp.eq.s32.totalorder %s25, 0
      %p88 = por %p86, %p87
      %p89 = scmp.ne.s32.totalorder %s77, %s78
      %p90 = scmp.eq.s32.totalorder %s26, 1
      %p91 = por %p89, %p90
      %p93 = scmp.ne.s32.totalorder %s78, %s92
      %p94 = scmp.eq.s32.totalorder %s26, 0
      %p95 = por %p93, %p94
      %s97 = sadd.s32 %s96, 1
      %p100 = scmp.eq.s32.totalorder %s20, 1
      %p101 = scmp.ne.s32.totalorder %s96, %s98
      %p102 = scmp.eq.s32.totalorder %s20, 0
      %p103 = por %p101, %p102
      %p104 = scmp.ne.s32.totalorder %s96, %s98
      %p105 = scmp.eq.s32.totalorder %s25, 1
      %p106 = por %p104, %p105
      %p107 = scmp.ne.s32.totalorder %s98, %s99
      %p108 = scmp.eq.s32.totalorder %s25, 0
      %p109 = por %p107, %p108
      %p110 = scmp.ne.s32.totalorder %s98, %s99
      %p111 = scmp.eq.s32.totalorder %s26, 1
      %p112 = por %p110, %p111
      %p114 = scmp.ne.s32.totalorder %s99, %s113
      %p115 = scmp.eq.s32.totalorder %s26, 0
      %p116 = por %p114, %p115
      %s118 = sadd.s32 %s117, 1
      %p121 = scmp.eq.s32.totalorder %s20, 1
      %p122 = scmp.ne.s32.totalorder %s117, %s119
      %p123 = scmp.eq.s32.totalorder %s20, 0
      %p124 = por %p122, %p123
      %p125 = scmp.ne.s32.totalorder %s117, %s119
      %p126 = scmp.eq.s32.totalorder %s25, 1
      %p127 = por %p125, %p126
      %p128 = scmp.ne.s32.totalorder %s119, %s120
      %p129 = scmp.eq.s32.totalorder %s25, 0
      %p130 = por %p128, %p129
      %p131 = scmp.ne.s32.totalorder %s119, %s120
      %p132 = scmp.eq.s32.totalorder %s26, 1
      %p133 = por %p131, %p132
      %p135 = scmp.ne.s32.totalorder %s120, %s134
      %p136 = scmp.eq.s32.totalorder %s26, 0
      %p137 = por %p135, %p136
      %s139 = sadd.s32 %s138, 1
      %p142 = scmp.eq.s32.totalorder %s20, 1
      %p143 = scmp.ne.s32.totalorder %s138, %s140
      %p144 = scmp.eq.s32.totalorder %s20, 0
      %p145 = por %p143, %p144
      %p146 = scmp.ne.s32.totalorder %s138, %s140
      %p147 = scmp.eq.s32.totalorder %s25, 1
      %p148 = por %p146, %p147
      %p149 = scmp.ne.s32.totalorder %s140, %s141
      %p150 = scmp.eq.s32.totalorder %s25, 0
      %p151 = por %p149, %p150
      %p152 = scmp.ne.s32.totalorder %s140, %s141
      %p153 = scmp.eq.s32.totalorder %s26, 1
      %p154 = por %p152, %p153
      %p156 = scmp.ne.s32.totalorder %s141, %s155
      %p157 = scmp.eq.s32.totalorder %s26, 0
      %p158 = por %p156, %p157
      %s159 = ssub.s32 %s20, %s27
      %p160 = scmp.eq.s32.totalorder %s159, 0
      %s162 = sadd.s32 %s161, 1
      %s163 = scalar_select %p160, %s161, %s162
      %p166 = pneg %p160
      %p167 = scmp.eq.s32.totalorder %s20, 1
      %p168 = por %p166, %p167
      %p169 = scmp.ne.s32.totalorder %s161, %s164
      %p170 = scmp.eq.s32.totalorder %s20, 0
      %p171 = por %p169, %p170
      %p172 = scmp.ne.s32.totalorder %s161, %s164
      %p173 = scmp.eq.s32.totalorder %s25, 1
      %p174 = por %p172, %p173
      %p175 = scmp.ne.s32.totalorder %s164, %s165
      %p176 = scmp.eq.s32.totalorder %s25, 0
      %p177 = por %p175, %p176
      %p178 = scmp.ne.s32.totalorder %s164, %s165
      %p179 = scmp.eq.s32.totalorder %s26, 1
      %p180 = por %p178, %p179
      %p182 = scmp.ne.s32.totalorder %s165, %s181
      %p183 = scmp.eq.s32.totalorder %s26, 0
      %p184 = por %p182, %p183
      %p185 = scmp.le.s32.totalorder 1, %s20
      %p186 = scmp.lt.s32.totalorder %s20, 3
      %p187 = pnand %p185, %p186
      %p188 = pneg %p187
      // Predicated region
      $region9: #{tpu_custom_call.1} parent=5 // pred_check
        _
      $region10: #{tpu_custom_call.1} parent=5 // pred_check_branch
        %190 = sbr.rel (%p187) target = $region12
      $region11: #{tpu_custom_call.1} parent=5 // pred_region
        %s191 = ssub.s32 %s20, 1
        // Predicated region
        $region13: #{tpu_custom_call.1} parent=11 // pred_check
          %p192 = pneg %p67
        $region14: #{tpu_custom_call.1} parent=11 // pred_check_branch
          %194 = sbr.rel (%p192) target = $region16
        $region15: #{tpu_custom_call.1} parent=11 // pred_region
          %s196 = ssub.s32 128, 128
          %197 = vsyncadd [#allocation6], %s196
          %s199 = sshll.u32 [#allocation5], 4
          %s200 = int_to_ptr.vmem [resolvable:$true] %s199
          %202 = dma.hbm_to_vmem [thread:$0]  %s1, 128, %s200, [#allocation6]
        $region16: #{tpu_custom_call.1} parent=11 // pred_fallthru
          _
        // Predicated region
        $region17: #{tpu_custom_call.1} parent=11 // pred_check
          %p203 = pneg %p88
        $region18: #{tpu_custom_call.1} parent=11 // pred_check_branch
          %205 = sbr.rel (%p203) target = $region20
        $region19: #{tpu_custom_call.1} parent=11 // pred_region
          %s207 = ssub.s32 3072, 3072
          %208 = vsyncadd [#allocation6], %s207
          %s209 = sshll.u32 [#allocation7], 4
          %s210 = int_to_ptr.vmem [resolvable:$true] %s209
          %215 = dma.hbm_to_vmem [thread:$0]  %s2, 3072, %s210, [#allocation6], 192, 192, 12
        $region20: #{tpu_custom_call.1} parent=11 // pred_fallthru
          _
        // Predicated region
        $region21: #{tpu_custom_call.1} parent=11 // pred_check
          %p216 = pneg %p109
        $region22: #{tpu_custom_call.1} parent=11 // pred_check_branch
          %218 = sbr.rel (%p216) target = $region24
        $region23: #{tpu_custom_call.1} parent=11 // pred_region
          _
        $region24: #{tpu_custom_call.1} parent=11 // pred_fallthru
          _
        // Predicated region
        $region25: #{tpu_custom_call.1} parent=11 // pred_check
          %p219 = pneg %p130
        $region26: #{tpu_custom_call.1} parent=11 // pred_check_branch
          %221 = sbr.rel (%p219) target = $region28
        $region27: #{tpu_custom_call.1} parent=11 // pred_region
          %s223 = ssub.s32 2048, 2048
          %224 = vsyncadd [#allocation9], %s223
          %s225 = sshll.u32 [#allocation8], 4
          %s226 = int_to_ptr.vmem [resolvable:$true] %s225
          %231 = dma.hbm_to_vmem [thread:$0]  %s4, 2048, %s226, [#allocation9], 128, 128, 8
        $region28: #{tpu_custom_call.1} parent=11 // pred_fallthru
          _
        // Predicated region
        $region29: #{tpu_custom_call.1} parent=11 // pred_check
          %p232 = pneg %p151
        $region30: #{tpu_custom_call.1} parent=11 // pred_check_branch
          %234 = sbr.rel (%p232) target = $region32
        $region31: #{tpu_custom_call.1} parent=11 // pred_region
          _
        $region32: #{tpu_custom_call.1} parent=11 // pred_fallthru
          _
      $region12: #{tpu_custom_call.1} parent=5 // pred_fallthru
        _
      %p235 = scmp.lt.s32.totalorder %s20, 2
      // Predicated region
      $region33: #{tpu_custom_call.1} parent=5 // pred_check
        %p236 = pneg %p235
      $region34: #{tpu_custom_call.1} parent=5 // pred_check_branch
        %238 = sbr.rel (%p236) target = $region36
      $region35: #{tpu_custom_call.1} parent=5 // pred_region
        // Predicated region
        $region37: #{tpu_custom_call.1} parent=35 // pred_check
          %p239 = pneg %p40
        $region38: #{tpu_custom_call.1} parent=35 // pred_check_branch
          %241 = sbr.rel (%p239) target = $region40
        $region39: #{tpu_custom_call.1} parent=35 // pred_region
          %s242 = sand.u32 %s30, 1
          %s243 = scalar_lea.sflag [#allocation3], %s242
          %s244 = sand.u32 %s30, 1
          %s245 = smul.addr %s244, 128
          %s246 = scalar_lea.vmem [#allocation2], %s245
          %s247 = smul.u32 4, %s20
          %s249 = ssub.s32 2048, 2048
          %250 = vsyncadd %s243, %s249
          %s251 = smul.addr %s247, 8
          %s252 = smul.addr %s251, 64
          %s253 = scalar_lea.hbm %s0, %s252
          %s254 = sshll.u32 %s246, 4
          %s255 = int_to_ptr.vmem [resolvable:$true] %s254
          %260 = dma.hbm_to_vmem [thread:$0]  %s253, 2048, %s255, %s243, 64, 64, 4
        $region40: #{tpu_custom_call.1} parent=35 // pred_fallthru
          _
      $region36: #{tpu_custom_call.1} parent=5 // pred_fallthru
        _
      %p261 = scmp.le.s32.totalorder 1, %s20
      %p262 = scmp.lt.s32.totalorder %s20, 3
      %p263 = pnand %p261, %p262
      %p264 = pneg %p263
      // Predicated region
      $region41: #{tpu_custom_call.1} parent=5 // pred_check
        _
      $region42: #{tpu_custom_call.1} parent=5 // pred_check_branch
        %266 = sbr.rel (%p263) target = $region44
      $region43: #{tpu_custom_call.1} parent=5 // pred_region
        %s267 = ssub.s32 %s20, 1
        %s268 = sand.u32 %s33, 1
        %s269 = scalar_lea.sflag [#allocation3], %s268
        %s270 = sand.u32 %s33, 1
        %s271 = smul.addr %s270, 128
        %s272 = scalar_lea.vmem [#allocation2], %s271
        // Predicated region
        $region45: #{tpu_custom_call.1} parent=43 // pred_check
          %p273 = pneg %p46
        $region46: #{tpu_custom_call.1} parent=43 // pred_check_branch
          %275 = sbr.rel (%p273) target = $region48
        $region47: #{tpu_custom_call.1} parent=43 // pred_region
          %276 = dma.done %s269, 2048
        $region48: #{tpu_custom_call.1} parent=43 // pred_fallthru
          _
        // Predicated region
        $region49: #{tpu_custom_call.1} parent=43 // pred_check
          %p277 = pneg %p67
        $region50: #{tpu_custom_call.1} parent=43 // pred_check_branch
          %279 = sbr.rel (%p277) target = $region52
        $region51: #{tpu_custom_call.1} parent=43 // pred_region
          %280 = dma.done [#allocation6], 128
        $region52: #{tpu_custom_call.1} parent=43 // pred_fallthru
          _
        // Predicated region
        $region53: #{tpu_custom_call.1} parent=43 // pred_check
          %p281 = pneg %p88
        $region54: #{tpu_custom_call.1} parent=43 // pred_check_branch
          %283 = sbr.rel (%p281) target = $region56
        $region55: #{tpu_custom_call.1} parent=43 // pred_region
          %284 = dma.done [#allocation6], 3072
        $region56: #{tpu_custom_call.1} parent=43 // pred_fallthru
          _
        // Predicated region
        $region57: #{tpu_custom_call.1} parent=43 // pred_check
          %p285 = pneg %p130
        $region58: #{tpu_custom_call.1} parent=43 // pred_check_branch
          %287 = sbr.rel (%p285) target = $region60
        $region59: #{tpu_custom_call.1} parent=43 // pred_region
          %288 = dma.done [#allocation9], 2048
        $region60: #{tpu_custom_call.1} parent=43 // pred_fallthru
          _
        %s289 = sand.u32 %s33, 1
        %s290 = scalar_lea.sflag [#allocation3], %s289
        %s291 = sand.u32 %s33, 1
        %s292 = smul.addr %s291, 128
        %s293 = scalar_lea.vmem [#allocation2], %s292
        %p294 = pneg %p46
        %p295 = pneg %p43
        %p296 = pneg %p67
        %p297 = pneg %p64
        %p298 = pneg %p88
        %p299 = pneg %p85
        %p300 = pneg %p109
        %p301 = pneg %p106
        %p302 = pneg %p130
        %p303 = pneg %p127
        %p304 = pneg %p151
        %p305 = pneg %p148
        %p306 = pneg %p177
        %p307 = pneg %p174
        %s308 = sand.u32 %s164, 1
        %s309 = scalar_lea.sflag [#allocation4], %s308
        %s310 = sand.u32 %s164, 1
        %s311 = smul.addr %s310, 256
        %s312 = scalar_lea.vmem [#allocation10], %s311
        %s313 = smul.u32 4, %s25
        %s314 = smul.u32 4, %s25
        %v316 = vld [vmem:[%s272] sm:$0xf]
        %v317 = vld [vmem:[%s272 + $0x4] sm:$0xf]
        %v318 = vld [vmem:[%s272 + $0x8] sm:$0xf]
        %v319 = vld [vmem:[%s272 + $0xc] sm:$0xf]
        %v320 = vld [vmem:[%s272 + $0x10] sm:$0xf]
        %v321 = vld [vmem:[%s272 + $0x14] sm:$0xf]
        %v322 = vld [vmem:[%s272 + $0x18] sm:$0xf]
        %v323 = vld [vmem:[%s272 + $0x1c] sm:$0xf]
        %v324 = vld [vmem:[%s272 + $0x20] sm:$0xf]
        %v325 = vld [vmem:[%s272 + $0x24] sm:$0xf]
        %v326 = vld [vmem:[%s272 + $0x28] sm:$0xf]
        %v327 = vld [vmem:[%s272 + $0x2c] sm:$0xf]
        %v328 = vld [vmem:[%s272 + $0x30] sm:$0xf]
        %v329 = vld [vmem:[%s272 + $0x34] sm:$0xf]
        %v330 = vld [vmem:[%s272 + $0x38] sm:$0xf]
        %v331 = vld [vmem:[%s272 + $0x3c] sm:$0xf]
        %v332 = vld [vmem:[%s272 + $0x40] sm:$0xf]
        %v333 = vld [vmem:[%s272 + $0x44] sm:$0xf]
        %v334 = vld [vmem:[%s272 + $0x48] sm:$0xf]
        %v335 = vld [vmem:[%s272 + $0x4c] sm:$0xf]
        %v336 = vld [vmem:[%s272 + $0x50] sm:$0xf]
        %v337 = vld [vmem:[%s272 + $0x54] sm:$0xf]
        %v338 = vld [vmem:[%s272 + $0x58] sm:$0xf]
        %v339 = vld [vmem:[%s272 + $0x5c] sm:$0xf]
        %v340 = vld [vmem:[%s272 + $0x60] sm:$0xf]
        %v341 = vld [vmem:[%s272 + $0x64] sm:$0xf]
        %v342 = vld [vmem:[%s272 + $0x68] sm:$0xf]
        %v343 = vld [vmem:[%s272 + $0x6c] sm:$0xf]
        %v344 = vld [vmem:[%s272 + $0x70] sm:$0xf]
        %v345 = vld [vmem:[%s272 + $0x74] sm:$0xf]
        %v346 = vld [vmem:[%s272 + $0x78] sm:$0xf]
        %v347 = vld [vmem:[%s272 + $0x7c] sm:$0xf]
        %v348 = vunpack.c.l.bf16 %v316
        %v349 = vunpack.c.l.bf16 %v317
        %v350 = vunpack.c.l.bf16 %v318
        %v351 = vunpack.c.l.bf16 %v319
        %v352 = vunpack.c.l.bf16 %v320
        %v353 = vunpack.c.l.bf16 %v321
        %v354 = vunpack.c.l.bf16 %v322
        %v355 = vunpack.c.l.bf16 %v323
        %v356 = vunpack.c.l.bf16 %v324
        %v357 = vunpack.c.l.bf16 %v325
        %v358 = vunpack.c.l.bf16 %v326
        %v359 = vunpack.c.l.bf16 %v327
        %v360 = vunpack.c.l.bf16 %v328
        %v361 = vunpack.c.l.bf16 %v329
        %v362 = vunpack.c.l.bf16 %v330
        %v363 = vunpack.c.l.bf16 %v331
        %v364 = vunpack.c.l.bf16 %v332
        %v365 = vunpack.c.l.bf16 %v333
        %v366 = vunpack.c.l.bf16 %v334
        %v367 = vunpack.c.l.bf16 %v335
        %v368 = vunpack.c.l.bf16 %v336
        %v369 = vunpack.c.l.bf16 %v337
        %v370 = vunpack.c.l.bf16 %v338
        %v371 = vunpack.c.l.bf16 %v339
        %v372 = vunpack.c.l.bf16 %v340
        %v373 = vunpack.c.l.bf16 %v341
        %v374 = vunpack.c.l.bf16 %v342
        %v375 = vunpack.c.l.bf16 %v343
        %v376 = vunpack.c.l.bf16 %v344
        %v377 = vunpack.c.l.bf16 %v345
        %v378 = vunpack.c.l.bf16 %v346
        %v379 = vunpack.c.l.bf16 %v347
        %v380 = vld [vmem:[#allocation5] sm:$0x1f]
        %v381 = vlaneseq
        %v382 = vshrl.u32 %v381, 7
        %v383 = vadd.s32 %v382, 8
        %v384 = vadd.s32 %v382, 16
        %v385 = vadd.s32 %v382, 24
        %v386 = vadd.s32 %v382, 32
        %v387 = vadd.s32 %v382, 40
        %v388 = vadd.s32 %v382, 48
        %v389 = vadd.s32 %v382, 56
        %v390 = vadd.s32 %v382, 64
        %v391 = vadd.s32 %v382, 72
        %v392 = vadd.s32 %v382, 80
        %v393 = vadd.s32 %v382, 88
        %v394 = vadd.s32 %v382, 96
        %v395 = vadd.s32 %v382, 104
        %v396 = vadd.s32 %v382, 112
        %v397 = vadd.s32 %v382, 120
        %v398 = vadd.s32 %v382, 128
        %v399 = vadd.s32 %v382, 136
        %v400 = vadd.s32 %v382, 144
        %v401 = vadd.s32 %v382, 152
        %v402 = vadd.s32 %v382, 160
        %v403 = vadd.s32 %v382, 168
        %v404 = vadd.s32 %v382, 176
        %v405 = vadd.s32 %v382, 184
        %v406 = vadd.s32 %v382, 192
        %v407 = vadd.s32 %v382, 200
        %v408 = vadd.s32 %v382, 208
        %v409 = vadd.s32 %v382, 216
        %v410 = vadd.s32 %v382, 224
        %v411 = vadd.s32 %v382, 232
        %v412 = vadd.s32 %v382, 240
        %v413 = vadd.s32 %v382, 248
        %vm414 = vcmp.lt.s32.totalorder %v382, 0
        %v415 = vsub.s32 0, %v382
        %v416 = vsel %vm414, %v415, %v382
        %v417 = vshrl.u32 %v416, 6
        %v418 = vand.u32 %v416, 63
        %v419 = vsub.s32 0, %v418
        %v420 = vsel %vm414, %v419, %v418
        %vm421 = vcmp.lt.s32.totalorder %v383, 0
        %v422 = vsub.s32 0, %v383
        %v423 = vsel %vm421, %v422, %v383
        %v424 = vshrl.u32 %v423, 6
        %v425 = vand.u32 %v423, 63
        %v426 = vsub.s32 0, %v425
        %v427 = vsel %vm421, %v426, %v425
        %vm428 = vcmp.lt.s32.totalorder %v384, 0
        %v429 = vsub.s32 0, %v384
        %v430 = vsel %vm428, %v429, %v384
        %v431 = vshrl.u32 %v430, 6
        %v432 = vand.u32 %v430, 63
        %v433 = vsub.s32 0, %v432
        %v434 = vsel %vm428, %v433, %v432
        %vm435 = vcmp.lt.s32.totalorder %v385, 0
        %v436 = vsub.s32 0, %v385
        %v437 = vsel %vm435, %v436, %v385
        %v438 = vshrl.u32 %v437, 6
        %v439 = vand.u32 %v437, 63
        %v440 = vsub.s32 0, %v439
        %v441 = vsel %vm435, %v440, %v439
        %vm442 = vcmp.lt.s32.totalorder %v386, 0
        %v443 = vsub.s32 0, %v386
        %v444 = vsel %vm442, %v443, %v386
        %v445 = vshrl.u32 %v444, 6
        %v446 = vand.u32 %v444, 63
        %v447 = vsub.s32 0, %v446
        %v448 = vsel %vm442, %v447, %v446
        %vm449 = vcmp.lt.s32.totalorder %v387, 0
        %v450 = vsub.s32 0, %v387
        %v451 = vsel %vm449, %v450, %v387
        %v452 = vshrl.u32 %v451, 6
        %v453 = vand.u32 %v451, 63
        %v454 = vsub.s32 0, %v453
        %v455 = vsel %vm449, %v454, %v453
        %vm456 = vcmp.lt.s32.totalorder %v388, 0
        %v457 = vsub.s32 0, %v388
        %v458 = vsel %vm456, %v457, %v388
        %v459 = vshrl.u32 %v458, 6
        %v460 = vand.u32 %v458, 63
        %v461 = vsub.s32 0, %v460
        %v462 = vsel %vm456, %v461, %v460
        %vm463 = vcmp.lt.s32.totalorder %v389, 0
        %v464 = vsub.s32 0, %v389
        %v465 = vsel %vm463, %v464, %v389
        %v466 = vshrl.u32 %v465, 6
        %v467 = vand.u32 %v465, 63
        %v468 = vsub.s32 0, %v467
        %v469 = vsel %vm463, %v468, %v467
        %vm470 = vcmp.lt.s32.totalorder %v390, 0
        %v471 = vsub.s32 0, %v390
        %v472 = vsel %vm470, %v471, %v390
        %v473 = vshrl.u32 %v472, 6
        %v474 = vand.u32 %v472, 63
        %v475 = vsub.s32 0, %v474
        %v476 = vsel %vm470, %v475, %v474
        %vm477 = vcmp.lt.s32.totalorder %v391, 0
        %v478 = vsub.s32 0, %v391
        %v479 = vsel %vm477, %v478, %v391
        %v480 = vshrl.u32 %v479, 6
        %v481 = vand.u32 %v479, 63
        %v482 = vsub.s32 0, %v481
        %v483 = vsel %vm477, %v482, %v481
        %vm484 = vcmp.lt.s32.totalorder %v392, 0
        %v485 = vsub.s32 0, %v392
        %v486 = vsel %vm484, %v485, %v392
        %v487 = vshrl.u32 %v486, 6
        %v488 = vand.u32 %v486, 63
        %v489 = vsub.s32 0, %v488
        %v490 = vsel %vm484, %v489, %v488
        %vm491 = vcmp.lt.s32.totalorder %v393, 0
        %v492 = vsub.s32 0, %v393
        %v493 = vsel %vm491, %v492, %v393
        %v494 = vshrl.u32 %v493, 6
        %v495 = vand.u32 %v493, 63
        %v496 = vsub.s32 0, %v495
        %v497 = vsel %vm491, %v496, %v495
        %vm498 = vcmp.lt.s32.totalorder %v394, 0
        %v499 = vsub.s32 0, %v394
        %v500 = vsel %vm498, %v499, %v394
        %v501 = vshrl.u32 %v500, 6
        %v502 = vand.u32 %v500, 63
        %v503 = vsub.s32 0, %v502
        %v504 = vsel %vm498, %v503, %v502
        %vm505 = vcmp.lt.s32.totalorder %v395, 0
        %v506 = vsub.s32 0, %v395
        %v507 = vsel %vm505, %v506, %v395
        %v508 = vshrl.u32 %v507, 6
        %v509 = vand.u32 %v507, 63
        %v510 = vsub.s32 0, %v509
        %v511 = vsel %vm505, %v510, %v509
        %vm512 = vcmp.lt.s32.totalorder %v396, 0
        %v513 = vsub.s32 0, %v396
        %v514 = vsel %vm512, %v513, %v396
        %v515 = vshrl.u32 %v514, 6
        %v516 = vand.u32 %v514, 63
        %v517 = vsub.s32 0, %v516
        %v518 = vsel %vm512, %v517, %v516
        %vm519 = vcmp.lt.s32.totalorder %v397, 0
        %v520 = vsub.s32 0, %v397
        %v521 = vsel %vm519, %v520, %v397
        %v522 = vshrl.u32 %v521, 6
        %v523 = vand.u32 %v521, 63
        %v524 = vsub.s32 0, %v523
        %v525 = vsel %vm519, %v524, %v523
        %vm526 = vcmp.lt.s32.totalorder %v398, 0
        %v527 = vsub.s32 0, %v398
        %v528 = vsel %vm526, %v527, %v398
        %v529 = vshrl.u32 %v528, 6
        %v530 = vand.u32 %v528, 63
        %v531 = vsub.s32 0, %v530
        %v532 = vsel %vm526, %v531, %v530
        %vm533 = vcmp.lt.s32.totalorder %v399, 0
        %v534 = vsub.s32 0, %v399
        %v535 = vsel %vm533, %v534, %v399
        %v536 = vshrl.u32 %v535, 6
        %v537 = vand.u32 %v535, 63
        %v538 = vsub.s32 0, %v537
        %v539 = vsel %vm533, %v538, %v537
        %vm540 = vcmp.lt.s32.totalorder %v400, 0
        %v541 = vsub.s32 0, %v400
        %v542 = vsel %vm540, %v541, %v400
        %v543 = vshrl.u32 %v542, 6
        %v544 = vand.u32 %v542, 63
        %v545 = vsub.s32 0, %v544
        %v546 = vsel %vm540, %v545, %v544
        %vm547 = vcmp.lt.s32.totalorder %v401, 0
        %v548 = vsub.s32 0, %v401
        %v549 = vsel %vm547, %v548, %v401
        %v550 = vshrl.u32 %v549, 6
        %v551 = vand.u32 %v549, 63
        %v552 = vsub.s32 0, %v551
        %v553 = vsel %vm547, %v552, %v551
        %vm554 = vcmp.lt.s32.totalorder %v402, 0
        %v555 = vsub.s32 0, %v402
        %v556 = vsel %vm554, %v555, %v402
        %v557 = vshrl.u32 %v556, 6
        %v558 = vand.u32 %v556, 63
        %v559 = vsub.s32 0, %v558
        %v560 = vsel %vm554, %v559, %v558
        %vm561 = vcmp.lt.s32.totalorder %v403, 0
        %v562 = vsub.s32 0, %v403
        %v563 = vsel %vm561, %v562, %v403
        %v564 = vshrl.u32 %v563, 6
        %v565 = vand.u32 %v563, 63
        %v566 = vsub.s32 0, %v565
        %v567 = vsel %vm561, %v566, %v565
        %vm568 = vcmp.lt.s32.totalorder %v404, 0
        %v569 = vsub.s32 0, %v404
        %v570 = vsel %vm568, %v569, %v404
        %v571 = vshrl.u32 %v570, 6
        %v572 = vand.u32 %v570, 63
        %v573 = vsub.s32 0, %v572
        %v574 = vsel %vm568, %v573, %v572
        %vm575 = vcmp.lt.s32.totalorder %v405, 0
        %v576 = vsub.s32 0, %v405
        %v577 = vsel %vm575, %v576, %v405
        %v578 = vshrl.u32 %v577, 6
        %v579 = vand.u32 %v577, 63
        %v580 = vsub.s32 0, %v579
        %v581 = vsel %vm575, %v580, %v579
        %vm582 = vcmp.lt.s32.totalorder %v406, 0
        %v583 = vsub.s32 0, %v406
        %v584 = vsel %vm582, %v583, %v406
        %v585 = vshrl.u32 %v584, 6
        %v586 = vand.u32 %v584, 63
        %v587 = vsub.s32 0, %v586
        %v588 = vsel %vm582, %v587, %v586
        %vm589 = vcmp.lt.s32.totalorder %v407, 0
        %v590 = vsub.s32 0, %v407
        %v591 = vsel %vm589, %v590, %v407
        %v592 = vshrl.u32 %v591, 6
        %v593 = vand.u32 %v591, 63
        %v594 = vsub.s32 0, %v593
        %v595 = vsel %vm589, %v594, %v593
        %vm596 = vcmp.lt.s32.totalorder %v408, 0
        %v597 = vsub.s32 0, %v408
        %v598 = vsel %vm596, %v597, %v408
        %v599 = vshrl.u32 %v598, 6
        %v600 = vand.u32 %v598, 63
        %v601 = vsub.s32 0, %v600
        %v602 = vsel %vm596, %v601, %v600
        %vm603 = vcmp.lt.s32.totalorder %v409, 0
        %v604 = vsub.s32 0, %v409
        %v605 = vsel %vm603, %v604, %v409
        %v606 = vshrl.u32 %v605, 6
        %v607 = vand.u32 %v605, 63
        %v608 = vsub.s32 0, %v607
        %v609 = vsel %vm603, %v608, %v607
        %vm610 = vcmp.lt.s32.totalorder %v410, 0
        %v611 = vsub.s32 0, %v410
        %v612 = vsel %vm610, %v611, %v410
        %v613 = vshrl.u32 %v612, 6
        %v614 = vand.u32 %v612, 63
        %v615 = vsub.s32 0, %v614
        %v616 = vsel %vm610, %v615, %v614
        %vm617 = vcmp.lt.s32.totalorder %v411, 0
        %v618 = vsub.s32 0, %v411
        %v619 = vsel %vm617, %v618, %v411
        %v620 = vshrl.u32 %v619, 6
        %v621 = vand.u32 %v619, 63
        %v622 = vsub.s32 0, %v621
        %v623 = vsel %vm617, %v622, %v621
        %vm624 = vcmp.lt.s32.totalorder %v412, 0
        %v625 = vsub.s32 0, %v412
        %v626 = vsel %vm624, %v625, %v412
        %v627 = vshrl.u32 %v626, 6
        %v628 = vand.u32 %v626, 63
        %v629 = vsub.s32 0, %v628
        %v630 = vsel %vm624, %v629, %v628
        %vm631 = vcmp.lt.s32.totalorder %v413, 0
        %v632 = vsub.s32 0, %v413
        %v633 = vsel %vm631, %v632, %v413
        %v634 = vshrl.u32 %v633, 6
        %v635 = vand.u32 %v633, 63
        %v636 = vsub.s32 0, %v635
        %v637 = vsel %vm631, %v636, %v635
        %vm638 = vcmp.ne.s32.totalorder %v420, 0
        %vm639 = vcmp.ne.s32.totalorder %v427, 0
        %vm640 = vcmp.ne.s32.totalorder %v434, 0
        %vm641 = vcmp.ne.s32.totalorder %v441, 0
        %vm642 = vcmp.ne.s32.totalorder %v448, 0
        %vm643 = vcmp.ne.s32.totalorder %v455, 0
        %vm644 = vcmp.ne.s32.totalorder %v462, 0
        %vm645 = vcmp.ne.s32.totalorder %v469, 0
        %vm646 = vcmp.ne.s32.totalorder %v476, 0
        %vm647 = vcmp.ne.s32.totalorder %v483, 0
        %vm648 = vcmp.ne.s32.totalorder %v490, 0
        %vm649 = vcmp.ne.s32.totalorder %v497, 0
        %vm650 = vcmp.ne.s32.totalorder %v504, 0
        %vm651 = vcmp.ne.s32.totalorder %v511, 0
        %vm652 = vcmp.ne.s32.totalorder %v518, 0
        %vm653 = vcmp.ne.s32.totalorder %v525, 0
        %vm654 = vcmp.ne.s32.totalorder %v532, 0
        %vm655 = vcmp.ne.s32.totalorder %v539, 0
        %vm656 = vcmp.ne.s32.totalorder %v546, 0
        %vm657 = vcmp.ne.s32.totalorder %v553, 0
        %vm658 = vcmp.ne.s32.totalorder %v560, 0
        %vm659 = vcmp.ne.s32.totalorder %v567, 0
        %vm660 = vcmp.ne.s32.totalorder %v574, 0
        %vm661 = vcmp.ne.s32.totalorder %v581, 0
        %vm662 = vcmp.ne.s32.totalorder %v588, 0
        %vm663 = vcmp.ne.s32.totalorder %v595, 0
        %vm664 = vcmp.ne.s32.totalorder %v602, 0
        %vm665 = vcmp.ne.s32.totalorder %v609, 0
        %vm666 = vcmp.ne.s32.totalorder %v616, 0
        %vm667 = vcmp.ne.s32.totalorder %v623, 0
        %vm668 = vcmp.ne.s32.totalorder %v630, 0
        %vm669 = vcmp.ne.s32.totalorder %v637, 0
        %vm670 = vcmp.lt.s32.totalorder %v420, 0
        %vm671 = vcmp.lt.s32.totalorder %v427, 0
        %vm672 = vcmp.lt.s32.totalorder %v434, 0
        %vm673 = vcmp.lt.s32.totalorder %v441, 0
        %vm674 = vcmp.lt.s32.totalorder %v448, 0
        %vm675 = vcmp.lt.s32.totalorder %v455, 0
        %vm676 = vcmp.lt.s32.totalorder %v462, 0
        %vm677 = vcmp.lt.s32.totalorder %v469, 0
        %vm678 = vcmp.lt.s32.totalorder %v476, 0
        %vm679 = vcmp.lt.s32.totalorder %v483, 0
        %vm680 = vcmp.lt.s32.totalorder %v490, 0
        %vm681 = vcmp.lt.s32.totalorder %v497, 0
        %vm682 = vcmp.lt.s32.totalorder %v504, 0
        %vm683 = vcmp.lt.s32.totalorder %v511, 0
        %vm684 = vcmp.lt.s32.totalorder %v518, 0
        %vm685 = vcmp.lt.s32.totalorder %v525, 0
        %vm686 = vcmp.lt.s32.totalorder %v532, 0
        %vm687 = vcmp.lt.s32.totalorder %v539, 0
        %vm688 = vcmp.lt.s32.totalorder %v546, 0
        %vm689 = vcmp.lt.s32.totalorder %v553, 0
        %vm690 = vcmp.lt.s32.totalorder %v560, 0
        %vm691 = vcmp.lt.s32.totalorder %v567, 0
        %vm692 = vcmp.lt.s32.totalorder %v574, 0
        %vm693 = vcmp.lt.s32.totalorder %v581, 0
        %vm694 = vcmp.lt.s32.totalorder %v588, 0
        %vm695 = vcmp.lt.s32.totalorder %v595, 0
        %vm696 = vcmp.lt.s32.totalorder %v602, 0
        %vm697 = vcmp.lt.s32.totalorder %v609, 0
        %vm698 = vcmp.lt.s32.totalorder %v616, 0
        %vm699 = vcmp.lt.s32.totalorder %v623, 0
        %vm700 = vcmp.lt.s32.totalorder %v630, 0
        %vm701 = vcmp.lt.s32.totalorder %v637, 0
        %vm702 = vmand %vm670, %vm638
        %vm703 = vmand %vm671, %vm639
        %vm704 = vmand %vm672, %vm640
        %vm705 = vmand %vm673, %vm641
        %vm706 = vmand %vm674, %vm642
        %vm707 = vmand %vm675, %vm643
        %vm708 = vmand %vm676, %vm644
        %vm709 = vmand %vm677, %vm645
        %vm710 = vmand %vm678, %vm646
        %vm711 = vmand %vm679, %vm647
        %vm712 = vmand %vm680, %vm648
        %vm713 = vmand %vm681, %vm649
        %vm714 = vmand %vm682, %vm650
        %vm715 = vmand %vm683, %vm651
        %vm716 = vmand %vm684, %vm652
        %vm717 = vmand %vm685, %vm653
        %vm718 = vmand %vm686, %vm654
        %vm719 = vmand %vm687, %vm655
        %vm720 = vmand %vm688, %vm656
        %vm721 = vmand %vm689, %vm657
        %vm722 = vmand %vm690, %vm658
        %vm723 = vmand %vm691, %vm659
        %vm724 = vmand %vm692, %vm660
        %vm725 = vmand %vm693, %vm661
        %vm726 = vmand %vm694, %vm662
        %vm727 = vmand %vm695, %vm663
        %vm728 = vmand %vm696, %vm664
        %vm729 = vmand %vm697, %vm665
        %vm730 = vmand %vm698, %vm666
        %vm731 = vmand %vm699, %vm667
        %vm732 = vmand %vm700, %vm668
        %vm733 = vmand %vm701, %vm669
        %v734 = vadd.s32 %v420, 64
        %v735 = vadd.s32 %v427, 64
        %v736 = vadd.s32 %v434, 64
        %v737 = vadd.s32 %v441, 64
        %v738 = vadd.s32 %v448, 64
        %v739 = vadd.s32 %v455, 64
        %v740 = vadd.s32 %v462, 64
        %v741 = vadd.s32 %v469, 64
        %v742 = vadd.s32 %v476, 64
        %v743 = vadd.s32 %v483, 64
        %v744 = vadd.s32 %v490, 64
        %v745 = vadd.s32 %v497, 64
        %v746 = vadd.s32 %v504, 64
        %v747 = vadd.s32 %v511, 64
        %v748 = vadd.s32 %v518, 64
        %v749 = vadd.s32 %v525, 64
        %v750 = vadd.s32 %v532, 64
        %v751 = vadd.s32 %v539, 64
        %v752 = vadd.s32 %v546, 64
        %v753 = vadd.s32 %v553, 64
        %v754 = vadd.s32 %v560, 64
        %v755 = vadd.s32 %v567, 64
        %v756 = vadd.s32 %v574, 64
        %v757 = vadd.s32 %v581, 64
        %v758 = vadd.s32 %v588, 64
        %v759 = vadd.s32 %v595, 64
        %v760 = vadd.s32 %v602, 64
        %v761 = vadd.s32 %v609, 64
        %v762 = vadd.s32 %v616, 64
        %v763 = vadd.s32 %v623, 64
        %v764 = vadd.s32 %v630, 64
        %v765 = vadd.s32 %v637, 64
        %v766 = vsel %vm702, %v734, %v420
        %v767 = vsel %vm703, %v735, %v427
        %v768 = vsel %vm704, %v736, %v434
        %v769 = vsel %vm705, %v737, %v441
        %v770 = vsel %vm706, %v738, %v448
        %v771 = vsel %vm707, %v739, %v455
        %v772 = vsel %vm708, %v740, %v462
        %v773 = vsel %vm709, %v741, %v469
        %v774 = vsel %vm710, %v742, %v476
        %v775 = vsel %vm711, %v743, %v483
        %v776 = vsel %vm712, %v744, %v490
        %v777 = vsel %vm713, %v745, %v497
        %v778 = vsel %vm714, %v746, %v504
        %v779 = vsel %vm715, %v747, %v511
        %v780 = vsel %vm716, %v748, %v518
        %v781 = vsel %vm717, %v749, %v525
        %v782 = vsel %vm718, %v750, %v532
        %v783 = vsel %vm719, %v751, %v539
        %v784 = vsel %vm720, %v752, %v546
        %v785 = vsel %vm721, %v753, %v553
        %v786 = vsel %vm722, %v754, %v560
        %v787 = vsel %vm723, %v755, %v567
        %v788 = vsel %vm724, %v756, %v574
        %v789 = vsel %vm725, %v757, %v581
        %v790 = vsel %vm726, %v758, %v588
        %v791 = vsel %vm727, %v759, %v595
        %v792 = vsel %vm728, %v760, %v602
        %v793 = vsel %vm729, %v761, %v609
        %v794 = vsel %vm730, %v762, %v616
        %v795 = vsel %vm731, %v763, %v623
        %v796 = vsel %vm732, %v764, %v630
        %v797 = vsel %vm733, %v765, %v637
        %v798 = vrot.slane %v348, 6
        %v799 = vrot.slane %v349, 6
        %v800 = vrot.slane %v350, 6
        %v801 = vrot.slane %v351, 6
        %v802 = vrot.slane %v352, 6
        %v803 = vrot.slane %v353, 6
        %v804 = vrot.slane %v354, 6
        %v805 = vrot.slane %v355, 6
        %v806 = vrot.slane %v356, 6
        %v807 = vrot.slane %v357, 6
        %v808 = vrot.slane %v358, 6
        %v809 = vrot.slane %v359, 6
        %v810 = vrot.slane %v360, 6
        %v811 = vrot.slane %v361, 6
        %v812 = vrot.slane %v362, 6
        %v813 = vrot.slane %v363, 6
        %v814 = vrot.slane %v364, 6
        %v815 = vrot.slane %v365, 6
        %v816 = vrot.slane %v366, 6
        %v817 = vrot.slane %v367, 6
        %v818 = vrot.slane %v368, 6
        %v819 = vrot.slane %v369, 6
        %v820 = vrot.slane %v370, 6
        %v821 = vrot.slane %v371, 6
        %v822 = vrot.slane %v372, 6
        %v823 = vrot.slane %v373, 6
        %v824 = vrot.slane %v374, 6
        %v825 = vrot.slane %v375, 6
        %v826 = vrot.slane %v376, 6
        %v827 = vrot.slane %v377, 6
        %v828 = vrot.slane %v378, 6
        %v829 = vrot.slane %v379, 6
        %vm830 = vcmp.lt.s32.totalorder %v382, 2
        %v831 = vsel %vm830, %v828, %v829
        %v832 = vsel %vm830, %v827, %v828
        %v833 = vsel %vm830, %v826, %v827
        %v834 = vsel %vm830, %v825, %v826
        %v835 = vsel %vm830, %v824, %v825
        %v836 = vsel %vm830, %v823, %v824
        %v837 = vsel %vm830, %v822, %v823
        %v838 = vsel %vm830, %v821, %v822
        %v839 = vsel %vm830, %v820, %v821
        %v840 = vsel %vm830, %v819, %v820
        %v841 = vsel %vm830, %v818, %v819
        %v842 = vsel %vm830, %v817, %v818
        %v843 = vsel %vm830, %v816, %v817
        %v844 = vsel %vm830, %v815, %v816
        %v845 = vsel %vm830, %v814, %v815
        %v846 = vsel %vm830, %v813, %v814
        %v847 = vsel %vm830, %v812, %v813
        %v848 = vsel %vm830, %v811, %v812
        %v849 = vsel %vm830, %v810, %v811
        %v850 = vsel %vm830, %v809, %v810
        %v851 = vsel %vm830, %v808, %v809
        %v852 = vsel %vm830, %v807, %v808
        %v853 = vsel %vm830, %v806, %v807
        %v854 = vsel %vm830, %v805, %v806
        %v855 = vsel %vm830, %v804, %v805
        %v856 = vsel %vm830, %v803, %v804
        %v857 = vsel %vm830, %v802, %v803
        %v858 = vsel %vm830, %v801, %v802
        %v859 = vsel %vm830, %v800, %v801
        %v860 = vsel %vm830, %v799, %v800
        %v861 = vsel %vm830, %v798, %v799
        %v862 = vsel %vm830, %v829, %v798
        %v863 = vadd.s32 %v766, 4294967294
        %v864 = vadd.s32 %v767, 4294967294
        %v865 = vadd.s32 %v768, 4294967294
        %v866 = vadd.s32 %v769, 4294967294
        %v867 = vadd.s32 %v770, 4294967294
        %v868 = vadd.s32 %v771, 4294967294
        %v869 = vadd.s32 %v772, 4294967294
        %v870 = vadd.s32 %v773, 4294967294
        %v871 = vadd.s32 %v774, 4294967294
        %v872 = vadd.s32 %v775, 4294967294
        %v873 = vadd.s32 %v776, 4294967294
        %v874 = vadd.s32 %v777, 4294967294
        %v875 = vadd.s32 %v778, 4294967294
        %v876 = vadd.s32 %v779, 4294967294
        %v877 = vadd.s32 %v780, 4294967294
        %v878 = vadd.s32 %v781, 4294967294
        %v879 = vadd.s32 %v782, 4294967294
        %v880 = vadd.s32 %v783, 4294967294
        %v881 = vadd.s32 %v784, 4294967294
        %v882 = vadd.s32 %v785, 4294967294
        %v883 = vadd.s32 %v786, 4294967294
        %v884 = vadd.s32 %v787, 4294967294
        %v885 = vadd.s32 %v788, 4294967294
        %v886 = vadd.s32 %v789, 4294967294
        %v887 = vadd.s32 %v790, 4294967294
        %v888 = vadd.s32 %v791, 4294967294
        %v889 = vadd.s32 %v792, 4294967294
        %v890 = vadd.s32 %v793, 4294967294
        %v891 = vadd.s32 %v794, 4294967294
        %v892 = vadd.s32 %v795, 4294967294
        %v893 = vadd.s32 %v796, 4294967294
        %v894 = vadd.s32 %v797, 4294967294
        %vm895 = vcmp.ge.s32.totalorder %v863, 0
        %vm896 = vcmp.ge.s32.totalorder %v864, 0
        %vm897 = vcmp.ge.s32.totalorder %v865, 0
        %vm898 = vcmp.ge.s32.totalorder %v866, 0
        %vm899 = vcmp.ge.s32.totalorder %v867, 0
        %vm900 = vcmp.ge.s32.totalorder %v868, 0
        %vm901 = vcmp.ge.s32.totalorder %v869, 0
        %vm902 = vcmp.ge.s32.totalorder %v870, 0
        %vm903 = vcmp.ge.s32.totalorder %v871, 0
        %vm904 = vcmp.ge.s32.totalorder %v872, 0
        %vm905 = vcmp.ge.s32.totalorder %v873, 0
        %vm906 = vcmp.ge.s32.totalorder %v874, 0
        %vm907 = vcmp.ge.s32.totalorder %v875, 0
        %vm908 = vcmp.ge.s32.totalorder %v876, 0
        %vm909 = vcmp.ge.s32.totalorder %v877, 0
        %vm910 = vcmp.ge.s32.totalorder %v878, 0
        %vm911 = vcmp.ge.s32.totalorder %v879, 0
        %vm912 = vcmp.ge.s32.totalorder %v880, 0
        %vm913 = vcmp.ge.s32.totalorder %v881, 0
        %vm914 = vcmp.ge.s32.totalorder %v882, 0
        %vm915 = vcmp.ge.s32.totalorder %v883, 0
        %vm916 = vcmp.ge.s32.totalorder %v884, 0
        %vm917 = vcmp.ge.s32.totalorder %v885, 0
        %vm918 = vcmp.ge.s32.totalorder %v886, 0
        %vm919 = vcmp.ge.s32.totalorder %v887, 0
        %vm920 = vcmp.ge.s32.totalorder %v888, 0
        %vm921 = vcmp.ge.s32.totalorder %v889, 0
        %vm922 = vcmp.ge.s32.totalorder %v890, 0
        %vm923 = vcmp.ge.s32.totalorder %v891, 0
        %vm924 = vcmp.ge.s32.totalorder %v892, 0
        %vm925 = vcmp.ge.s32.totalorder %v893, 0
        %vm926 = vcmp.ge.s32.totalorder %v894, 0
        %vm927 = vcmp.lt.s32.totalorder %v863, 64
        %vm928 = vcmp.lt.s32.totalorder %v864, 64
        %vm929 = vcmp.lt.s32.totalorder %v865, 64
        %vm930 = vcmp.lt.s32.totalorder %v866, 64
        %vm931 = vcmp.lt.s32.totalorder %v867, 64
        %vm932 = vcmp.lt.s32.totalorder %v868, 64
        %vm933 = vcmp.lt.s32.totalorder %v869, 64
        %vm934 = vcmp.lt.s32.totalorder %v870, 64
        %vm935 = vcmp.lt.s32.totalorder %v871, 64
        %vm936 = vcmp.lt.s32.totalorder %v872, 64
        %vm937 = vcmp.lt.s32.totalorder %v873, 64
        %vm938 = vcmp.lt.s32.totalorder %v874, 64
        %vm939 = vcmp.lt.s32.totalorder %v875, 64
        %vm940 = vcmp.lt.s32.totalorder %v876, 64
        %vm941 = vcmp.lt.s32.totalorder %v877, 64
        %vm942 = vcmp.lt.s32.totalorder %v878, 64
        %vm943 = vcmp.lt.s32.totalorder %v879, 64
        %vm944 = vcmp.lt.s32.totalorder %v880, 64
        %vm945 = vcmp.lt.s32.totalorder %v881, 64
        %vm946 = vcmp.lt.s32.totalorder %v882, 64
        %vm947 = vcmp.lt.s32.totalorder %v883, 64
        %vm948 = vcmp.lt.s32.totalorder %v884, 64
        %vm949 = vcmp.lt.s32.totalorder %v885, 64
        %vm950 = vcmp.lt.s32.totalorder %v886, 64
        %vm951 = vcmp.lt.s32.totalorder %v887, 64
        %vm952 = vcmp.lt.s32.totalorder %v888, 64
        %vm953 = vcmp.lt.s32.totalorder %v889, 64
        %vm954 = vcmp.lt.s32.totalorder %v890, 64
        %vm955 = vcmp.lt.s32.totalorder %v891, 64
        %vm956 = vcmp.lt.s32.totalorder %v892, 64
        %vm957 = vcmp.lt.s32.totalorder %v893, 64
        %vm958 = vcmp.lt.s32.totalorder %v894, 64
        %vm959 = vmand %vm895, %vm927
        %vm960 = vmand %vm896, %vm928
        %vm961 = vmand %vm897, %vm929
        %vm962 = vmand %vm898, %vm930
        %vm963 = vmand %vm899, %vm931
        %vm964 = vmand %vm900, %vm932
        %vm965 = vmand %vm901, %vm933
        %vm966 = vmand %vm902, %vm934
        %vm967 = vmand %vm903, %vm935
        %vm968 = vmand %vm904, %vm936
        %vm969 = vmand %vm905, %vm937
        %vm970 = vmand %vm906, %vm938
        %vm971 = vmand %vm907, %vm939
        %vm972 = vmand %vm908, %vm940
        %vm973 = vmand %vm909, %vm941
        %vm974 = vmand %vm910, %vm942
        %vm975 = vmand %vm911, %vm943
        %vm976 = vmand %vm912, %vm944
        %vm977 = vmand %vm913, %vm945
        %vm978 = vmand %vm914, %vm946
        %vm979 = vmand %vm915, %vm947
        %vm980 = vmand %vm916, %vm948
        %vm981 = vmand %vm917, %vm949
        %vm982 = vmand %vm918, %vm950
        %vm983 = vmand %vm919, %vm951
        %vm984 = vmand %vm920, %vm952
        %vm985 = vmand %vm921, %vm953
        %vm986 = vmand %vm922, %vm954
        %vm987 = vmand %vm923, %vm955
        %vm988 = vmand %vm924, %vm956
        %vm989 = vmand %vm925, %vm957
        %vm990 = vmand %vm926, %vm958
        %v991 = vsel %vm959, 1, 0
        %v992 = vsel %vm960, 1, 0
        %v993 = vsel %vm961, 1, 0
        %v994 = vsel %vm962, 1, 0
        %v995 = vsel %vm963, 1, 0
        %v996 = vsel %vm964, 1, 0
        %v997 = vsel %vm965, 1, 0
        %v998 = vsel %vm966, 1, 0
        %v999 = vsel %vm967, 1, 0
        %v1000 = vsel %vm968, 1, 0
        %v1001 = vsel %vm969, 1, 0
        %v1002 = vsel %vm970, 1, 0
        %v1003 = vsel %vm971, 1, 0
        %v1004 = vsel %vm972, 1, 0
        %v1005 = vsel %vm973, 1, 0
        %v1006 = vsel %vm974, 1, 0
        %v1007 = vsel %vm975, 1, 0
        %v1008 = vsel %vm976, 1, 0
        %v1009 = vsel %vm977, 1, 0
        %v1010 = vsel %vm978, 1, 0
        %v1011 = vsel %vm979, 1, 0
        %v1012 = vsel %vm980, 1, 0
        %v1013 = vsel %vm981, 1, 0
        %v1014 = vsel %vm982, 1, 0
        %v1015 = vsel %vm983, 1, 0
        %v1016 = vsel %vm984, 1, 0
        %v1017 = vsel %vm985, 1, 0
        %v1018 = vsel %vm986, 1, 0
        %v1019 = vsel %vm987, 1, 0
        %v1020 = vsel %vm988, 1, 0
        %v1021 = vsel %vm989, 1, 0
        %v1022 = vsel %vm990, 1, 0
        %vm1023 = vcmp.eq.s32.totalorder %v991, 1
        %vm1024 = vcmp.eq.s32.totalorder %v992, 1
        %vm1025 = vcmp.eq.s32.totalorder %v993, 1
        %vm1026 = vcmp.eq.s32.totalorder %v994, 1
        %vm1027 = vcmp.eq.s32.totalorder %v995, 1
        %vm1028 = vcmp.eq.s32.totalorder %v996, 1
        %vm1029 = vcmp.eq.s32.totalorder %v997, 1
        %vm1030 = vcmp.eq.s32.totalorder %v998, 1
        %vm1031 = vcmp.eq.s32.totalorder %v999, 1
        %vm1032 = vcmp.eq.s32.totalorder %v1000, 1
        %vm1033 = vcmp.eq.s32.totalorder %v1001, 1
        %vm1034 = vcmp.eq.s32.totalorder %v1002, 1
        %vm1035 = vcmp.eq.s32.totalorder %v1003, 1
        %vm1036 = vcmp.eq.s32.totalorder %v1004, 1
        %vm1037 = vcmp.eq.s32.totalorder %v1005, 1
        %vm1038 = vcmp.eq.s32.totalorder %v1006, 1
        %vm1039 = vcmp.eq.s32.totalorder %v1007, 1
        %vm1040 = vcmp.eq.s32.totalorder %v1008, 1
        %vm1041 = vcmp.eq.s32.totalorder %v1009, 1
        %vm1042 = vcmp.eq.s32.totalorder %v1010, 1
        %vm1043 = vcmp.eq.s32.totalorder %v1011, 1
        %vm1044 = vcmp.eq.s32.totalorder %v1012, 1
        %vm1045 = vcmp.eq.s32.totalorder %v1013, 1
        %vm1046 = vcmp.eq.s32.totalorder %v1014, 1
        %vm1047 = vcmp.eq.s32.totalorder %v1015, 1
        %vm1048 = vcmp.eq.s32.totalorder %v1016, 1
        %vm1049 = vcmp.eq.s32.totalorder %v1017, 1
        %vm1050 = vcmp.eq.s32.totalorder %v1018, 1
        %vm1051 = vcmp.eq.s32.totalorder %v1019, 1
        %vm1052 = vcmp.eq.s32.totalorder %v1020, 1
        %vm1053 = vcmp.eq.s32.totalorder %v1021, 1
        %vm1054 = vcmp.eq.s32.totalorder %v1022, 1
        %v1055 = vsel %vm1023, %v862, 0.0
        %v1056 = vsel %vm1024, %v861, 0.0
        %v1057 = vsel %vm1025, %v860, 0.0
        %v1058 = vsel %vm1026, %v859, 0.0
        %v1059 = vsel %vm1027, %v858, 0.0
        %v1060 = vsel %vm1028, %v857, 0.0
        %v1061 = vsel %vm1029, %v856, 0.0
        %v1062 = vsel %vm1030, %v855, 0.0
        %v1063 = vsel %vm1031, %v854, 0.0
        %v1064 = vsel %vm1032, %v853, 0.0
        %v1065 = vsel %vm1033, %v852, 0.0
        %v1066 = vsel %vm1034, %v851, 0.0
        %v1067 = vsel %vm1035, %v850, 0.0
        %v1068 = vsel %vm1036, %v849, 0.0
        %v1069 = vsel %vm1037, %v848, 0.0
        %v1070 = vsel %vm1038, %v847, 0.0
        %v1071 = vsel %vm1039, %v846, 0.0
        %v1072 = vsel %vm1040, %v845, 0.0
        %v1073 = vsel %vm1041, %v844, 0.0
        %v1074 = vsel %vm1042, %v843, 0.0
        %v1075 = vsel %vm1043, %v842, 0.0
        %v1076 = vsel %vm1044, %v841, 0.0
        %v1077 = vsel %vm1045, %v840, 0.0
        %v1078 = vsel %vm1046, %v839, 0.0
        %v1079 = vsel %vm1047, %v838, 0.0
        %v1080 = vsel %vm1048, %v837, 0.0
        %v1081 = vsel %vm1049, %v836, 0.0
        %v1082 = vsel %vm1050, %v835, 0.0
        %v1083 = vsel %vm1051, %v834, 0.0
        %v1084 = vsel %vm1052, %v833, 0.0
        %v1085 = vsel %vm1053, %v832, 0.0
        %v1086 = vsel %vm1054, %v831, 0.0
        %v1087 = vlaneseq
        %v1088 = vshrl.u32 %v1087, 7
        %v1089 = vsub.s32 0, %v1088
        %v1090 = vrot.slane %v380, %v1089
        %v1091 = vmul.f32 %v1055, %v1090
        %v1092 = vmul.f32 %v1056, %v1090
        %v1093 = vmul.f32 %v1057, %v1090
        %v1094 = vmul.f32 %v1058, %v1090
        %v1095 = vmul.f32 %v1059, %v1090
        %v1096 = vmul.f32 %v1060, %v1090
        %v1097 = vmul.f32 %v1061, %v1090
        %v1098 = vmul.f32 %v1062, %v1090
        %v1099 = vmul.f32 %v1063, %v1090
        %v1100 = vmul.f32 %v1064, %v1090
        %v1101 = vmul.f32 %v1065, %v1090
        %v1102 = vmul.f32 %v1066, %v1090
        %v1103 = vmul.f32 %v1067, %v1090
        %v1104 = vmul.f32 %v1068, %v1090
        %v1105 = vmul.f32 %v1069, %v1090
        %v1106 = vmul.f32 %v1070, %v1090
        %v1107 = vmul.f32 %v1071, %v1090
        %v1108 = vmul.f32 %v1072, %v1090
        %v1109 = vmul.f32 %v1073, %v1090
        %v1110 = vmul.f32 %v1074, %v1090
        %v1111 = vmul.f32 %v1075, %v1090
        %v1112 = vmul.f32 %v1076, %v1090
        %v1113 = vmul.f32 %v1077, %v1090
        %v1114 = vmul.f32 %v1078, %v1090
        %v1115 = vmul.f32 %v1079, %v1090
        %v1116 = vmul.f32 %v1080, %v1090
        %v1117 = vmul.f32 %v1081, %v1090
        %v1118 = vmul.f32 %v1082, %v1090
        %v1119 = vmul.f32 %v1083, %v1090
        %v1120 = vmul.f32 %v1084, %v1090
        %v1121 = vmul.f32 %v1085, %v1090
        %v1122 = vmul.f32 %v1086, %v1090
        %v1123 = vrot.slane %v348, 7
        %v1124 = vrot.slane %v349, 7
        %v1125 = vrot.slane %v350, 7
        %v1126 = vrot.slane %v351, 7
        %v1127 = vrot.slane %v352, 7
        %v1128 = vrot.slane %v353, 7
        %v1129 = vrot.slane %v354, 7
        %v1130 = vrot.slane %v355, 7
        %v1131 = vrot.slane %v356, 7
        %v1132 = vrot.slane %v357, 7
        %v1133 = vrot.slane %v358, 7
        %v1134 = vrot.slane %v359, 7
        %v1135 = vrot.slane %v360, 7
        %v1136 = vrot.slane %v361, 7
        %v1137 = vrot.slane %v362, 7
        %v1138 = vrot.slane %v363, 7
        %v1139 = vrot.slane %v364, 7
        %v1140 = vrot.slane %v365, 7
        %v1141 = vrot.slane %v366, 7
        %v1142 = vrot.slane %v367, 7
        %v1143 = vrot.slane %v368, 7
        %v1144 = vrot.slane %v369, 7
        %v1145 = vrot.slane %v370, 7
        %v1146 = vrot.slane %v371, 7
        %v1147 = vrot.slane %v372, 7
        %v1148 = vrot.slane %v373, 7
        %v1149 = vrot.slane %v374, 7
        %v1150 = vrot.slane %v375, 7
        %v1151 = vrot.slane %v376, 7
        %v1152 = vrot.slane %v377, 7
        %v1153 = vrot.slane %v378, 7
        %v1154 = vrot.slane %v379, 7
        %vm1155 = vcmp.lt.s32.totalorder %v382, 1
        %v1156 = vsel %vm1155, %v1153, %v1154
        %v1157 = vsel %vm1155, %v1152, %v1153
        %v1158 = vsel %vm1155, %v1151, %v1152
        %v1159 = vsel %vm1155, %v1150, %v1151
        %v1160 = vsel %vm1155, %v1149, %v1150
        %v1161 = vsel %vm1155, %v1148, %v1149
        %v1162 = vsel %vm1155, %v1147, %v1148
        %v1163 = vsel %vm1155, %v1146, %v1147
        %v1164 = vsel %vm1155, %v1145, %v1146
        %v1165 = vsel %vm1155, %v1144, %v1145
        %v1166 = vsel %vm1155, %v1143, %v1144
        %v1167 = vsel %vm1155, %v1142, %v1143
        %v1168 = vsel %vm1155, %v1141, %v1142
        %v1169 = vsel %vm1155, %v1140, %v1141
        %v1170 = vsel %vm1155, %v1139, %v1140
        %v1171 = vsel %vm1155, %v1138, %v1139
        %v1172 = vsel %vm1155, %v1137, %v1138
        %v1173 = vsel %vm1155, %v1136, %v1137
        %v1174 = vsel %vm1155, %v1135, %v1136
        %v1175 = vsel %vm1155, %v1134, %v1135
        %v1176 = vsel %vm1155, %v1133, %v1134
        %v1177 = vsel %vm1155, %v1132, %v1133
        %v1178 = vsel %vm1155, %v1131, %v1132
        %v1179 = vsel %vm1155, %v1130, %v1131
        %v1180 = vsel %vm1155, %v1129, %v1130
        %v1181 = vsel %vm1155, %v1128, %v1129
        %v1182 = vsel %vm1155, %v1127, %v1128
        %v1183 = vsel %vm1155, %v1126, %v1127
        %v1184 = vsel %vm1155, %v1125, %v1126
        %v1185 = vsel %vm1155, %v1124, %v1125
        %v1186 = vsel %vm1155, %v1123, %v1124
        %v1187 = vsel %vm1155, %v1154, %v1123
        %v1188 = vadd.s32 %v766, 4294967295
        %v1189 = vadd.s32 %v767, 4294967295
        %v1190 = vadd.s32 %v768, 4294967295
        %v1191 = vadd.s32 %v769, 4294967295
        %v1192 = vadd.s32 %v770, 4294967295
        %v1193 = vadd.s32 %v771, 4294967295
        %v1194 = vadd.s32 %v772, 4294967295
        %v1195 = vadd.s32 %v773, 4294967295
        %v1196 = vadd.s32 %v774, 4294967295
        %v1197 = vadd.s32 %v775, 4294967295
        %v1198 = vadd.s32 %v776, 4294967295
        %v1199 = vadd.s32 %v777, 4294967295
        %v1200 = vadd.s32 %v778, 4294967295
        %v1201 = vadd.s32 %v779, 4294967295
        %v1202 = vadd.s32 %v780, 4294967295
        %v1203 = vadd.s32 %v781, 4294967295
        %v1204 = vadd.s32 %v782, 4294967295
        %v1205 = vadd.s32 %v783, 4294967295
        %v1206 = vadd.s32 %v784, 4294967295
        %v1207 = vadd.s32 %v785, 4294967295
        %v1208 = vadd.s32 %v786, 4294967295
        %v1209 = vadd.s32 %v787, 4294967295
        %v1210 = vadd.s32 %v788, 4294967295
        %v1211 = vadd.s32 %v789, 4294967295
        %v1212 = vadd.s32 %v790, 4294967295
        %v1213 = vadd.s32 %v791, 4294967295
        %v1214 = vadd.s32 %v792, 4294967295
        %v1215 = vadd.s32 %v793, 4294967295
        %v1216 = vadd.s32 %v794, 4294967295
        %v1217 = vadd.s32 %v795, 4294967295
        %v1218 = vadd.s32 %v796, 4294967295
        %v1219 = vadd.s32 %v797, 4294967295
        %vm1220 = vcmp.ge.s32.totalorder %v1188, 0
        %vm1221 = vcmp.ge.s32.totalorder %v1189, 0
        %vm1222 = vcmp.ge.s32.totalorder %v1190, 0
        %vm1223 = vcmp.ge.s32.totalorder %v1191, 0
        %vm1224 = vcmp.ge.s32.totalorder %v1192, 0
        %vm1225 = vcmp.ge.s32.totalorder %v1193, 0
        %vm1226 = vcmp.ge.s32.totalorder %v1194, 0
        %vm1227 = vcmp.ge.s32.totalorder %v1195, 0
        %vm1228 = vcmp.ge.s32.totalorder %v1196, 0
        %vm1229 = vcmp.ge.s32.totalorder %v1197, 0
        %vm1230 = vcmp.ge.s32.totalorder %v1198, 0
        %vm1231 = vcmp.ge.s32.totalorder %v1199, 0
        %vm1232 = vcmp.ge.s32.totalorder %v1200, 0
        %vm1233 = vcmp.ge.s32.totalorder %v1201, 0
        %vm1234 = vcmp.ge.s32.totalorder %v1202, 0
        %vm1235 = vcmp.ge.s32.totalorder %v1203, 0
        %vm1236 = vcmp.ge.s32.totalorder %v1204, 0
        %vm1237 = vcmp.ge.s32.totalorder %v1205, 0
        %vm1238 = vcmp.ge.s32.totalorder %v1206, 0
        %vm1239 = vcmp.ge.s32.totalorder %v1207, 0
        %vm1240 = vcmp.ge.s32.totalorder %v1208, 0
        %vm1241 = vcmp.ge.s32.totalorder %v1209, 0
        %vm1242 = vcmp.ge.s32.totalorder %v1210, 0
        %vm1243 = vcmp.ge.s32.totalorder %v1211, 0
        %vm1244 = vcmp.ge.s32.totalorder %v1212, 0
        %vm1245 = vcmp.ge.s32.totalorder %v1213, 0
        %vm1246 = vcmp.ge.s32.totalorder %v1214, 0
        %vm1247 = vcmp.ge.s32.totalorder %v1215, 0
        %vm1248 = vcmp.ge.s32.totalorder %v1216, 0
        %vm1249 = vcmp.ge.s32.totalorder %v1217, 0
        %vm1250 = vcmp.ge.s32.totalorder %v1218, 0
        %vm1251 = vcmp.ge.s32.totalorder %v1219, 0
        %vm1252 = vcmp.lt.s32.totalorder %v1188, 64
        %vm1253 = vcmp.lt.s32.totalorder %v1189, 64
        %vm1254 = vcmp.lt.s32.totalorder %v1190, 64
        %vm1255 = vcmp.lt.s32.totalorder %v1191, 64
        %vm1256 = vcmp.lt.s32.totalorder %v1192, 64
        %vm1257 = vcmp.lt.s32.totalorder %v1193, 64
        %vm1258 = vcmp.lt.s32.totalorder %v1194, 64
        %vm1259 = vcmp.lt.s32.totalorder %v1195, 64
        %vm1260 = vcmp.lt.s32.totalorder %v1196, 64
        %vm1261 = vcmp.lt.s32.totalorder %v1197, 64
        %vm1262 = vcmp.lt.s32.totalorder %v1198, 64
        %vm1263 = vcmp.lt.s32.totalorder %v1199, 64
        %vm1264 = vcmp.lt.s32.totalorder %v1200, 64
        %vm1265 = vcmp.lt.s32.totalorder %v1201, 64
        %vm1266 = vcmp.lt.s32.totalorder %v1202, 64
        %vm1267 = vcmp.lt.s32.totalorder %v1203, 64
        %vm1268 = vcmp.lt.s32.totalorder %v1204, 64
        %vm1269 = vcmp.lt.s32.totalorder %v1205, 64
        %vm1270 = vcmp.lt.s32.totalorder %v1206, 64
        %vm1271 = vcmp.lt.s32.totalorder %v1207, 64
        %vm1272 = vcmp.lt.s32.totalorder %v1208, 64
        %vm1273 = vcmp.lt.s32.totalorder %v1209, 64
        %vm1274 = vcmp.lt.s32.totalorder %v1210, 64
        %vm1275 = vcmp.lt.s32.totalorder %v1211, 64
        %vm1276 = vcmp.lt.s32.totalorder %v1212, 64
        %vm1277 = vcmp.lt.s32.totalorder %v1213, 64
        %vm1278 = vcmp.lt.s32.totalorder %v1214, 64
        %vm1279 = vcmp.lt.s32.totalorder %v1215, 64
        %vm1280 = vcmp.lt.s32.totalorder %v1216, 64
        %vm1281 = vcmp.lt.s32.totalorder %v1217, 64
        %vm1282 = vcmp.lt.s32.totalorder %v1218, 64
        %vm1283 = vcmp.lt.s32.totalorder %v1219, 64
        %vm1284 = vmand %vm1220, %vm1252
        %vm1285 = vmand %vm1221, %vm1253
        %vm1286 = vmand %vm1222, %vm1254
        %vm1287 = vmand %vm1223, %vm1255
        %vm1288 = vmand %vm1224, %vm1256
        %vm1289 = vmand %vm1225, %vm1257
        %vm1290 = vmand %vm1226, %vm1258
        %vm1291 = vmand %vm1227, %vm1259
        %vm1292 = vmand %vm1228, %vm1260
        %vm1293 = vmand %vm1229, %vm1261
        %vm1294 = vmand %vm1230, %vm1262
        %vm1295 = vmand %vm1231, %vm1263
        %vm1296 = vmand %vm1232, %vm1264
        %vm1297 = vmand %vm1233, %vm1265
        %vm1298 = vmand %vm1234, %vm1266
        %vm1299 = vmand %vm1235, %vm1267
        %vm1300 = vmand %vm1236, %vm1268
        %vm1301 = vmand %vm1237, %vm1269
        %vm1302 = vmand %vm1238, %vm1270
        %vm1303 = vmand %vm1239, %vm1271
        %vm1304 = vmand %vm1240, %vm1272
        %vm1305 = vmand %vm1241, %vm1273
        %vm1306 = vmand %vm1242, %vm1274
        %vm1307 = vmand %vm1243, %vm1275
        %vm1308 = vmand %vm1244, %vm1276
        %vm1309 = vmand %vm1245, %vm1277
        %vm1310 = vmand %vm1246, %vm1278
        %vm1311 = vmand %vm1247, %vm1279
        %vm1312 = vmand %vm1248, %vm1280
        %vm1313 = vmand %vm1249, %vm1281
        %vm1314 = vmand %vm1250, %vm1282
        %vm1315 = vmand %vm1251, %vm1283
        %v1316 = vsel %vm1284, 1, 0
        %v1317 = vsel %vm1285, 1, 0
        %v1318 = vsel %vm1286, 1, 0
        %v1319 = vsel %vm1287, 1, 0
        %v1320 = vsel %vm1288, 1, 0
        %v1321 = vsel %vm1289, 1, 0
        %v1322 = vsel %vm1290, 1, 0
        %v1323 = vsel %vm1291, 1, 0
        %v1324 = vsel %vm1292, 1, 0
        %v1325 = vsel %vm1293, 1, 0
        %v1326 = vsel %vm1294, 1, 0
        %v1327 = vsel %vm1295, 1, 0
        %v1328 = vsel %vm1296, 1, 0
        %v1329 = vsel %vm1297, 1, 0
        %v1330 = vsel %vm1298, 1, 0
        %v1331 = vsel %vm1299, 1, 0
        %v1332 = vsel %vm1300, 1, 0
        %v1333 = vsel %vm1301, 1, 0
        %v1334 = vsel %vm1302, 1, 0
        %v1335 = vsel %vm1303, 1, 0
        %v1336 = vsel %vm1304, 1, 0
        %v1337 = vsel %vm1305, 1, 0
        %v1338 = vsel %vm1306, 1, 0
        %v1339 = vsel %vm1307, 1, 0
        %v1340 = vsel %vm1308, 1, 0
        %v1341 = vsel %vm1309, 1, 0
        %v1342 = vsel %vm1310, 1, 0
        %v1343 = vsel %vm1311, 1, 0
        %v1344 = vsel %vm1312, 1, 0
        %v1345 = vsel %vm1313, 1, 0
        %v1346 = vsel %vm1314, 1, 0
        %v1347 = vsel %vm1315, 1, 0
        %vm1348 = vcmp.eq.s32.totalorder %v1316, 1
        %vm1349 = vcmp.eq.s32.totalorder %v1317, 1
        %vm1350 = vcmp.eq.s32.totalorder %v1318, 1
        %vm1351 = vcmp.eq.s32.totalorder %v1319, 1
        %vm1352 = vcmp.eq.s32.totalorder %v1320, 1
        %vm1353 = vcmp.eq.s32.totalorder %v1321, 1
        %vm1354 = vcmp.eq.s32.totalorder %v1322, 1
        %vm1355 = vcmp.eq.s32.totalorder %v1323, 1
        %vm1356 = vcmp.eq.s32.totalorder %v1324, 1
        %vm1357 = vcmp.eq.s32.totalorder %v1325, 1
        %vm1358 = vcmp.eq.s32.totalorder %v1326, 1
        %vm1359 = vcmp.eq.s32.totalorder %v1327, 1
        %vm1360 = vcmp.eq.s32.totalorder %v1328, 1
        %vm1361 = vcmp.eq.s32.totalorder %v1329, 1
        %vm1362 = vcmp.eq.s32.totalorder %v1330, 1
        %vm1363 = vcmp.eq.s32.totalorder %v1331, 1
        %vm1364 = vcmp.eq.s32.totalorder %v1332, 1
        %vm1365 = vcmp.eq.s32.totalorder %v1333, 1
        %vm1366 = vcmp.eq.s32.totalorder %v1334, 1
        %vm1367 = vcmp.eq.s32.totalorder %v1335, 1
        %vm1368 = vcmp.eq.s32.totalorder %v1336, 1
        %vm1369 = vcmp.eq.s32.totalorder %v1337, 1
        %vm1370 = vcmp.eq.s32.totalorder %v1338, 1
        %vm1371 = vcmp.eq.s32.totalorder %v1339, 1
        %vm1372 = vcmp.eq.s32.totalorder %v1340, 1
        %vm1373 = vcmp.eq.s32.totalorder %v1341, 1
        %vm1374 = vcmp.eq.s32.totalorder %v1342, 1
        %vm1375 = vcmp.eq.s32.totalorder %v1343, 1
        %vm1376 = vcmp.eq.s32.totalorder %v1344, 1
        %vm1377 = vcmp.eq.s32.totalorder %v1345, 1
        %vm1378 = vcmp.eq.s32.totalorder %v1346, 1
        %vm1379 = vcmp.eq.s32.totalorder %v1347, 1
        %v1380 = vsel %vm1348, %v1187, 0.0
        %v1381 = vsel %vm1349, %v1186, 0.0
        %v1382 = vsel %vm1350, %v1185, 0.0
        %v1383 = vsel %vm1351, %v1184, 0.0
        %v1384 = vsel %vm1352, %v1183, 0.0
        %v1385 = vsel %vm1353, %v1182, 0.0
        %v1386 = vsel %vm1354, %v1181, 0.0
        %v1387 = vsel %vm1355, %v1180, 0.0
        %v1388 = vsel %vm1356, %v1179, 0.0
        %v1389 = vsel %vm1357, %v1178, 0.0
        %v1390 = vsel %vm1358, %v1177, 0.0
        %v1391 = vsel %vm1359, %v1176, 0.0
        %v1392 = vsel %vm1360, %v1175, 0.0
        %v1393 = vsel %vm1361, %v1174, 0.0
        %v1394 = vsel %vm1362, %v1173, 0.0
        %v1395 = vsel %vm1363, %v1172, 0.0
        %v1396 = vsel %vm1364, %v1171, 0.0
        %v1397 = vsel %vm1365, %v1170, 0.0
        %v1398 = vsel %vm1366, %v1169, 0.0
        %v1399 = vsel %vm1367, %v1168, 0.0
        %v1400 = vsel %vm1368, %v1167, 0.0
        %v1401 = vsel %vm1369, %v1166, 0.0
        %v1402 = vsel %vm1370, %v1165, 0.0
        %v1403 = vsel %vm1371, %v1164, 0.0
        %v1404 = vsel %vm1372, %v1163, 0.0
        %v1405 = vsel %vm1373, %v1162, 0.0
        %v1406 = vsel %vm1374, %v1161, 0.0
        %v1407 = vsel %vm1375, %v1160, 0.0
        %v1408 = vsel %vm1376, %v1159, 0.0
        %v1409 = vsel %vm1377, %v1158, 0.0
        %v1410 = vsel %vm1378, %v1157, 0.0
        %v1411 = vsel %vm1379, %v1156, 0.0
        %v1412 = vlaneseq
        %v1413 = vshrl.u32 %v1412, 7
        %v1414 = vsub.s32 1, %v1413
        %v1415 = vrot.slane %v380, %v1414
        %v1416 = vmul.f32 %v1380, %v1415
        %v1417 = vmul.f32 %v1381, %v1415
        %v1418 = vmul.f32 %v1382, %v1415
        %v1419 = vmul.f32 %v1383, %v1415
        %v1420 = vmul.f32 %v1384, %v1415
        %v1421 = vmul.f32 %v1385, %v1415
        %v1422 = vmul.f32 %v1386, %v1415
        %v1423 = vmul.f32 %v1387, %v1415
        %v1424 = vmul.f32 %v1388, %v1415
        %v1425 = vmul.f32 %v1389, %v1415
        %v1426 = vmul.f32 %v1390, %v1415
        %v1427 = vmul.f32 %v1391, %v1415
        %v1428 = vmul.f32 %v1392, %v1415
        %v1429 = vmul.f32 %v1393, %v1415
        %v1430 = vmul.f32 %v1394, %v1415
        %v1431 = vmul.f32 %v1395, %v1415
        %v1432 = vmul.f32 %v1396, %v1415
        %v1433 = vmul.f32 %v1397, %v1415
        %v1434 = vmul.f32 %v1398, %v1415
        %v1435 = vmul.f32 %v1399, %v1415
        %v1436 = vmul.f32 %v1400, %v1415
        %v1437 = vmul.f32 %v1401, %v1415
        %v1438 = vmul.f32 %v1402, %v1415
        %v1439 = vmul.f32 %v1403, %v1415
        %v1440 = vmul.f32 %v1404, %v1415
        %v1441 = vmul.f32 %v1405, %v1415
        %v1442 = vmul.f32 %v1406, %v1415
        %v1443 = vmul.f32 %v1407, %v1415
        %v1444 = vmul.f32 %v1408, %v1415
        %v1445 = vmul.f32 %v1409, %v1415
        %v1446 = vmul.f32 %v1410, %v1415
        %v1447 = vmul.f32 %v1411, %v1415
        %v1448 = vadd.f32 %v1091, %v1416
        %v1449 = vadd.f32 %v1092, %v1417
        %v1450 = vadd.f32 %v1093, %v1418
        %v1451 = vadd.f32 %v1094, %v1419
        %v1452 = vadd.f32 %v1095, %v1420
        %v1453 = vadd.f32 %v1096, %v1421
        %v1454 = vadd.f32 %v1097, %v1422
        %v1455 = vadd.f32 %v1098, %v1423
        %v1456 = vadd.f32 %v1099, %v1424
        %v1457 = vadd.f32 %v1100, %v1425
        %v1458 = vadd.f32 %v1101, %v1426
        %v1459 = vadd.f32 %v1102, %v1427
        %v1460 = vadd.f32 %v1103, %v1428
        %v1461 = vadd.f32 %v1104, %v1429
        %v1462 = vadd.f32 %v1105, %v1430
        %v1463 = vadd.f32 %v1106, %v1431
        %v1464 = vadd.f32 %v1107, %v1432
        %v1465 = vadd.f32 %v1108, %v1433
        %v1466 = vadd.f32 %v1109, %v1434
        %v1467 = vadd.f32 %v1110, %v1435
        %v1468 = vadd.f32 %v1111, %v1436
        %v1469 = vadd.f32 %v1112, %v1437
        %v1470 = vadd.f32 %v1113, %v1438
        %v1471 = vadd.f32 %v1114, %v1439
        %v1472 = vadd.f32 %v1115, %v1440
        %v1473 = vadd.f32 %v1116, %v1441
        %v1474 = vadd.f32 %v1117, %v1442
        %v1475 = vadd.f32 %v1118, %v1443
        %v1476 = vadd.f32 %v1119, %v1444
        %v1477 = vadd.f32 %v1120, %v1445
        %v1478 = vadd.f32 %v1121, %v1446
        %v1479 = vadd.f32 %v1122, %v1447
        %v1480 = vlaneseq
        %v1481 = vshrl.u32 %v1480, 7
        %v1482 = vsub.s32 2, %v1481
        %v1483 = vrot.slane %v380, %v1482
        %v1484 = vmul.f32 %v348, %v1483
        %v1485 = vmul.f32 %v349, %v1483
        %v1486 = vmul.f32 %v350, %v1483
        %v1487 = vmul.f32 %v351, %v1483
        %v1488 = vmul.f32 %v352, %v1483
        %v1489 = vmul.f32 %v353, %v1483
        %v1490 = vmul.f32 %v354, %v1483
        %v1491 = vmul.f32 %v355, %v1483
        %v1492 = vmul.f32 %v356, %v1483
        %v1493 = vmul.f32 %v357, %v1483
        %v1494 = vmul.f32 %v358, %v1483
        %v1495 = vmul.f32 %v359, %v1483
        %v1496 = vmul.f32 %v360, %v1483
        %v1497 = vmul.f32 %v361, %v1483
        %v1498 = vmul.f32 %v362, %v1483
        %v1499 = vmul.f32 %v363, %v1483
        %v1500 = vmul.f32 %v364, %v1483
        %v1501 = vmul.f32 %v365, %v1483
        %v1502 = vmul.f32 %v366, %v1483
        %v1503 = vmul.f32 %v367, %v1483
        %v1504 = vmul.f32 %v368, %v1483
        %v1505 = vmul.f32 %v369, %v1483
        %v1506 = vmul.f32 %v370, %v1483
        %v1507 = vmul.f32 %v371, %v1483
        %v1508 = vmul.f32 %v372, %v1483
        %v1509 = vmul.f32 %v373, %v1483
        %v1510 = vmul.f32 %v374, %v1483
        %v1511 = vmul.f32 %v375, %v1483
        %v1512 = vmul.f32 %v376, %v1483
        %v1513 = vmul.f32 %v377, %v1483
        %v1514 = vmul.f32 %v378, %v1483
        %v1515 = vmul.f32 %v379, %v1483
        %v1516 = vadd.f32 %v1448, %v1484
        %v1517 = vadd.f32 %v1449, %v1485
        %v1518 = vadd.f32 %v1450, %v1486
        %v1519 = vadd.f32 %v1451, %v1487
        %v1520 = vadd.f32 %v1452, %v1488
        %v1521 = vadd.f32 %v1453, %v1489
        %v1522 = vadd.f32 %v1454, %v1490
        %v1523 = vadd.f32 %v1455, %v1491
        %v1524 = vadd.f32 %v1456, %v1492
        %v1525 = vadd.f32 %v1457, %v1493
        %v1526 = vadd.f32 %v1458, %v1494
        %v1527 = vadd.f32 %v1459, %v1495
        %v1528 = vadd.f32 %v1460, %v1496
        %v1529 = vadd.f32 %v1461, %v1497
        %v1530 = vadd.f32 %v1462, %v1498
        %v1531 = vadd.f32 %v1463, %v1499
        %v1532 = vadd.f32 %v1464, %v1500
        %v1533 = vadd.f32 %v1465, %v1501
        %v1534 = vadd.f32 %v1466, %v1502
        %v1535 = vadd.f32 %v1467, %v1503
        %v1536 = vadd.f32 %v1468, %v1504
        %v1537 = vadd.f32 %v1469, %v1505
        %v1538 = vadd.f32 %v1470, %v1506
        %v1539 = vadd.f32 %v1471, %v1507
        %v1540 = vadd.f32 %v1472, %v1508
        %v1541 = vadd.f32 %v1473, %v1509
        %v1542 = vadd.f32 %v1474, %v1510
        %v1543 = vadd.f32 %v1475, %v1511
        %v1544 = vadd.f32 %v1476, %v1512
        %v1545 = vadd.f32 %v1477, %v1513
        %v1546 = vadd.f32 %v1478, %v1514
        %v1547 = vadd.f32 %v1479, %v1515
        %v1548 = vrot.slane %v348, 1
        %v1549 = vrot.slane %v349, 1
        %v1550 = vrot.slane %v350, 1
        %v1551 = vrot.slane %v351, 1
        %v1552 = vrot.slane %v352, 1
        %v1553 = vrot.slane %v353, 1
        %v1554 = vrot.slane %v354, 1
        %v1555 = vrot.slane %v355, 1
        %v1556 = vrot.slane %v356, 1
        %v1557 = vrot.slane %v357, 1
        %v1558 = vrot.slane %v358, 1
        %v1559 = vrot.slane %v359, 1
        %v1560 = vrot.slane %v360, 1
        %v1561 = vrot.slane %v361, 1
        %v1562 = vrot.slane %v362, 1
        %v1563 = vrot.slane %v363, 1
        %v1564 = vrot.slane %v364, 1
        %v1565 = vrot.slane %v365, 1
        %v1566 = vrot.slane %v366, 1
        %v1567 = vrot.slane %v367, 1
        %v1568 = vrot.slane %v368, 1
        %v1569 = vrot.slane %v369, 1
        %v1570 = vrot.slane %v370, 1
        %v1571 = vrot.slane %v371, 1
        %v1572 = vrot.slane %v372, 1
        %v1573 = vrot.slane %v373, 1
        %v1574 = vrot.slane %v374, 1
        %v1575 = vrot.slane %v375, 1
        %v1576 = vrot.slane %v376, 1
        %v1577 = vrot.slane %v377, 1
        %v1578 = vrot.slane %v378, 1
        %v1579 = vrot.slane %v379, 1
        %vm1580 = vcmp.lt.s32.totalorder %v382, 7
        %v1581 = vsel %vm1580, %v1578, %v1579
        %v1582 = vsel %vm1580, %v1577, %v1578
        %v1583 = vsel %vm1580, %v1576, %v1577
        %v1584 = vsel %vm1580, %v1575, %v1576
        %v1585 = vsel %vm1580, %v1574, %v1575
        %v1586 = vsel %vm1580, %v1573, %v1574
        %v1587 = vsel %vm1580, %v1572, %v1573
        %v1588 = vsel %vm1580, %v1571, %v1572
        %v1589 = vsel %vm1580, %v1570, %v1571
        %v1590 = vsel %vm1580, %v1569, %v1570
        %v1591 = vsel %vm1580, %v1568, %v1569
        %v1592 = vsel %vm1580, %v1567, %v1568
        %v1593 = vsel %vm1580, %v1566, %v1567
        %v1594 = vsel %vm1580, %v1565, %v1566
        %v1595 = vsel %vm1580, %v1564, %v1565
        %v1596 = vsel %vm1580, %v1563, %v1564
        %v1597 = vsel %vm1580, %v1562, %v1563
        %v1598 = vsel %vm1580, %v1561, %v1562
        %v1599 = vsel %vm1580, %v1560, %v1561
        %v1600 = vsel %vm1580, %v1559, %v1560
        %v1601 = vsel %vm1580, %v1558, %v1559
        %v1602 = vsel %vm1580, %v1557, %v1558
        %v1603 = vsel %vm1580, %v1556, %v1557
        %v1604 = vsel %vm1580, %v1555, %v1556
        %v1605 = vsel %vm1580, %v1554, %v1555
        %v1606 = vsel %vm1580, %v1553, %v1554
        %v1607 = vsel %vm1580, %v1552, %v1553
        %v1608 = vsel %vm1580, %v1551, %v1552
        %v1609 = vsel %vm1580, %v1550, %v1551
        %v1610 = vsel %vm1580, %v1549, %v1550
        %v1611 = vsel %vm1580, %v1548, %v1549
        %v1612 = vsel %vm1580, %v1579, %v1548
        %v1613 = vadd.s32 %v766, 1
        %v1614 = vadd.s32 %v767, 1
        %v1615 = vadd.s32 %v768, 1
        %v1616 = vadd.s32 %v769, 1
        %v1617 = vadd.s32 %v770, 1
        %v1618 = vadd.s32 %v771, 1
        %v1619 = vadd.s32 %v772, 1
        %v1620 = vadd.s32 %v773, 1
        %v1621 = vadd.s32 %v774, 1
        %v1622 = vadd.s32 %v775, 1
        %v1623 = vadd.s32 %v776, 1
        %v1624 = vadd.s32 %v777, 1
        %v1625 = vadd.s32 %v778, 1
        %v1626 = vadd.s32 %v779, 1
        %v1627 = vadd.s32 %v780, 1
        %v1628 = vadd.s32 %v781, 1
        %v1629 = vadd.s32 %v782, 1
        %v1630 = vadd.s32 %v783, 1
        %v1631 = vadd.s32 %v784, 1
        %v1632 = vadd.s32 %v785, 1
        %v1633 = vadd.s32 %v786, 1
        %v1634 = vadd.s32 %v787, 1
        %v1635 = vadd.s32 %v788, 1
        %v1636 = vadd.s32 %v789, 1
        %v1637 = vadd.s32 %v790, 1
        %v1638 = vadd.s32 %v791, 1
        %v1639 = vadd.s32 %v792, 1
        %v1640 = vadd.s32 %v793, 1
        %v1641 = vadd.s32 %v794, 1
        %v1642 = vadd.s32 %v795, 1
        %v1643 = vadd.s32 %v796, 1
        %v1644 = vadd.s32 %v797, 1
        %vm1645 = vcmp.ge.s32.totalorder %v1613, 0
        %vm1646 = vcmp.ge.s32.totalorder %v1614, 0
        %vm1647 = vcmp.ge.s32.totalorder %v1615, 0
        %vm1648 = vcmp.ge.s32.totalorder %v1616, 0
        %vm1649 = vcmp.ge.s32.totalorder %v1617, 0
        %vm1650 = vcmp.ge.s32.totalorder %v1618, 0
        %vm1651 = vcmp.ge.s32.totalorder %v1619, 0
        %vm1652 = vcmp.ge.s32.totalorder %v1620, 0
        %vm1653 = vcmp.ge.s32.totalorder %v1621, 0
        %vm1654 = vcmp.ge.s32.totalorder %v1622, 0
        %vm1655 = vcmp.ge.s32.totalorder %v1623, 0
        %vm1656 = vcmp.ge.s32.totalorder %v1624, 0
        %vm1657 = vcmp.ge.s32.totalorder %v1625, 0
        %vm1658 = vcmp.ge.s32.totalorder %v1626, 0
        %vm1659 = vcmp.ge.s32.totalorder %v1627, 0
        %vm1660 = vcmp.ge.s32.totalorder %v1628, 0
        %vm1661 = vcmp.ge.s32.totalorder %v1629, 0
        %vm1662 = vcmp.ge.s32.totalorder %v1630, 0
        %vm1663 = vcmp.ge.s32.totalorder %v1631, 0
        %vm1664 = vcmp.ge.s32.totalorder %v1632, 0
        %vm1665 = vcmp.ge.s32.totalorder %v1633, 0
        %vm1666 = vcmp.ge.s32.totalorder %v1634, 0
        %vm1667 = vcmp.ge.s32.totalorder %v1635, 0
        %vm1668 = vcmp.ge.s32.totalorder %v1636, 0
        %vm1669 = vcmp.ge.s32.totalorder %v1637, 0
        %vm1670 = vcmp.ge.s32.totalorder %v1638, 0
        %vm1671 = vcmp.ge.s32.totalorder %v1639, 0
        %vm1672 = vcmp.ge.s32.totalorder %v1640, 0
        %vm1673 = vcmp.ge.s32.totalorder %v1641, 0
        %vm1674 = vcmp.ge.s32.totalorder %v1642, 0
        %vm1675 = vcmp.ge.s32.totalorder %v1643, 0
        %vm1676 = vcmp.ge.s32.totalorder %v1644, 0
        %vm1677 = vcmp.lt.s32.totalorder %v1613, 64
        %vm1678 = vcmp.lt.s32.totalorder %v1614, 64
        %vm1679 = vcmp.lt.s32.totalorder %v1615, 64
        %vm1680 = vcmp.lt.s32.totalorder %v1616, 64
        %vm1681 = vcmp.lt.s32.totalorder %v1617, 64
        %vm1682 = vcmp.lt.s32.totalorder %v1618, 64
        %vm1683 = vcmp.lt.s32.totalorder %v1619, 64
        %vm1684 = vcmp.lt.s32.totalorder %v1620, 64
        %vm1685 = vcmp.lt.s32.totalorder %v1621, 64
        %vm1686 = vcmp.lt.s32.totalorder %v1622, 64
        %vm1687 = vcmp.lt.s32.totalorder %v1623, 64
        %vm1688 = vcmp.lt.s32.totalorder %v1624, 64
        %vm1689 = vcmp.lt.s32.totalorder %v1625, 64
        %vm1690 = vcmp.lt.s32.totalorder %v1626, 64
        %vm1691 = vcmp.lt.s32.totalorder %v1627, 64
        %vm1692 = vcmp.lt.s32.totalorder %v1628, 64
        %vm1693 = vcmp.lt.s32.totalorder %v1629, 64
        %vm1694 = vcmp.lt.s32.totalorder %v1630, 64
        %vm1695 = vcmp.lt.s32.totalorder %v1631, 64
        %vm1696 = vcmp.lt.s32.totalorder %v1632, 64
        %vm1697 = vcmp.lt.s32.totalorder %v1633, 64
        %vm1698 = vcmp.lt.s32.totalorder %v1634, 64
        %vm1699 = vcmp.lt.s32.totalorder %v1635, 64
        %vm1700 = vcmp.lt.s32.totalorder %v1636, 64
        %vm1701 = vcmp.lt.s32.totalorder %v1637, 64
        %vm1702 = vcmp.lt.s32.totalorder %v1638, 64
        %vm1703 = vcmp.lt.s32.totalorder %v1639, 64
        %vm1704 = vcmp.lt.s32.totalorder %v1640, 64
        %vm1705 = vcmp.lt.s32.totalorder %v1641, 64
        %vm1706 = vcmp.lt.s32.totalorder %v1642, 64
        %vm1707 = vcmp.lt.s32.totalorder %v1643, 64
        %vm1708 = vcmp.lt.s32.totalorder %v1644, 64
        %vm1709 = vmand %vm1645, %vm1677
        %vm1710 = vmand %vm1646, %vm1678
        %vm1711 = vmand %vm1647, %vm1679
        %vm1712 = vmand %vm1648, %vm1680
        %vm1713 = vmand %vm1649, %vm1681
        %vm1714 = vmand %vm1650, %vm1682
        %vm1715 = vmand %vm1651, %vm1683
        %vm1716 = vmand %vm1652, %vm1684
        %vm1717 = vmand %vm1653, %vm1685
        %vm1718 = vmand %vm1654, %vm1686
        %vm1719 = vmand %vm1655, %vm1687
        %vm1720 = vmand %vm1656, %vm1688
        %vm1721 = vmand %vm1657, %vm1689
        %vm1722 = vmand %vm1658, %vm1690
        %vm1723 = vmand %vm1659, %vm1691
        %vm1724 = vmand %vm1660, %vm1692
        %vm1725 = vmand %vm1661, %vm1693
        %vm1726 = vmand %vm1662, %vm1694
        %vm1727 = vmand %vm1663, %vm1695
        %vm1728 = vmand %vm1664, %vm1696
        %vm1729 = vmand %vm1665, %vm1697
        %vm1730 = vmand %vm1666, %vm1698
        %vm1731 = vmand %vm1667, %vm1699
        %vm1732 = vmand %vm1668, %vm1700
        %vm1733 = vmand %vm1669, %vm1701
        %vm1734 = vmand %vm1670, %vm1702
        %vm1735 = vmand %vm1671, %vm1703
        %vm1736 = vmand %vm1672, %vm1704
        %vm1737 = vmand %vm1673, %vm1705
        %vm1738 = vmand %vm1674, %vm1706
        %vm1739 = vmand %vm1675, %vm1707
        %vm1740 = vmand %vm1676, %vm1708
        %v1741 = vsel %vm1709, 1, 0
        %v1742 = vsel %vm1710, 1, 0
        %v1743 = vsel %vm1711, 1, 0
        %v1744 = vsel %vm1712, 1, 0
        %v1745 = vsel %vm1713, 1, 0
        %v1746 = vsel %vm1714, 1, 0
        %v1747 = vsel %vm1715, 1, 0
        %v1748 = vsel %vm1716, 1, 0
        %v1749 = vsel %vm1717, 1, 0
        %v1750 = vsel %vm1718, 1, 0
        %v1751 = vsel %vm1719, 1, 0
        %v1752 = vsel %vm1720, 1, 0
        %v1753 = vsel %vm1721, 1, 0
        %v1754 = vsel %vm1722, 1, 0
        %v1755 = vsel %vm1723, 1, 0
        %v1756 = vsel %vm1724, 1, 0
        %v1757 = vsel %vm1725, 1, 0
        %v1758 = vsel %vm1726, 1, 0
        %v1759 = vsel %vm1727, 1, 0
        %v1760 = vsel %vm1728, 1, 0
        %v1761 = vsel %vm1729, 1, 0
        %v1762 = vsel %vm1730, 1, 0
        %v1763 = vsel %vm1731, 1, 0
        %v1764 = vsel %vm1732, 1, 0
        %v1765 = vsel %vm1733, 1, 0
        %v1766 = vsel %vm1734, 1, 0
        %v1767 = vsel %vm1735, 1, 0
        %v1768 = vsel %vm1736, 1, 0
        %v1769 = vsel %vm1737, 1, 0
        %v1770 = vsel %vm1738, 1, 0
        %v1771 = vsel %vm1739, 1, 0
        %v1772 = vsel %vm1740, 1, 0
        %vm1773 = vcmp.eq.s32.totalorder %v1741, 1
        %vm1774 = vcmp.eq.s32.totalorder %v1742, 1
        %vm1775 = vcmp.eq.s32.totalorder %v1743, 1
        %vm1776 = vcmp.eq.s32.totalorder %v1744, 1
        %vm1777 = vcmp.eq.s32.totalorder %v1745, 1
        %vm1778 = vcmp.eq.s32.totalorder %v1746, 1
        %vm1779 = vcmp.eq.s32.totalorder %v1747, 1
        %vm1780 = vcmp.eq.s32.totalorder %v1748, 1
        %vm1781 = vcmp.eq.s32.totalorder %v1749, 1
        %vm1782 = vcmp.eq.s32.totalorder %v1750, 1
        %vm1783 = vcmp.eq.s32.totalorder %v1751, 1
        %vm1784 = vcmp.eq.s32.totalorder %v1752, 1
        %vm1785 = vcmp.eq.s32.totalorder %v1753, 1
        %vm1786 = vcmp.eq.s32.totalorder %v1754, 1
        %vm1787 = vcmp.eq.s32.totalorder %v1755, 1
        %vm1788 = vcmp.eq.s32.totalorder %v1756, 1
        %vm1789 = vcmp.eq.s32.totalorder %v1757, 1
        %vm1790 = vcmp.eq.s32.totalorder %v1758, 1
        %vm1791 = vcmp.eq.s32.totalorder %v1759, 1
        %vm1792 = vcmp.eq.s32.totalorder %v1760, 1
        %vm1793 = vcmp.eq.s32.totalorder %v1761, 1
        %vm1794 = vcmp.eq.s32.totalorder %v1762, 1
        %vm1795 = vcmp.eq.s32.totalorder %v1763, 1
        %vm1796 = vcmp.eq.s32.totalorder %v1764, 1
        %vm1797 = vcmp.eq.s32.totalorder %v1765, 1
        %vm1798 = vcmp.eq.s32.totalorder %v1766, 1
        %vm1799 = vcmp.eq.s32.totalorder %v1767, 1
        %vm1800 = vcmp.eq.s32.totalorder %v1768, 1
        %vm1801 = vcmp.eq.s32.totalorder %v1769, 1
        %vm1802 = vcmp.eq.s32.totalorder %v1770, 1
        %vm1803 = vcmp.eq.s32.totalorder %v1771, 1
        %vm1804 = vcmp.eq.s32.totalorder %v1772, 1
        %v1805 = vsel %vm1773, %v1611, 0.0
        %v1806 = vsel %vm1774, %v1610, 0.0
        %v1807 = vsel %vm1775, %v1609, 0.0
        %v1808 = vsel %vm1776, %v1608, 0.0
        %v1809 = vsel %vm1777, %v1607, 0.0
        %v1810 = vsel %vm1778, %v1606, 0.0
        %v1811 = vsel %vm1779, %v1605, 0.0
        %v1812 = vsel %vm1780, %v1604, 0.0
        %v1813 = vsel %vm1781, %v1603, 0.0
        %v1814 = vsel %vm1782, %v1602, 0.0
        %v1815 = vsel %vm1783, %v1601, 0.0
        %v1816 = vsel %vm1784, %v1600, 0.0
        %v1817 = vsel %vm1785, %v1599, 0.0
        %v1818 = vsel %vm1786, %v1598, 0.0
        %v1819 = vsel %vm1787, %v1597, 0.0
        %v1820 = vsel %vm1788, %v1596, 0.0
        %v1821 = vsel %vm1789, %v1595, 0.0
        %v1822 = vsel %vm1790, %v1594, 0.0
        %v1823 = vsel %vm1791, %v1593, 0.0
        %v1824 = vsel %vm1792, %v1592, 0.0
        %v1825 = vsel %vm1793, %v1591, 0.0
        %v1826 = vsel %vm1794, %v1590, 0.0
        %v1827 = vsel %vm1795, %v1589, 0.0
        %v1828 = vsel %vm1796, %v1588, 0.0
        %v1829 = vsel %vm1797, %v1587, 0.0
        %v1830 = vsel %vm1798, %v1586, 0.0
        %v1831 = vsel %vm1799, %v1585, 0.0
        %v1832 = vsel %vm1800, %v1584, 0.0
        %v1833 = vsel %vm1801, %v1583, 0.0
        %v1834 = vsel %vm1802, %v1582, 0.0
        %v1835 = vsel %vm1803, %v1581, 0.0
        %v1836 = vsel %vm1804, %v1612, 0.0
        %v1837 = vlaneseq
        %v1838 = vshrl.u32 %v1837, 7
        %v1839 = vsub.s32 3, %v1838
        %v1840 = vrot.slane %v380, %v1839
        %v1841 = vmul.f32 %v1805, %v1840
        %v1842 = vmul.f32 %v1806, %v1840
        %v1843 = vmul.f32 %v1807, %v1840
        %v1844 = vmul.f32 %v1808, %v1840
        %v1845 = vmul.f32 %v1809, %v1840
        %v1846 = vmul.f32 %v1810, %v1840
        %v1847 = vmul.f32 %v1811, %v1840
        %v1848 = vmul.f32 %v1812, %v1840
        %v1849 = vmul.f32 %v1813, %v1840
        %v1850 = vmul.f32 %v1814, %v1840
        %v1851 = vmul.f32 %v1815, %v1840
        %v1852 = vmul.f32 %v1816, %v1840
        %v1853 = vmul.f32 %v1817, %v1840
        %v1854 = vmul.f32 %v1818, %v1840
        %v1855 = vmul.f32 %v1819, %v1840
        %v1856 = vmul.f32 %v1820, %v1840
        %v1857 = vmul.f32 %v1821, %v1840
        %v1858 = vmul.f32 %v1822, %v1840
        %v1859 = vmul.f32 %v1823, %v1840
        %v1860 = vmul.f32 %v1824, %v1840
        %v1861 = vmul.f32 %v1825, %v1840
        %v1862 = vmul.f32 %v1826, %v1840
        %v1863 = vmul.f32 %v1827, %v1840
        %v1864 = vmul.f32 %v1828, %v1840
        %v1865 = vmul.f32 %v1829, %v1840
        %v1866 = vmul.f32 %v1830, %v1840
        %v1867 = vmul.f32 %v1831, %v1840
        %v1868 = vmul.f32 %v1832, %v1840
        %v1869 = vmul.f32 %v1833, %v1840
        %v1870 = vmul.f32 %v1834, %v1840
        %v1871 = vmul.f32 %v1835, %v1840
        %v1872 = vmul.f32 %v1836, %v1840
        %v1873 = vadd.f32 %v1516, %v1841
        %v1874 = vadd.f32 %v1517, %v1842
        %v1875 = vadd.f32 %v1518, %v1843
        %v1876 = vadd.f32 %v1519, %v1844
        %v1877 = vadd.f32 %v1520, %v1845
        %v1878 = vadd.f32 %v1521, %v1846
        %v1879 = vadd.f32 %v1522, %v1847
        %v1880 = vadd.f32 %v1523, %v1848
        %v1881 = vadd.f32 %v1524, %v1849
        %v1882 = vadd.f32 %v1525, %v1850
        %v1883 = vadd.f32 %v1526, %v1851
        %v1884 = vadd.f32 %v1527, %v1852
        %v1885 = vadd.f32 %v1528, %v1853
        %v1886 = vadd.f32 %v1529, %v1854
        %v1887 = vadd.f32 %v1530, %v1855
        %v1888 = vadd.f32 %v1531, %v1856
        %v1889 = vadd.f32 %v1532, %v1857
        %v1890 = vadd.f32 %v1533, %v1858
        %v1891 = vadd.f32 %v1534, %v1859
        %v1892 = vadd.f32 %v1535, %v1860
        %v1893 = vadd.f32 %v1536, %v1861
        %v1894 = vadd.f32 %v1537, %v1862
        %v1895 = vadd.f32 %v1538, %v1863
        %v1896 = vadd.f32 %v1539, %v1864
        %v1897 = vadd.f32 %v1540, %v1865
        %v1898 = vadd.f32 %v1541, %v1866
        %v1899 = vadd.f32 %v1542, %v1867
        %v1900 = vadd.f32 %v1543, %v1868
        %v1901 = vadd.f32 %v1544, %v1869
        %v1902 = vadd.f32 %v1545, %v1870
        %v1903 = vadd.f32 %v1546, %v1871
        %v1904 = vadd.f32 %v1547, %v1872
        %v1905 = vrot.slane %v348, 2
        %v1906 = vrot.slane %v349, 2
        %v1907 = vrot.slane %v350, 2
        %v1908 = vrot.slane %v351, 2
        %v1909 = vrot.slane %v352, 2
        %v1910 = vrot.slane %v353, 2
        %v1911 = vrot.slane %v354, 2
        %v1912 = vrot.slane %v355, 2
        %v1913 = vrot.slane %v356, 2
        %v1914 = vrot.slane %v357, 2
        %v1915 = vrot.slane %v358, 2
        %v1916 = vrot.slane %v359, 2
        %v1917 = vrot.slane %v360, 2
        %v1918 = vrot.slane %v361, 2
        %v1919 = vrot.slane %v362, 2
        %v1920 = vrot.slane %v363, 2
        %v1921 = vrot.slane %v364, 2
        %v1922 = vrot.slane %v365, 2
        %v1923 = vrot.slane %v366, 2
        %v1924 = vrot.slane %v367, 2
        %v1925 = vrot.slane %v368, 2
        %v1926 = vrot.slane %v369, 2
        %v1927 = vrot.slane %v370, 2
        %v1928 = vrot.slane %v371, 2
        %v1929 = vrot.slane %v372, 2
        %v1930 = vrot.slane %v373, 2
        %v1931 = vrot.slane %v374, 2
        %v1932 = vrot.slane %v375, 2
        %v1933 = vrot.slane %v376, 2
        %v1934 = vrot.slane %v377, 2
        %v1935 = vrot.slane %v378, 2
        %v1936 = vrot.slane %v379, 2
        %vm1937 = vcmp.lt.s32.totalorder %v382, 6
        %v1938 = vsel %vm1937, %v1935, %v1936
        %v1939 = vsel %vm1937, %v1934, %v1935
        %v1940 = vsel %vm1937, %v1933, %v1934
        %v1941 = vsel %vm1937, %v1932, %v1933
        %v1942 = vsel %vm1937, %v1931, %v1932
        %v1943 = vsel %vm1937, %v1930, %v1931
        %v1944 = vsel %vm1937, %v1929, %v1930
        %v1945 = vsel %vm1937, %v1928, %v1929
        %v1946 = vsel %vm1937, %v1927, %v1928
        %v1947 = vsel %vm1937, %v1926, %v1927
        %v1948 = vsel %vm1937, %v1925, %v1926
        %v1949 = vsel %vm1937, %v1924, %v1925
        %v1950 = vsel %vm1937, %v1923, %v1924
        %v1951 = vsel %vm1937, %v1922, %v1923
        %v1952 = vsel %vm1937, %v1921, %v1922
        %v1953 = vsel %vm1937, %v1920, %v1921
        %v1954 = vsel %vm1937, %v1919, %v1920
        %v1955 = vsel %vm1937, %v1918, %v1919
        %v1956 = vsel %vm1937, %v1917, %v1918
        %v1957 = vsel %vm1937, %v1916, %v1917
        %v1958 = vsel %vm1937, %v1915, %v1916
        %v1959 = vsel %vm1937, %v1914, %v1915
        %v1960 = vsel %vm1937, %v1913, %v1914
        %v1961 = vsel %vm1937, %v1912, %v1913
        %v1962 = vsel %vm1937, %v1911, %v1912
        %v1963 = vsel %vm1937, %v1910, %v1911
        %v1964 = vsel %vm1937, %v1909, %v1910
        %v1965 = vsel %vm1937, %v1908, %v1909
        %v1966 = vsel %vm1937, %v1907, %v1908
        %v1967 = vsel %vm1937, %v1906, %v1907
        %v1968 = vsel %vm1937, %v1905, %v1906
        %v1969 = vsel %vm1937, %v1936, %v1905
        %v1970 = vadd.s32 %v766, 2
        %v1971 = vadd.s32 %v767, 2
        %v1972 = vadd.s32 %v768, 2
        %v1973 = vadd.s32 %v769, 2
        %v1974 = vadd.s32 %v770, 2
        %v1975 = vadd.s32 %v771, 2
        %v1976 = vadd.s32 %v772, 2
        %v1977 = vadd.s32 %v773, 2
        %v1978 = vadd.s32 %v774, 2
        %v1979 = vadd.s32 %v775, 2
        %v1980 = vadd.s32 %v776, 2
        %v1981 = vadd.s32 %v777, 2
        %v1982 = vadd.s32 %v778, 2
        %v1983 = vadd.s32 %v779, 2
        %v1984 = vadd.s32 %v780, 2
        %v1985 = vadd.s32 %v781, 2
        %v1986 = vadd.s32 %v782, 2
        %v1987 = vadd.s32 %v783, 2
        %v1988 = vadd.s32 %v784, 2
        %v1989 = vadd.s32 %v785, 2
        %v1990 = vadd.s32 %v786, 2
        %v1991 = vadd.s32 %v787, 2
        %v1992 = vadd.s32 %v788, 2
        %v1993 = vadd.s32 %v789, 2
        %v1994 = vadd.s32 %v790, 2
        %v1995 = vadd.s32 %v791, 2
        %v1996 = vadd.s32 %v792, 2
        %v1997 = vadd.s32 %v793, 2
        %v1998 = vadd.s32 %v794, 2
        %v1999 = vadd.s32 %v795, 2
        %v2000 = vadd.s32 %v796, 2
        %v2001 = vadd.s32 %v797, 2
        %vm2002 = vcmp.ge.s32.totalorder %v1970, 0
        %vm2003 = vcmp.ge.s32.totalorder %v1971, 0
        %vm2004 = vcmp.ge.s32.totalorder %v1972, 0
        %vm2005 = vcmp.ge.s32.totalorder %v1973, 0
        %vm2006 = vcmp.ge.s32.totalorder %v1974, 0
        %vm2007 = vcmp.ge.s32.totalorder %v1975, 0
        %vm2008 = vcmp.ge.s32.totalorder %v1976, 0
        %vm2009 = vcmp.ge.s32.totalorder %v1977, 0
        %vm2010 = vcmp.ge.s32.totalorder %v1978, 0
        %vm2011 = vcmp.ge.s32.totalorder %v1979, 0
        %vm2012 = vcmp.ge.s32.totalorder %v1980, 0
        %vm2013 = vcmp.ge.s32.totalorder %v1981, 0
        %vm2014 = vcmp.ge.s32.totalorder %v1982, 0
        %vm2015 = vcmp.ge.s32.totalorder %v1983, 0
        %vm2016 = vcmp.ge.s32.totalorder %v1984, 0
        %vm2017 = vcmp.ge.s32.totalorder %v1985, 0
        %vm2018 = vcmp.ge.s32.totalorder %v1986, 0
        %vm2019 = vcmp.ge.s32.totalorder %v1987, 0
        %vm2020 = vcmp.ge.s32.totalorder %v1988, 0
        %vm2021 = vcmp.ge.s32.totalorder %v1989, 0
        %vm2022 = vcmp.ge.s32.totalorder %v1990, 0
        %vm2023 = vcmp.ge.s32.totalorder %v1991, 0
        %vm2024 = vcmp.ge.s32.totalorder %v1992, 0
        %vm2025 = vcmp.ge.s32.totalorder %v1993, 0
        %vm2026 = vcmp.ge.s32.totalorder %v1994, 0
        %vm2027 = vcmp.ge.s32.totalorder %v1995, 0
        %vm2028 = vcmp.ge.s32.totalorder %v1996, 0
        %vm2029 = vcmp.ge.s32.totalorder %v1997, 0
        %vm2030 = vcmp.ge.s32.totalorder %v1998, 0
        %vm2031 = vcmp.ge.s32.totalorder %v1999, 0
        %vm2032 = vcmp.ge.s32.totalorder %v2000, 0
        %vm2033 = vcmp.ge.s32.totalorder %v2001, 0
        %vm2034 = vcmp.lt.s32.totalorder %v1970, 64
        %vm2035 = vcmp.lt.s32.totalorder %v1971, 64
        %vm2036 = vcmp.lt.s32.totalorder %v1972, 64
        %vm2037 = vcmp.lt.s32.totalorder %v1973, 64
        %vm2038 = vcmp.lt.s32.totalorder %v1974, 64
        %vm2039 = vcmp.lt.s32.totalorder %v1975, 64
        %vm2040 = vcmp.lt.s32.totalorder %v1976, 64
        %vm2041 = vcmp.lt.s32.totalorder %v1977, 64
        %vm2042 = vcmp.lt.s32.totalorder %v1978, 64
        %vm2043 = vcmp.lt.s32.totalorder %v1979, 64
        %vm2044 = vcmp.lt.s32.totalorder %v1980, 64
        %vm2045 = vcmp.lt.s32.totalorder %v1981, 64
        %vm2046 = vcmp.lt.s32.totalorder %v1982, 64
        %vm2047 = vcmp.lt.s32.totalorder %v1983, 64
        %vm2048 = vcmp.lt.s32.totalorder %v1984, 64
        %vm2049 = vcmp.lt.s32.totalorder %v1985, 64
        %vm2050 = vcmp.lt.s32.totalorder %v1986, 64
        %vm2051 = vcmp.lt.s32.totalorder %v1987, 64
        %vm2052 = vcmp.lt.s32.totalorder %v1988, 64
        %vm2053 = vcmp.lt.s32.totalorder %v1989, 64
        %vm2054 = vcmp.lt.s32.totalorder %v1990, 64
        %vm2055 = vcmp.lt.s32.totalorder %v1991, 64
        %vm2056 = vcmp.lt.s32.totalorder %v1992, 64
        %vm2057 = vcmp.lt.s32.totalorder %v1993, 64
        %vm2058 = vcmp.lt.s32.totalorder %v1994, 64
        %vm2059 = vcmp.lt.s32.totalorder %v1995, 64
        %vm2060 = vcmp.lt.s32.totalorder %v1996, 64
        %vm2061 = vcmp.lt.s32.totalorder %v1997, 64
        %vm2062 = vcmp.lt.s32.totalorder %v1998, 64
        %vm2063 = vcmp.lt.s32.totalorder %v1999, 64
        %vm2064 = vcmp.lt.s32.totalorder %v2000, 64
        %vm2065 = vcmp.lt.s32.totalorder %v2001, 64
        %vm2066 = vmand %vm2002, %vm2034
        %vm2067 = vmand %vm2003, %vm2035
        %vm2068 = vmand %vm2004, %vm2036
        %vm2069 = vmand %vm2005, %vm2037
        %vm2070 = vmand %vm2006, %vm2038
        %vm2071 = vmand %vm2007, %vm2039
        %vm2072 = vmand %vm2008, %vm2040
        %vm2073 = vmand %vm2009, %vm2041
        %vm2074 = vmand %vm2010, %vm2042
        %vm2075 = vmand %vm2011, %vm2043
        %vm2076 = vmand %vm2012, %vm2044
        %vm2077 = vmand %vm2013, %vm2045
        %vm2078 = vmand %vm2014, %vm2046
        %vm2079 = vmand %vm2015, %vm2047
        %vm2080 = vmand %vm2016, %vm2048
        %vm2081 = vmand %vm2017, %vm2049
        %vm2082 = vmand %vm2018, %vm2050
        %vm2083 = vmand %vm2019, %vm2051
        %vm2084 = vmand %vm2020, %vm2052
        %vm2085 = vmand %vm2021, %vm2053
        %vm2086 = vmand %vm2022, %vm2054
        %vm2087 = vmand %vm2023, %vm2055
        %vm2088 = vmand %vm2024, %vm2056
        %vm2089 = vmand %vm2025, %vm2057
        %vm2090 = vmand %vm2026, %vm2058
        %vm2091 = vmand %vm2027, %vm2059
        %vm2092 = vmand %vm2028, %vm2060
        %vm2093 = vmand %vm2029, %vm2061
        %vm2094 = vmand %vm2030, %vm2062
        %vm2095 = vmand %vm2031, %vm2063
        %vm2096 = vmand %vm2032, %vm2064
        %vm2097 = vmand %vm2033, %vm2065
        %v2098 = vsel %vm2066, 1, 0
        %v2099 = vsel %vm2067, 1, 0
        %v2100 = vsel %vm2068, 1, 0
        %v2101 = vsel %vm2069, 1, 0
        %v2102 = vsel %vm2070, 1, 0
        %v2103 = vsel %vm2071, 1, 0
        %v2104 = vsel %vm2072, 1, 0
        %v2105 = vsel %vm2073, 1, 0
        %v2106 = vsel %vm2074, 1, 0
        %v2107 = vsel %vm2075, 1, 0
        %v2108 = vsel %vm2076, 1, 0
        %v2109 = vsel %vm2077, 1, 0
        %v2110 = vsel %vm2078, 1, 0
        %v2111 = vsel %vm2079, 1, 0
        %v2112 = vsel %vm2080, 1, 0
        %v2113 = vsel %vm2081, 1, 0
        %v2114 = vsel %vm2082, 1, 0
        %v2115 = vsel %vm2083, 1, 0
        %v2116 = vsel %vm2084, 1, 0
        %v2117 = vsel %vm2085, 1, 0
        %v2118 = vsel %vm2086, 1, 0
        %v2119 = vsel %vm2087, 1, 0
        %v2120 = vsel %vm2088, 1, 0
        %v2121 = vsel %vm2089, 1, 0
        %v2122 = vsel %vm2090, 1, 0
        %v2123 = vsel %vm2091, 1, 0
        %v2124 = vsel %vm2092, 1, 0
        %v2125 = vsel %vm2093, 1, 0
        %v2126 = vsel %vm2094, 1, 0
        %v2127 = vsel %vm2095, 1, 0
        %v2128 = vsel %vm2096, 1, 0
        %v2129 = vsel %vm2097, 1, 0
        %vm2130 = vcmp.eq.s32.totalorder %v2098, 1
        %vm2131 = vcmp.eq.s32.totalorder %v2099, 1
        %vm2132 = vcmp.eq.s32.totalorder %v2100, 1
        %vm2133 = vcmp.eq.s32.totalorder %v2101, 1
        %vm2134 = vcmp.eq.s32.totalorder %v2102, 1
        %vm2135 = vcmp.eq.s32.totalorder %v2103, 1
        %vm2136 = vcmp.eq.s32.totalorder %v2104, 1
        %vm2137 = vcmp.eq.s32.totalorder %v2105, 1
        %vm2138 = vcmp.eq.s32.totalorder %v2106, 1
        %vm2139 = vcmp.eq.s32.totalorder %v2107, 1
        %vm2140 = vcmp.eq.s32.totalorder %v2108, 1
        %vm2141 = vcmp.eq.s32.totalorder %v2109, 1
        %vm2142 = vcmp.eq.s32.totalorder %v2110, 1
        %vm2143 = vcmp.eq.s32.totalorder %v2111, 1
        %vm2144 = vcmp.eq.s32.totalorder %v2112, 1
        %vm2145 = vcmp.eq.s32.totalorder %v2113, 1
        %vm2146 = vcmp.eq.s32.totalorder %v2114, 1
        %vm2147 = vcmp.eq.s32.totalorder %v2115, 1
        %vm2148 = vcmp.eq.s32.totalorder %v2116, 1
        %vm2149 = vcmp.eq.s32.totalorder %v2117, 1
        %vm2150 = vcmp.eq.s32.totalorder %v2118, 1
        %vm2151 = vcmp.eq.s32.totalorder %v2119, 1
        %vm2152 = vcmp.eq.s32.totalorder %v2120, 1
        %vm2153 = vcmp.eq.s32.totalorder %v2121, 1
        %vm2154 = vcmp.eq.s32.totalorder %v2122, 1
        %vm2155 = vcmp.eq.s32.totalorder %v2123, 1
        %vm2156 = vcmp.eq.s32.totalorder %v2124, 1
        %vm2157 = vcmp.eq.s32.totalorder %v2125, 1
        %vm2158 = vcmp.eq.s32.totalorder %v2126, 1
        %vm2159 = vcmp.eq.s32.totalorder %v2127, 1
        %vm2160 = vcmp.eq.s32.totalorder %v2128, 1
        %vm2161 = vcmp.eq.s32.totalorder %v2129, 1
        %v2162 = vsel %vm2130, %v1968, 0.0
        %v2163 = vsel %vm2131, %v1967, 0.0
        %v2164 = vsel %vm2132, %v1966, 0.0
        %v2165 = vsel %vm2133, %v1965, 0.0
        %v2166 = vsel %vm2134, %v1964, 0.0
        %v2167 = vsel %vm2135, %v1963, 0.0
        %v2168 = vsel %vm2136, %v1962, 0.0
        %v2169 = vsel %vm2137, %v1961, 0.0
        %v2170 = vsel %vm2138, %v1960, 0.0
        %v2171 = vsel %vm2139, %v1959, 0.0
        %v2172 = vsel %vm2140, %v1958, 0.0
        %v2173 = vsel %vm2141, %v1957, 0.0
        %v2174 = vsel %vm2142, %v1956, 0.0
        %v2175 = vsel %vm2143, %v1955, 0.0
        %v2176 = vsel %vm2144, %v1954, 0.0
        %v2177 = vsel %vm2145, %v1953, 0.0
        %v2178 = vsel %vm2146, %v1952, 0.0
        %v2179 = vsel %vm2147, %v1951, 0.0
        %v2180 = vsel %vm2148, %v1950, 0.0
        %v2181 = vsel %vm2149, %v1949, 0.0
        %v2182 = vsel %vm2150, %v1948, 0.0
        %v2183 = vsel %vm2151, %v1947, 0.0
        %v2184 = vsel %vm2152, %v1946, 0.0
        %v2185 = vsel %vm2153, %v1945, 0.0
        %v2186 = vsel %vm2154, %v1944, 0.0
        %v2187 = vsel %vm2155, %v1943, 0.0
        %v2188 = vsel %vm2156, %v1942, 0.0
        %v2189 = vsel %vm2157, %v1941, 0.0
        %v2190 = vsel %vm2158, %v1940, 0.0
        %v2191 = vsel %vm2159, %v1939, 0.0
        %v2192 = vsel %vm2160, %v1938, 0.0
        %v2193 = vsel %vm2161, %v1969, 0.0
        %v2194 = vlaneseq
        %v2195 = vshrl.u32 %v2194, 7
        %v2196 = vsub.s32 4, %v2195
        %v2197 = vrot.slane %v380, %v2196
        %v2198 = vmul.f32 %v2162, %v2197
        %v2199 = vmul.f32 %v2163, %v2197
        %v2200 = vmul.f32 %v2164, %v2197
        %v2201 = vmul.f32 %v2165, %v2197
        %v2202 = vmul.f32 %v2166, %v2197
        %v2203 = vmul.f32 %v2167, %v2197
        %v2204 = vmul.f32 %v2168, %v2197
        %v2205 = vmul.f32 %v2169, %v2197
        %v2206 = vmul.f32 %v2170, %v2197
        %v2207 = vmul.f32 %v2171, %v2197
        %v2208 = vmul.f32 %v2172, %v2197
        %v2209 = vmul.f32 %v2173, %v2197
        %v2210 = vmul.f32 %v2174, %v2197
        %v2211 = vmul.f32 %v2175, %v2197
        %v2212 = vmul.f32 %v2176, %v2197
        %v2213 = vmul.f32 %v2177, %v2197
        %v2214 = vmul.f32 %v2178, %v2197
        %v2215 = vmul.f32 %v2179, %v2197
        %v2216 = vmul.f32 %v2180, %v2197
        %v2217 = vmul.f32 %v2181, %v2197
        %v2218 = vmul.f32 %v2182, %v2197
        %v2219 = vmul.f32 %v2183, %v2197
        %v2220 = vmul.f32 %v2184, %v2197
        %v2221 = vmul.f32 %v2185, %v2197
        %v2222 = vmul.f32 %v2186, %v2197
        %v2223 = vmul.f32 %v2187, %v2197
        %v2224 = vmul.f32 %v2188, %v2197
        %v2225 = vmul.f32 %v2189, %v2197
        %v2226 = vmul.f32 %v2190, %v2197
        %v2227 = vmul.f32 %v2191, %v2197
        %v2228 = vmul.f32 %v2192, %v2197
        %v2229 = vmul.f32 %v2193, %v2197
        %v2230 = vadd.f32 %v1873, %v2198
        %v2231 = vadd.f32 %v1874, %v2199
        %v2232 = vadd.f32 %v1875, %v2200
        %v2233 = vadd.f32 %v1876, %v2201
        %v2234 = vadd.f32 %v1877, %v2202
        %v2235 = vadd.f32 %v1878, %v2203
        %v2236 = vadd.f32 %v1879, %v2204
        %v2237 = vadd.f32 %v1880, %v2205
        %v2238 = vadd.f32 %v1881, %v2206
        %v2239 = vadd.f32 %v1882, %v2207
        %v2240 = vadd.f32 %v1883, %v2208
        %v2241 = vadd.f32 %v1884, %v2209
        %v2242 = vadd.f32 %v1885, %v2210
        %v2243 = vadd.f32 %v1886, %v2211
        %v2244 = vadd.f32 %v1887, %v2212
        %v2245 = vadd.f32 %v1888, %v2213
        %v2246 = vadd.f32 %v1889, %v2214
        %v2247 = vadd.f32 %v1890, %v2215
        %v2248 = vadd.f32 %v1891, %v2216
        %v2249 = vadd.f32 %v1892, %v2217
        %v2250 = vadd.f32 %v1893, %v2218
        %v2251 = vadd.f32 %v1894, %v2219
        %v2252 = vadd.f32 %v1895, %v2220
        %v2253 = vadd.f32 %v1896, %v2221
        %v2254 = vadd.f32 %v1897, %v2222
        %v2255 = vadd.f32 %v1898, %v2223
        %v2256 = vadd.f32 %v1899, %v2224
        %v2257 = vadd.f32 %v1900, %v2225
        %v2258 = vadd.f32 %v1901, %v2226
        %v2259 = vadd.f32 %v1902, %v2227
        %v2260 = vadd.f32 %v1903, %v2228
        %v2261 = vadd.f32 %v1904, %v2229
        %v2262 = vpack.c.bf16 %v2231, %v2230
        %v2263 = vpack.c.bf16 %v2233, %v2232
        %v2264 = vpack.c.bf16 %v2235, %v2234
        %v2265 = vpack.c.bf16 %v2237, %v2236
        %v2266 = vpack.c.bf16 %v2239, %v2238
        %v2267 = vpack.c.bf16 %v2241, %v2240
        %v2268 = vpack.c.bf16 %v2243, %v2242
        %v2269 = vpack.c.bf16 %v2245, %v2244
        %v2270 = vpack.c.bf16 %v2247, %v2246
        %v2271 = vpack.c.bf16 %v2249, %v2248
        %v2272 = vpack.c.bf16 %v2251, %v2250
        %v2273 = vpack.c.bf16 %v2253, %v2252
        %v2274 = vpack.c.bf16 %v2255, %v2254
        %v2275 = vpack.c.bf16 %v2257, %v2256
        %v2276 = vpack.c.bf16 %v2259, %v2258
        %v2277 = vpack.c.bf16 %v2261, %v2260
        %v2278 = vld [vmem:[#allocation7] sm:$0xff]
        %v2279 = vld [vmem:[#allocation7 + $0x8] sm:$0xf]
        %v2280 = vld [vmem:[#allocation7 + $0xc] sm:$0xff]
        %v2281 = vld [vmem:[#allocation7 + $0x14] sm:$0xf]
        %v2282 = vld [vmem:[#allocation7 + $0x18] sm:$0xff]
        %v2283 = vld [vmem:[#allocation7 + $0x20] sm:$0xf]
        %v2284 = vld [vmem:[#allocation7 + $0x24] sm:$0xff]
        %v2285 = vld [vmem:[#allocation7 + $0x2c] sm:$0xf]
        %v2286 = vld [vmem:[#allocation7 + $0x30] sm:$0xff]
        %v2287 = vld [vmem:[#allocation7 + $0x38] sm:$0xf]
        %v2288 = vld [vmem:[#allocation7 + $0x3c] sm:$0xff]
        %v2289 = vld [vmem:[#allocation7 + $0x44] sm:$0xf]
        %v2290 = vld [vmem:[#allocation7 + $0x48] sm:$0xff]
        %v2291 = vld [vmem:[#allocation7 + $0x50] sm:$0xf]
        %v2292 = vld [vmem:[#allocation7 + $0x54] sm:$0xff]
        %v2293 = vld [vmem:[#allocation7 + $0x5c] sm:$0xf]
        %v2294 = vld [vmem:[#allocation7 + $0x60] sm:$0xff]
        %v2295 = vld [vmem:[#allocation7 + $0x68] sm:$0xf]
        %v2296 = vld [vmem:[#allocation7 + $0x6c] sm:$0xff]
        %v2297 = vld [vmem:[#allocation7 + $0x74] sm:$0xf]
        %v2298 = vld [vmem:[#allocation7 + $0x78] sm:$0xff]
        %v2299 = vld [vmem:[#allocation7 + $0x80] sm:$0xf]
        %v2300 = vld [vmem:[#allocation7 + $0x84] sm:$0xff]
        %v2301 = vld [vmem:[#allocation7 + $0x8c] sm:$0xf]
        %v2302 = vld [vmem:[#allocation7 + $0x90] sm:$0xff]
        %v2303 = vld [vmem:[#allocation7 + $0x98] sm:$0xf]
        %v2304 = vld [vmem:[#allocation7 + $0x9c] sm:$0xff]
        %v2305 = vld [vmem:[#allocation7 + $0xa4] sm:$0xf]
        %v2306 = vld [vmem:[#allocation7 + $0xa8] sm:$0xff]
        %v2307 = vld [vmem:[#allocation7 + $0xb0] sm:$0xf]
        %v2308 = vld [vmem:[#allocation7 + $0xb4] sm:$0xff]
        %v2309 = vld [vmem:[#allocation7 + $0xbc] sm:$0xf]
        %v2310 = vld [vmem:[%s3] sm:$0x7]
        %v2312 = vlaneseq
        %v2313 = vshrl.u32 %v2312, 7
        %v2314 = vsub.s32 0, %v2313
        %v2315 = vrot.slane %v2310, %v2314
        %v2316 = vlaneseq
        %v2317 = vshrl.u32 %v2316, 7
        %v2318 = vsub.s32 1, %v2317
        %v2319 = vrot.slane %v2310, %v2318
        %v2320 = vlaneseq
        %v2321 = vshrl.u32 %v2320, 7
        %v2322 = vsub.s32 2, %v2321
        %v2323 = vrot.slane %v2310, %v2322
        %v2359 = vunpack.c.l.b16 %v2278
        %v2360 = vunpack.c.h.b16 %v2278
        %v2361 = vunpack.c.l.b16 %v2279
        %v2362 = vunpack.c.l.b16 %v2280
        %v2363 = vunpack.c.h.b16 %v2280
        %v2364 = vunpack.c.l.b16 %v2281
        %v2365 = vunpack.c.l.b16 %v2282
        %v2366 = vunpack.c.h.b16 %v2282
        %v2367 = vunpack.c.l.b16 %v2283
        %v2368 = vunpack.c.l.b16 %v2284
        %v2369 = vunpack.c.h.b16 %v2284
        %v2370 = vunpack.c.l.b16 %v2285
        %v2371 = vunpack.c.l.b16 %v2286
        %v2372 = vunpack.c.h.b16 %v2286
        %v2373 = vunpack.c.l.b16 %v2287
        %v2374 = vunpack.c.l.b16 %v2288
        %v2375 = vunpack.c.h.b16 %v2288
        %v2376 = vunpack.c.l.b16 %v2289
        %v2377 = vunpack.c.l.b16 %v2290
        %v2378 = vunpack.c.h.b16 %v2290
        %v2379 = vunpack.c.l.b16 %v2291
        %v2380 = vunpack.c.l.b16 %v2292
        %v2381 = vunpack.c.h.b16 %v2292
        %v2382 = vunpack.c.l.b16 %v2293
        %v2383 = vunpack.c.l.b16 %v2294
        %v2384 = vunpack.c.h.b16 %v2294
        %v2385 = vunpack.c.l.b16 %v2295
        %v2386 = vunpack.c.l.b16 %v2296
        %v2387 = vunpack.c.h.b16 %v2296
        %v2388 = vunpack.c.l.b16 %v2297
        %v2389 = vunpack.c.l.b16 %v2298
        %v2390 = vunpack.c.h.b16 %v2298
        %v2391 = vunpack.c.l.b16 %v2299
        %v2392 = vunpack.c.l.b16 %v2300
        %v2393 = vunpack.c.h.b16 %v2300
        %v2394 = vunpack.c.l.b16 %v2301
        %v2395 = vunpack.c.l.b16 %v2302
        %v2396 = vunpack.c.h.b16 %v2302
        %v2397 = vunpack.c.l.b16 %v2303
        %v2398 = vunpack.c.l.b16 %v2304
        %v2399 = vunpack.c.h.b16 %v2304
        %v2400 = vunpack.c.l.b16 %v2305
        %v2401 = vunpack.c.l.b16 %v2306
        %v2402 = vunpack.c.h.b16 %v2306
        %v2403 = vunpack.c.l.b16 %v2307
        %v2404 = vunpack.c.l.b16 %v2308
        %v2405 = vunpack.c.h.b16 %v2308
        %v2406 = vunpack.c.l.b16 %v2309
        %v2407 = vpack.c.b16 %v2362, %v2359
        %v2408 = vpack.c.b16 %v2363, %v2360
        %v2409 = vpack.c.b16 %v2364, %v2361
        %v2410 = vpack.c.b16 %v2368, %v2365
        %v2411 = vpack.c.b16 %v2369, %v2366
        %v2412 = vpack.c.b16 %v2370, %v2367
        %v2413 = vpack.c.b16 %v2374, %v2371
        %v2414 = vpack.c.b16 %v2375, %v2372
        %v2415 = vpack.c.b16 %v2376, %v2373
        %v2416 = vpack.c.b16 %v2380, %v2377
        %v2417 = vpack.c.b16 %v2381, %v2378
        %v2418 = vpack.c.b16 %v2382, %v2379
        %v2419 = vpack.c.b16 %v2386, %v2383
        %v2420 = vpack.c.b16 %v2387, %v2384
        %v2421 = vpack.c.b16 %v2388, %v2385
        %v2422 = vpack.c.b16 %v2392, %v2389
        %v2423 = vpack.c.b16 %v2393, %v2390
        %v2424 = vpack.c.b16 %v2394, %v2391
        %v2425 = vpack.c.b16 %v2398, %v2395
        %v2426 = vpack.c.b16 %v2399, %v2396
        %v2427 = vpack.c.b16 %v2400, %v2397
        %v2428 = vpack.c.b16 %v2404, %v2401
        %v2429 = vpack.c.b16 %v2405, %v2402
        %v2430 = vpack.c.b16 %v2406, %v2403
        %2455 = vmatprep.subr.bf16.mxu0 %v2408
        %2456 = vmatpush1.bf16.msra.mxu0 %v2407
        %2457 = vmatprep.subr.bf16.mxu0 %v2411
        %2458 = vmatpush1.bf16.msra.mxu0 %v2410
        %2459 = vmatprep.subr.bf16.mxu0 %v2414
        %2460 = vmatpush1.bf16.msra.mxu0 %v2413
        %2461 = vmatprep.subr.bf16.mxu0 %v2417
        %2462 = vmatpush1.bf16.msra.mxu0 %v2416
        %2463 = vmatprep.subr.bf16.mxu0 %v2420
        %2464 = vmatpush1.bf16.msra.mxu0 %v2419
        %2465 = vmatprep.subr.bf16.mxu0 %v2423
        %2466 = vmatpush1.bf16.msra.mxu0 %v2422
        %2467 = vmatprep.subr.bf16.mxu0 %v2426
        %2468 = vmatpush1.bf16.msra.mxu0 %v2425
        %2469 = vmatprep.subr.bf16.mxu0 %v2429
        %2470 = vmatpush1.bf16.msra.mxu0 %v2428
        %2471 = vmatprep.subr.bf16.mxu0 0
        %2472 = vmatpush1.bf16.msra.mxu0 0
        %2473 = vmatprep.subr.bf16.mxu0 0
        %2474 = vmatpush1.bf16.msra.mxu0 0
        %2475 = vmatprep.subr.bf16.mxu0 0
        %2476 = vmatpush1.bf16.msra.mxu0 0
        %2477 = vmatprep.subr.bf16.mxu0 0
        %2478 = vmatpush1.bf16.msra.mxu0 0
        %2479 = vmatprep.subr.bf16.mxu0 0
        %2480 = vmatpush1.bf16.msra.mxu0 0
        %2481 = vmatprep.subr.bf16.mxu0 0
        %2482 = vmatpush1.bf16.msra.mxu0 0
        %2483 = vmatprep.subr.bf16.mxu0 0
        %2484 = vmatpush1.bf16.msra.mxu0 0
        %2485 = vmatprep.subr.bf16.mxu0 0
        %2486 = vmatpush1.bf16.msra.mxu0 0
        %2487 = vmatprep.mubr.bf16.mxu0 0
        %2488 = vmatmul.mubr.bf16.gmra.mrb[0].mxu0 %v2262
        %v2489 = vpop.f32.mrb[0].mxu0
        %v2490 = vadd.f32 %v2315, %v2489
        %v2491 = vpop.f32.mrb[0].mxu0
        %v2492 = vadd.f32 %v2319, %v2491
        %v2493 = vpop.f32.mrb[0].mxu0
        %v2494 = vadd.f32 %v2315, %v2493
        %v2495 = vpop.f32.mrb[0].mxu0
        %v2496 = vadd.f32 %v2319, %v2495
        %2497 = vmatprep.mubr.bf16.mxu0 0
        %2498 = vmatmul.mubr.bf16.gmra.mrb[0].mxu0 %v2263
        %v2499 = vpop.f32.mrb[0].mxu0
        %v2500 = vadd.f32 %v2315, %v2499
        %v2501 = vpop.f32.mrb[0].mxu0
        %v2502 = vadd.f32 %v2319, %v2501
        %v2503 = vpop.f32.mrb[0].mxu0
        %v2504 = vadd.f32 %v2315, %v2503
        %v2505 = vpop.f32.mrb[0].mxu0
        %v2506 = vadd.f32 %v2319, %v2505
        %2507 = vmatprep.mubr.bf16.mxu0 0
        %2508 = vmatmul.mubr.bf16.gmra.mrb[0].mxu0 %v2264
        %v2509 = vpop.f32.mrb[0].mxu0
        %v2510 = vadd.f32 %v2315, %v2509
        %v2511 = vpop.f32.mrb[0].mxu0
        %v2512 = vadd.f32 %v2319, %v2511
        %v2513 = vpop.f32.mrb[0].mxu0
        %v2514 = vadd.f32 %v2315, %v2513
        %v2515 = vpop.f32.mrb[0].mxu0
        %v2516 = vadd.f32 %v2319, %v2515
        %2517 = vmatprep.mubr.bf16.mxu0 0
        %2518 = vmatmul.mubr.bf16.gmra.mrb[0].mxu0 %v2265
        %v2519 = vpop.f32.mrb[0].mxu0
        %v2520 = vadd.f32 %v2315, %v2519
        %v2521 = vpop.f32.mrb[0].mxu0
        %v2522 = vadd.f32 %v2319, %v2521
        %v2523 = vpop.f32.mrb[0].mxu0
        %v2524 = vadd.f32 %v2315, %v2523
        %v2525 = vpop.f32.mrb[0].mxu0
        %v2526 = vadd.f32 %v2319, %v2525
        %2527 = vmatprep.mubr.bf16.mxu0 0
        %2528 = vmatmul.mubr.bf16.gmra.mrb[0].mxu0 %v2266
        %v2529 = vpop.f32.mrb[0].mxu0
        %v2530 = vadd.f32 %v2315, %v2529
        %v2531 = vpop.f32.mrb[0].mxu0
        %v2532 = vadd.f32 %v2319, %v2531
        %v2533 = vpop.f32.mrb[0].mxu0
        %v2534 = vadd.f32 %v2315, %v2533
        %v2535 = vpop.f32.mrb[0].mxu0
        %v2536 = vadd.f32 %v2319, %v2535
        %2537 = vmatprep.mubr.bf16.mxu0 0
        %2538 = vmatmul.mubr.bf16.gmra.mrb[0].mxu0 %v2267
        %v2539 = vpop.f32.mrb[0].mxu0
        %v2540 = vadd.f32 %v2315, %v2539
        %v2541 = vpop.f32.mrb[0].mxu0
        %v2542 = vadd.f32 %v2319, %v2541
        %v2543 = vpop.f32.mrb[0].mxu0
        %v2544 = vadd.f32 %v2315, %v2543
        %v2545 = vpop.f32.mrb[0].mxu0
        %v2546 = vadd.f32 %v2319, %v2545
        %2547 = vmatprep.mubr.bf16.mxu0 0
        %2548 = vmatmul.mubr.bf16.gmra.mrb[0].mxu0 %v2268
        %v2549 = vpop.f32.mrb[0].mxu0
        %v2550 = vadd.f32 %v2315, %v2549
        %v2551 = vpop.f32.mrb[0].mxu0
        %v2552 = vadd.f32 %v2319, %v2551
        %v2553 = vpop.f32.mrb[0].mxu0
        %v2554 = vadd.f32 %v2315, %v2553
        %v2555 = vpop.f32.mrb[0].mxu0
        %v2556 = vadd.f32 %v2319, %v2555
        %2557 = vmatprep.mubr.bf16.mxu0 0
        %2558 = vmatmul.mubr.bf16.gmra.mrb[0].mxu0 %v2269
        %v2559 = vpop.f32.mrb[0].mxu0
        %v2560 = vadd.f32 %v2315, %v2559
        %v2561 = vpop.f32.mrb[0].mxu0
        %v2562 = vadd.f32 %v2319, %v2561
        %v2563 = vpop.f32.mrb[0].mxu0
        %v2564 = vadd.f32 %v2315, %v2563
        %v2565 = vpop.f32.mrb[0].mxu0
        %v2566 = vadd.f32 %v2319, %v2565
        %2567 = vmatprep.mubr.bf16.mxu0 0
        %2568 = vmatmul.mubr.bf16.gmra.mrb[0].mxu0 %v2270
        %v2569 = vpop.f32.mrb[0].mxu0
        %v2570 = vadd.f32 %v2315, %v2569
        %v2571 = vpop.f32.mrb[0].mxu0
        %v2572 = vadd.f32 %v2319, %v2571
        %v2573 = vpop.f32.mrb[0].mxu0
        %v2574 = vadd.f32 %v2315, %v2573
        %v2575 = vpop.f32.mrb[0].mxu0
        %v2576 = vadd.f32 %v2319, %v2575
        %2577 = vmatprep.mubr.bf16.mxu0 0
        %2578 = vmatmul.mubr.bf16.gmra.mrb[0].mxu0 %v2271
        %v2579 = vpop.f32.mrb[0].mxu0
        %v2580 = vadd.f32 %v2315, %v2579
        %v2581 = vpop.f32.mrb[0].mxu0
        %v2582 = vadd.f32 %v2319, %v2581
        %v2583 = vpop.f32.mrb[0].mxu0
        %v2584 = vadd.f32 %v2315, %v2583
        %v2585 = vpop.f32.mrb[0].mxu0
        %v2586 = vadd.f32 %v2319, %v2585
        %2587 = vmatprep.mubr.bf16.mxu0 0
        %2588 = vmatmul.mubr.bf16.gmra.mrb[0].mxu0 %v2272
        %v2589 = vpop.f32.mrb[0].mxu0
        %v2590 = vadd.f32 %v2315, %v2589
        %v2591 = vpop.f32.mrb[0].mxu0
        %v2592 = vadd.f32 %v2319, %v2591
        %v2593 = vpop.f32.mrb[0].mxu0
        %v2594 = vadd.f32 %v2315, %v2593
        %v2595 = vpop.f32.mrb[0].mxu0
        %v2596 = vadd.f32 %v2319, %v2595
        %2597 = vmatprep.mubr.bf16.mxu0 0
        %2598 = vmatmul.mubr.bf16.gmra.mrb[0].mxu0 %v2273
        %v2599 = vpop.f32.mrb[0].mxu0
        %v2600 = vadd.f32 %v2315, %v2599
        %v2601 = vpop.f32.mrb[0].mxu0
        %v2602 = vadd.f32 %v2319, %v2601
        %v2603 = vpop.f32.mrb[0].mxu0
        %v2604 = vadd.f32 %v2315, %v2603
        %v2605 = vpop.f32.mrb[0].mxu0
        %v2606 = vadd.f32 %v2319, %v2605
        %2607 = vmatprep.mubr.bf16.mxu0 0
        %2608 = vmatmul.mubr.bf16.gmra.mrb[0].mxu0 %v2274
        %v2609 = vpop.f32.mrb[0].mxu0
        %v2610 = vadd.f32 %v2315, %v2609
        %v2611 = vpop.f32.mrb[0].mxu0
        %v2612 = vadd.f32 %v2319, %v2611
        %v2613 = vpop.f32.mrb[0].mxu0
        %v2614 = vadd.f32 %v2315, %v2613
        %v2615 = vpop.f32.mrb[0].mxu0
        %v2616 = vadd.f32 %v2319, %v2615
        %2617 = vmatprep.mubr.bf16.mxu0 0
        %2618 = vmatmul.mubr.bf16.gmra.mrb[0].mxu0 %v2275
        %v2619 = vpop.f32.mrb[0].mxu0
        %v2620 = vadd.f32 %v2315, %v2619
        %v2621 = vpop.f32.mrb[0].mxu0
        %v2622 = vadd.f32 %v2319, %v2621
        %v2623 = vpop.f32.mrb[0].mxu0
        %v2624 = vadd.f32 %v2315, %v2623
        %v2625 = vpop.f32.mrb[0].mxu0
        %v2626 = vadd.f32 %v2319, %v2625
        %2627 = vmatprep.mubr.bf16.mxu0 0
        %2628 = vmatmul.mubr.bf16.gmra.mrb[0].mxu0 %v2276
        %v2629 = vpop.f32.mrb[0].mxu0
        %v2630 = vadd.f32 %v2315, %v2629
        %v2631 = vpop.f32.mrb[0].mxu0
        %v2632 = vadd.f32 %v2319, %v2631
        %v2633 = vpop.f32.mrb[0].mxu0
        %v2634 = vadd.f32 %v2315, %v2633
        %v2635 = vpop.f32.mrb[0].mxu0
        %v2636 = vadd.f32 %v2319, %v2635
        %2637 = vmatprep.mubr.bf16.mxu0 0
        %2638 = vmatmul.mubr.bf16.gmra.mrb[0].mxu0 %v2277
        %v2639 = vpop.f32.mrb[0].mxu0
        %v2640 = vadd.f32 %v2315, %v2639
        %v2641 = vpop.f32.mrb[0].mxu0
        %v2642 = vadd.f32 %v2319, %v2641
        %v2643 = vpop.f32.mrb[0].mxu0
        %v2644 = vadd.f32 %v2315, %v2643
        %v2645 = vpop.f32.mrb[0].mxu0
        %v2646 = vadd.f32 %v2319, %v2645
        %2647 = vdwg.mxu0
        %2648 = vmatprep.subr.bf16.mxu0 0
        %2649 = vmatpush1.bf16.msra.mxu0 %v2409
        %2650 = vmatprep.subr.bf16.mxu0 0
        %2651 = vmatpush1.bf16.msra.mxu0 %v2412
        %2652 = vmatprep.subr.bf16.mxu0 0
        %2653 = vmatpush1.bf16.msra.mxu0 %v2415
        %2654 = vmatprep.subr.bf16.mxu0 0
        %2655 = vmatpush1.bf16.msra.mxu0 %v2418
        %2656 = vmatprep.subr.bf16.mxu0 0
        %2657 = vmatpush1.bf16.msra.mxu0 %v2421
        %2658 = vmatprep.subr.bf16.mxu0 0
        %2659 = vmatpush1.bf16.msra.mxu0 %v2424
        %2660 = vmatprep.subr.bf16.mxu0 0
        %2661 = vmatpush1.bf16.msra.mxu0 %v2427
        %2662 = vmatprep.subr.bf16.mxu0 0
        %2663 = vmatpush1.bf16.msra.mxu0 %v2430
        %2664 = vmatprep.subr.bf16.mxu0 0
        %2665 = vmatpush1.bf16.msra.mxu0 0
        %2666 = vmatprep.subr.bf16.mxu0 0
        %2667 = vmatpush1.bf16.msra.mxu0 0
        %2668 = vmatprep.subr.bf16.mxu0 0
        %2669 = vmatpush1.bf16.msra.mxu0 0
        %2670 = vmatprep.subr.bf16.mxu0 0
        %2671 = vmatpush1.bf16.msra.mxu0 0
        %2672 = vmatprep.subr.bf16.mxu0 0
        %2673 = vmatpush1.bf16.msra.mxu0 0
        %2674 = vmatprep.subr.bf16.mxu0 0
        %2675 = vmatpush1.bf16.msra.mxu0 0
        %2676 = vmatprep.subr.bf16.mxu0 0
        %2677 = vmatpush1.bf16.msra.mxu0 0
        %2678 = vmatprep.subr.bf16.mxu0 0
        %2679 = vmatpush1.bf16.msra.mxu0 0
        %2680 = vmatprep.mubr.bf16.mxu0 0
        %2681 = vmatmul.mubr.bf16.gmra.mrb[0].mxu0 %v2262
        %v2682 = vpop.f32.mrb[0].mxu0
        %v2683 = vadd.f32 %v2323, %v2682
        %v2684 = vpop.f32.mrb[0].mxu0
        %v2685 = vpop.f32.mrb[0].mxu0
        %v2686 = vadd.f32 %v2323, %v2685
        %v2687 = vpop.f32.mrb[0].mxu0
        %2688 = vmatprep.mubr.bf16.mxu0 0
        %2689 = vmatmul.mubr.bf16.gmra.mrb[0].mxu0 %v2263
        %v2690 = vpop.f32.mrb[0].mxu0
        %v2691 = vadd.f32 %v2323, %v2690
        %v2692 = vpop.f32.mrb[0].mxu0
        %v2693 = vpop.f32.mrb[0].mxu0
        %v2694 = vadd.f32 %v2323, %v2693
        %v2695 = vpop.f32.mrb[0].mxu0
        %2696 = vmatprep.mubr.bf16.mxu0 0
        %2697 = vmatmul.mubr.bf16.gmra.mrb[0].mxu0 %v2264
        %v2698 = vpop.f32.mrb[0].mxu0
        %v2699 = vadd.f32 %v2323, %v2698
        %v2700 = vpop.f32.mrb[0].mxu0
        %v2701 = vpop.f32.mrb[0].mxu0
        %v2702 = vadd.f32 %v2323, %v2701
        %v2703 = vpop.f32.mrb[0].mxu0
        %2704 = vmatprep.mubr.bf16.mxu0 0
        %2705 = vmatmul.mubr.bf16.gmra.mrb[0].mxu0 %v2265
        %v2706 = vpop.f32.mrb[0].mxu0
        %v2707 = vadd.f32 %v2323, %v2706
        %v2708 = vpop.f32.mrb[0].mxu0
        %v2709 = vpop.f32.mrb[0].mxu0
        %v2710 = vadd.f32 %v2323, %v2709
        %v2711 = vpop.f32.mrb[0].mxu0
        %2712 = vmatprep.mubr.bf16.mxu0 0
        %2713 = vmatmul.mubr.bf16.gmra.mrb[0].mxu0 %v2266
        %v2714 = vpop.f32.mrb[0].mxu0
        %v2715 = vadd.f32 %v2323, %v2714
        %v2716 = vpop.f32.mrb[0].mxu0
        %v2717 = vpop.f32.mrb[0].mxu0
        %v2718 = vadd.f32 %v2323, %v2717
        %v2719 = vpop.f32.mrb[0].mxu0
        %2720 = vmatprep.mubr.bf16.mxu0 0
        %2721 = vmatmul.mubr.bf16.gmra.mrb[0].mxu0 %v2267
        %v2722 = vpop.f32.mrb[0].mxu0
        %v2723 = vadd.f32 %v2323, %v2722
        %v2724 = vpop.f32.mrb[0].mxu0
        %v2725 = vpop.f32.mrb[0].mxu0
        %v2726 = vadd.f32 %v2323, %v2725
        %v2727 = vpop.f32.mrb[0].mxu0
        %2728 = vmatprep.mubr.bf16.mxu0 0
        %2729 = vmatmul.mubr.bf16.gmra.mrb[0].mxu0 %v2268
        %v2730 = vpop.f32.mrb[0].mxu0
        %v2731 = vadd.f32 %v2323, %v2730
        %v2732 = vpop.f32.mrb[0].mxu0
        %v2733 = vpop.f32.mrb[0].mxu0
        %v2734 = vadd.f32 %v2323, %v2733
        %v2735 = vpop.f32.mrb[0].mxu0
        %2736 = vmatprep.mubr.bf16.mxu0 0
        %2737 = vmatmul.mubr.bf16.gmra.mrb[0].mxu0 %v2269
        %v2738 = vpop.f32.mrb[0].mxu0
        %v2739 = vadd.f32 %v2323, %v2738
        %v2740 = vpop.f32.mrb[0].mxu0
        %v2741 = vpop.f32.mrb[0].mxu0
        %v2742 = vadd.f32 %v2323, %v2741
        %v2743 = vpop.f32.mrb[0].mxu0
        %2744 = vmatprep.mubr.bf16.mxu0 0
        %2745 = vmatmul.mubr.bf16.gmra.mrb[0].mxu0 %v2270
        %v2746 = vpop.f32.mrb[0].mxu0
        %v2747 = vadd.f32 %v2323, %v2746
        %v2748 = vpop.f32.mrb[0].mxu0
        %v2749 = vpop.f32.mrb[0].mxu0
        %v2750 = vadd.f32 %v2323, %v2749
        %v2751 = vpop.f32.mrb[0].mxu0
        %2752 = vmatprep.mubr.bf16.mxu0 0
        %2753 = vmatmul.mubr.bf16.gmra.mrb[0].mxu0 %v2271
        %v2754 = vpop.f32.mrb[0].mxu0
        %v2755 = vadd.f32 %v2323, %v2754
        %v2756 = vpop.f32.mrb[0].mxu0
        %v2757 = vpop.f32.mrb[0].mxu0
        %v2758 = vadd.f32 %v2323, %v2757
        %v2759 = vpop.f32.mrb[0].mxu0
        %2760 = vmatprep.mubr.bf16.mxu0 0
        %2761 = vmatmul.mubr.bf16.gmra.mrb[0].mxu0 %v2272
        %v2762 = vpop.f32.mrb[0].mxu0
        %v2763 = vadd.f32 %v2323, %v2762
        %v2764 = vpop.f32.mrb[0].mxu0
        %v2765 = vpop.f32.mrb[0].mxu0
        %v2766 = vadd.f32 %v2323, %v2765
        %v2767 = vpop.f32.mrb[0].mxu0
        %2768 = vmatprep.mubr.bf16.mxu0 0
        %2769 = vmatmul.mubr.bf16.gmra.mrb[0].mxu0 %v2273
        %v2770 = vpop.f32.mrb[0].mxu0
        %v2771 = vadd.f32 %v2323, %v2770
        %v2772 = vpop.f32.mrb[0].mxu0
        %v2773 = vpop.f32.mrb[0].mxu0
        %v2774 = vadd.f32 %v2323, %v2773
        %v2775 = vpop.f32.mrb[0].mxu0
        %2776 = vmatprep.mubr.bf16.mxu0 0
        %2777 = vmatmul.mubr.bf16.gmra.mrb[0].mxu0 %v2274
        %v2778 = vpop.f32.mrb[0].mxu0
        %v2779 = vadd.f32 %v2323, %v2778
        %v2780 = vpop.f32.mrb[0].mxu0
        %v2781 = vpop.f32.mrb[0].mxu0
        %v2782 = vadd.f32 %v2323, %v2781
        %v2783 = vpop.f32.mrb[0].mxu0
        %2784 = vmatprep.mubr.bf16.mxu0 0
        %2785 = vmatmul.mubr.bf16.gmra.mrb[0].mxu0 %v2275
        %v2786 = vpop.f32.mrb[0].mxu0
        %v2787 = vadd.f32 %v2323, %v2786
        %v2788 = vpop.f32.mrb[0].mxu0
        %v2789 = vpop.f32.mrb[0].mxu0
        %v2790 = vadd.f32 %v2323, %v2789
        %v2791 = vpop.f32.mrb[0].mxu0
        %2792 = vmatprep.mubr.bf16.mxu0 0
        %2793 = vmatmul.mubr.bf16.gmra.mrb[0].mxu0 %v2276
        %v2794 = vpop.f32.mrb[0].mxu0
        %v2795 = vadd.f32 %v2323, %v2794
        %v2796 = vpop.f32.mrb[0].mxu0
        %v2797 = vpop.f32.mrb[0].mxu0
        %v2798 = vadd.f32 %v2323, %v2797
        %v2799 = vpop.f32.mrb[0].mxu0
        %2800 = vmatprep.mubr.bf16.mxu0 0
        %2801 = vmatmul.mubr.bf16.gmra.mrb[0].mxu0 %v2277
        %v2802 = vpop.f32.mrb[0].mxu0
        %v2803 = vadd.f32 %v2323, %v2802
        %v2804 = vpop.f32.mrb[0].mxu0
        %v2805 = vpop.f32.mrb[0].mxu0
        %v2806 = vadd.f32 %v2323, %v2805
        %v2807 = vpop.f32.mrb[0].mxu0
        %2808 = vdwg.mxu0
        %v2809 = vxor.u32 %v2492, 2147483648
        %v2810 = vxor.u32 %v2496, 2147483648
        %v2811 = vxor.u32 %v2502, 2147483648
        %v2812 = vxor.u32 %v2506, 2147483648
        %v2813 = vxor.u32 %v2512, 2147483648
        %v2814 = vxor.u32 %v2516, 2147483648
        %v2815 = vxor.u32 %v2522, 2147483648
        %v2816 = vxor.u32 %v2526, 2147483648
        %v2817 = vxor.u32 %v2532, 2147483648
        %v2818 = vxor.u32 %v2536, 2147483648
        %v2819 = vxor.u32 %v2542, 2147483648
        %v2820 = vxor.u32 %v2546, 2147483648
        %v2821 = vxor.u32 %v2552, 2147483648
        %v2822 = vxor.u32 %v2556, 2147483648
        %v2823 = vxor.u32 %v2562, 2147483648
        %v2824 = vxor.u32 %v2566, 2147483648
        %v2825 = vxor.u32 %v2572, 2147483648
        %v2826 = vxor.u32 %v2576, 2147483648
        %v2827 = vxor.u32 %v2582, 2147483648
        %v2828 = vxor.u32 %v2586, 2147483648
        %v2829 = vxor.u32 %v2592, 2147483648
        %v2830 = vxor.u32 %v2596, 2147483648
        %v2831 = vxor.u32 %v2602, 2147483648
        %v2832 = vxor.u32 %v2606, 2147483648
        %v2833 = vxor.u32 %v2612, 2147483648
        %v2834 = vxor.u32 %v2616, 2147483648
        %v2835 = vxor.u32 %v2622, 2147483648
        %v2836 = vxor.u32 %v2626, 2147483648
        %v2837 = vxor.u32 %v2632, 2147483648
        %v2838 = vxor.u32 %v2636, 2147483648
        %v2839 = vxor.u32 %v2642, 2147483648
        %v2840 = vxor.u32 %v2646, 2147483648
        %v2841 = vmul.f32 %v2809, 1.442695
        %v2842 = vpow.pop %v2841
        %v2843 = vmul.f32 %v2810, 1.442695
        %v2844 = vpow.pop %v2843
        %v2845 = vmul.f32 %v2811, 1.442695
        %v2846 = vpow.pop %v2845
        %v2847 = vmul.f32 %v2812, 1.442695
        %v2848 = vpow.pop %v2847
        %v2849 = vmul.f32 %v2813, 1.442695
        %v2850 = vpow.pop %v2849
        %v2851 = vmul.f32 %v2814, 1.442695
        %v2852 = vpow.pop %v2851
        %v2853 = vmul.f32 %v2815, 1.442695
        %v2854 = vpow.pop %v2853
        %v2855 = vmul.f32 %v2816, 1.442695
        %v2856 = vpow.pop %v2855
        %v2857 = vmul.f32 %v2817, 1.442695
        %v2858 = vpow.pop %v2857
        %v2859 = vmul.f32 %v2818, 1.442695
        %v2860 = vpow.pop %v2859
        %v2861 = vmul.f32 %v2819, 1.442695
        %v2862 = vpow.pop %v2861
        %v2863 = vmul.f32 %v2820, 1.442695
        %v2864 = vpow.pop %v2863
        %v2865 = vmul.f32 %v2821, 1.442695
        %v2866 = vpow.pop %v2865
        %v2867 = vmul.f32 %v2822, 1.442695
        %v2868 = vpow.pop %v2867
        %v2869 = vmul.f32 %v2823, 1.442695
        %v2870 = vpow.pop %v2869
        %v2871 = vmul.f32 %v2824, 1.442695
        %v2872 = vpow.pop %v2871
        %v2873 = vmul.f32 %v2825, 1.442695
        %v2874 = vpow.pop %v2873
        %v2875 = vmul.f32 %v2826, 1.442695
        %v2876 = vpow.pop %v2875
        %v2877 = vmul.f32 %v2827, 1.442695
        %v2878 = vpow.pop %v2877
        %v2879 = vmul.f32 %v2828, 1.442695
        %v2880 = vpow.pop %v2879
        %v2881 = vmul.f32 %v2829, 1.442695
        %v2882 = vpow.pop %v2881
        %v2883 = vmul.f32 %v2830, 1.442695
        %v2884 = vpow.pop %v2883
        %v2885 = vmul.f32 %v2831, 1.442695
        %v2886 = vpow.pop %v2885
        %v2887 = vmul.f32 %v2832, 1.442695
        %v2888 = vpow.pop %v2887
        %v2889 = vmul.f32 %v2833, 1.442695
        %v2890 = vpow.pop %v2889
        %v2891 = vmul.f32 %v2834, 1.442695
        %v2892 = vpow.pop %v2891
        %v2893 = vmul.f32 %v2835, 1.442695
        %v2894 = vpow.pop %v2893
        %v2895 = vmul.f32 %v2836, 1.442695
        %v2896 = vpow.pop %v2895
        %v2897 = vmul.f32 %v2837, 1.442695
        %v2898 = vpow.pop %v2897
        %v2899 = vmul.f32 %v2838, 1.442695
        %v2900 = vpow.pop %v2899
        %v2901 = vmul.f32 %v2839, 1.442695
        %v2902 = vpow.pop %v2901
        %v2903 = vmul.f32 %v2840, 1.442695
        %v2904 = vpow.pop %v2903
        %v2905 = vadd.f32 %v2842, 1.0
        %v2906 = vadd.f32 %v2844, 1.0
        %v2907 = vadd.f32 %v2846, 1.0
        %v2908 = vadd.f32 %v2848, 1.0
        %v2909 = vadd.f32 %v2850, 1.0
        %v2910 = vadd.f32 %v2852, 1.0
        %v2911 = vadd.f32 %v2854, 1.0
        %v2912 = vadd.f32 %v2856, 1.0
        %v2913 = vadd.f32 %v2858, 1.0
        %v2914 = vadd.f32 %v2860, 1.0
        %v2915 = vadd.f32 %v2862, 1.0
        %v2916 = vadd.f32 %v2864, 1.0
        %v2917 = vadd.f32 %v2866, 1.0
        %v2918 = vadd.f32 %v2868, 1.0
        %v2919 = vadd.f32 %v2870, 1.0
        %v2920 = vadd.f32 %v2872, 1.0
        %v2921 = vadd.f32 %v2874, 1.0
        %v2922 = vadd.f32 %v2876, 1.0
        %v2923 = vadd.f32 %v2878, 1.0
        %v2924 = vadd.f32 %v2880, 1.0
        %v2925 = vadd.f32 %v2882, 1.0
        %v2926 = vadd.f32 %v2884, 1.0
        %v2927 = vadd.f32 %v2886, 1.0
        %v2928 = vadd.f32 %v2888, 1.0
        %v2929 = vadd.f32 %v2890, 1.0
        %v2930 = vadd.f32 %v2892, 1.0
        %v2931 = vadd.f32 %v2894, 1.0
        %v2932 = vadd.f32 %v2896, 1.0
        %v2933 = vadd.f32 %v2898, 1.0
        %v2934 = vadd.f32 %v2900, 1.0
        %v2935 = vadd.f32 %v2902, 1.0
        %v2936 = vadd.f32 %v2904, 1.0
        %v2937 = vrcp.pop %v2905
        %v2938 = vmul.f32 1.0, %v2937
        %v2939 = vrcp.pop %v2906
        %v2940 = vmul.f32 1.0, %v2939
        %v2941 = vrcp.pop %v2907
        %v2942 = vmul.f32 1.0, %v2941
        %v2943 = vrcp.pop %v2908
        %v2944 = vmul.f32 1.0, %v2943
        %v2945 = vrcp.pop %v2909
        %v2946 = vmul.f32 1.0, %v2945
        %v2947 = vrcp.pop %v2910
        %v2948 = vmul.f32 1.0, %v2947
        %v2949 = vrcp.pop %v2911
        %v2950 = vmul.f32 1.0, %v2949
        %v2951 = vrcp.pop %v2912
        %v2952 = vmul.f32 1.0, %v2951
        %v2953 = vrcp.pop %v2913
        %v2954 = vmul.f32 1.0, %v2953
        %v2955 = vrcp.pop %v2914
        %v2956 = vmul.f32 1.0, %v2955
        %v2957 = vrcp.pop %v2915
        %v2958 = vmul.f32 1.0, %v2957
        %v2959 = vrcp.pop %v2916
        %v2960 = vmul.f32 1.0, %v2959
        %v2961 = vrcp.pop %v2917
        %v2962 = vmul.f32 1.0, %v2961
        %v2963 = vrcp.pop %v2918
        %v2964 = vmul.f32 1.0, %v2963
        %v2965 = vrcp.pop %v2919
        %v2966 = vmul.f32 1.0, %v2965
        %v2967 = vrcp.pop %v2920
        %v2968 = vmul.f32 1.0, %v2967
        %v2969 = vrcp.pop %v2921
        %v2970 = vmul.f32 1.0, %v2969
        %v2971 = vrcp.pop %v2922
        %v2972 = vmul.f32 1.0, %v2971
        %v2973 = vrcp.pop %v2923
        %v2974 = vmul.f32 1.0, %v2973
        %v2975 = vrcp.pop %v2924
        %v2976 = vmul.f32 1.0, %v2975
        %v2977 = vrcp.pop %v2925
        %v2978 = vmul.f32 1.0, %v2977
        %v2979 = vrcp.pop %v2926
        %v2980 = vmul.f32 1.0, %v2979
        %v2981 = vrcp.pop %v2927
        %v2982 = vmul.f32 1.0, %v2981
        %v2983 = vrcp.pop %v2928
        %v2984 = vmul.f32 1.0, %v2983
        %v2985 = vrcp.pop %v2929
        %v2986 = vmul.f32 1.0, %v2985
        %v2987 = vrcp.pop %v2930
        %v2988 = vmul.f32 1.0, %v2987
        %v2989 = vrcp.pop %v2931
        %v2990 = vmul.f32 1.0, %v2989
        %v2991 = vrcp.pop %v2932
        %v2992 = vmul.f32 1.0, %v2991
        %v2993 = vrcp.pop %v2933
        %v2994 = vmul.f32 1.0, %v2993
        %v2995 = vrcp.pop %v2934
        %v2996 = vmul.f32 1.0, %v2995
        %v2997 = vrcp.pop %v2935
        %v2998 = vmul.f32 1.0, %v2997
        %v2999 = vrcp.pop %v2936
        %v3000 = vmul.f32 1.0, %v2999
        %v3001 = vmax.f32 %v2683, 0.0
        %v3002 = vmax.f32 %v2686, 0.0
        %v3003 = vmax.f32 %v2691, 0.0
        %v3004 = vmax.f32 %v2694, 0.0
        %v3005 = vmax.f32 %v2699, 0.0
        %v3006 = vmax.f32 %v2702, 0.0
        %v3007 = vmax.f32 %v2707, 0.0
        %v3008 = vmax.f32 %v2710, 0.0
        %v3009 = vmax.f32 %v2715, 0.0
        %v3010 = vmax.f32 %v2718, 0.0
        %v3011 = vmax.f32 %v2723, 0.0
        %v3012 = vmax.f32 %v2726, 0.0
        %v3013 = vmax.f32 %v2731, 0.0
        %v3014 = vmax.f32 %v2734, 0.0
        %v3015 = vmax.f32 %v2739, 0.0
        %v3016 = vmax.f32 %v2742, 0.0
        %v3017 = vmax.f32 %v2747, 0.0
        %v3018 = vmax.f32 %v2750, 0.0
        %v3019 = vmax.f32 %v2755, 0.0
        %v3020 = vmax.f32 %v2758, 0.0
        %v3021 = vmax.f32 %v2763, 0.0
        %v3022 = vmax.f32 %v2766, 0.0
        %v3023 = vmax.f32 %v2771, 0.0
        %v3024 = vmax.f32 %v2774, 0.0
        %v3025 = vmax.f32 %v2779, 0.0
        %v3026 = vmax.f32 %v2782, 0.0
        %v3027 = vmax.f32 %v2787, 0.0
        %v3028 = vmax.f32 %v2790, 0.0
        %v3029 = vmax.f32 %v2795, 0.0
        %v3030 = vmax.f32 %v2798, 0.0
        %v3031 = vmax.f32 %v2803, 0.0
        %v3032 = vmax.f32 %v2806, 0.0
        %v3033 = vsub.f32 %v3001, %v2490
        %v3034 = vsub.f32 %v3002, %v2494
        %v3035 = vsub.f32 %v3003, %v2500
        %v3036 = vsub.f32 %v3004, %v2504
        %v3037 = vsub.f32 %v3005, %v2510
        %v3038 = vsub.f32 %v3006, %v2514
        %v3039 = vsub.f32 %v3007, %v2520
        %v3040 = vsub.f32 %v3008, %v2524
        %v3041 = vsub.f32 %v3009, %v2530
        %v3042 = vsub.f32 %v3010, %v2534
        %v3043 = vsub.f32 %v3011, %v2540
        %v3044 = vsub.f32 %v3012, %v2544
        %v3045 = vsub.f32 %v3013, %v2550
        %v3046 = vsub.f32 %v3014, %v2554
        %v3047 = vsub.f32 %v3015, %v2560
        %v3048 = vsub.f32 %v3016, %v2564
        %v3049 = vsub.f32 %v3017, %v2570
        %v3050 = vsub.f32 %v3018, %v2574
        %v3051 = vsub.f32 %v3019, %v2580
        %v3052 = vsub.f32 %v3020, %v2584
        %v3053 = vsub.f32 %v3021, %v2590
        %v3054 = vsub.f32 %v3022, %v2594
        %v3055 = vsub.f32 %v3023, %v2600
        %v3056 = vsub.f32 %v3024, %v2604
        %v3057 = vsub.f32 %v3025, %v2610
        %v3058 = vsub.f32 %v3026, %v2614
        %v3059 = vsub.f32 %v3027, %v2620
        %v3060 = vsub.f32 %v3028, %v2624
        %v3061 = vsub.f32 %v3029, %v2630
        %v3062 = vsub.f32 %v3030, %v2634
        %v3063 = vsub.f32 %v3031, %v2640
        %v3064 = vsub.f32 %v3032, %v2644
        %v3065 = vmul.f32 %v2938, %v3033
        %v3066 = vmul.f32 %v2940, %v3034
        %v3067 = vmul.f32 %v2942, %v3035
        %v3068 = vmul.f32 %v2944, %v3036
        %v3069 = vmul.f32 %v2946, %v3037
        %v3070 = vmul.f32 %v2948, %v3038
        %v3071 = vmul.f32 %v2950, %v3039
        %v3072 = vmul.f32 %v2952, %v3040
        %v3073 = vmul.f32 %v2954, %v3041
        %v3074 = vmul.f32 %v2956, %v3042
        %v3075 = vmul.f32 %v2958, %v3043
        %v3076 = vmul.f32 %v2960, %v3044
        %v3077 = vmul.f32 %v2962, %v3045
        %v3078 = vmul.f32 %v2964, %v3046
        %v3079 = vmul.f32 %v2966, %v3047
        %v3080 = vmul.f32 %v2968, %v3048
        %v3081 = vmul.f32 %v2970, %v3049
        %v3082 = vmul.f32 %v2972, %v3050
        %v3083 = vmul.f32 %v2974, %v3051
        %v3084 = vmul.f32 %v2976, %v3052
        %v3085 = vmul.f32 %v2978, %v3053
        %v3086 = vmul.f32 %v2980, %v3054
        %v3087 = vmul.f32 %v2982, %v3055
        %v3088 = vmul.f32 %v2984, %v3056
        %v3089 = vmul.f32 %v2986, %v3057
        %v3090 = vmul.f32 %v2988, %v3058
        %v3091 = vmul.f32 %v2990, %v3059
        %v3092 = vmul.f32 %v2992, %v3060
        %v3093 = vmul.f32 %v2994, %v3061
        %v3094 = vmul.f32 %v2996, %v3062
        %v3095 = vmul.f32 %v2998, %v3063
        %v3096 = vmul.f32 %v3000, %v3064
        %v3097 = vadd.f32 %v2490, %v3065
        %v3098 = vadd.f32 %v2494, %v3066
        %v3099 = vadd.f32 %v2500, %v3067
        %v3100 = vadd.f32 %v2504, %v3068
        %v3101 = vadd.f32 %v2510, %v3069
        %v3102 = vadd.f32 %v2514, %v3070
        %v3103 = vadd.f32 %v2520, %v3071
        %v3104 = vadd.f32 %v2524, %v3072
        %v3105 = vadd.f32 %v2530, %v3073
        %v3106 = vadd.f32 %v2534, %v3074
        %v3107 = vadd.f32 %v2540, %v3075
        %v3108 = vadd.f32 %v2544, %v3076
        %v3109 = vadd.f32 %v2550, %v3077
        %v3110 = vadd.f32 %v2554, %v3078
        %v3111 = vadd.f32 %v2560, %v3079
        %v3112 = vadd.f32 %v2564, %v3080
        %v3113 = vadd.f32 %v2570, %v3081
        %v3114 = vadd.f32 %v2574, %v3082
        %v3115 = vadd.f32 %v2580, %v3083
        %v3116 = vadd.f32 %v2584, %v3084
        %v3117 = vadd.f32 %v2590, %v3085
        %v3118 = vadd.f32 %v2594, %v3086
        %v3119 = vadd.f32 %v2600, %v3087
        %v3120 = vadd.f32 %v2604, %v3088
        %v3121 = vadd.f32 %v2610, %v3089
        %v3122 = vadd.f32 %v2614, %v3090
        %v3123 = vadd.f32 %v2620, %v3091
        %v3124 = vadd.f32 %v2624, %v3092
        %v3125 = vadd.f32 %v2630, %v3093
        %v3126 = vadd.f32 %v2634, %v3094
        %v3127 = vadd.f32 %v2640, %v3095
        %v3128 = vadd.f32 %v2644, %v3096
        %v3129 = vpack.c.bf16 %v3098, %v3097
        %v3130 = vpack.c.bf16 %v3100, %v3099
        %v3131 = vpack.c.bf16 %v3102, %v3101
        %v3132 = vpack.c.bf16 %v3104, %v3103
        %v3133 = vpack.c.bf16 %v3106, %v3105
        %v3134 = vpack.c.bf16 %v3108, %v3107
        %v3135 = vpack.c.bf16 %v3110, %v3109
        %v3136 = vpack.c.bf16 %v3112, %v3111
        %v3137 = vpack.c.bf16 %v3114, %v3113
        %v3138 = vpack.c.bf16 %v3116, %v3115
        %v3139 = vpack.c.bf16 %v3118, %v3117
        %v3140 = vpack.c.bf16 %v3120, %v3119
        %v3141 = vpack.c.bf16 %v3122, %v3121
        %v3142 = vpack.c.bf16 %v3124, %v3123
        %v3143 = vpack.c.bf16 %v3126, %v3125
        %v3144 = vpack.c.bf16 %v3128, %v3127
        %v3145 = vld [vmem:[#allocation8] sm:$0xff]
        %v3146 = vld [vmem:[#allocation8 + $0x8] sm:$0xff]
        %v3147 = vld [vmem:[#allocation8 + $0x10] sm:$0xff]
        %v3148 = vld [vmem:[#allocation8 + $0x18] sm:$0xff]
        %v3149 = vld [vmem:[#allocation8 + $0x20] sm:$0xff]
        %v3150 = vld [vmem:[#allocation8 + $0x28] sm:$0xff]
        %v3151 = vld [vmem:[#allocation8 + $0x30] sm:$0xff]
        %v3152 = vld [vmem:[#allocation8 + $0x38] sm:$0xff]
        %v3153 = vld [vmem:[#allocation8 + $0x40] sm:$0xff]
        %v3154 = vld [vmem:[#allocation8 + $0x48] sm:$0xff]
        %v3155 = vld [vmem:[#allocation8 + $0x50] sm:$0xff]
        %v3156 = vld [vmem:[#allocation8 + $0x58] sm:$0xff]
        %v3157 = vld [vmem:[#allocation8 + $0x60] sm:$0xff]
        %v3158 = vld [vmem:[#allocation8 + $0x68] sm:$0xff]
        %v3159 = vld [vmem:[#allocation8 + $0x70] sm:$0xff]
        %v3160 = vld [vmem:[#allocation8 + $0x78] sm:$0xff]
        %v3161 = vld [vmem:[%s5] sm:$0x3]
        %v3163 = vlaneseq
        %v3164 = vshrl.u32 %v3163, 7
        %v3165 = vsub.s32 0, %v3164
        %v3166 = vrot.slane %v3161, %v3165
        %v3167 = vlaneseq
        %v3168 = vshrl.u32 %v3167, 7
        %v3169 = vsub.s32 1, %v3168
        %v3170 = vrot.slane %v3161, %v3169
        %v3189 = vunpack.c.l.b16 %v3145
        %v3190 = vunpack.c.h.b16 %v3145
        %v3191 = vunpack.c.l.b16 %v3146
        %v3192 = vunpack.c.h.b16 %v3146
        %v3193 = vunpack.c.l.b16 %v3147
        %v3194 = vunpack.c.h.b16 %v3147
        %v3195 = vunpack.c.l.b16 %v3148
        %v3196 = vunpack.c.h.b16 %v3148
        %v3197 = vunpack.c.l.b16 %v3149
        %v3198 = vunpack.c.h.b16 %v3149
        %v3199 = vunpack.c.l.b16 %v3150
        %v3200 = vunpack.c.h.b16 %v3150
        %v3201 = vunpack.c.l.b16 %v3151
        %v3202 = vunpack.c.h.b16 %v3151
        %v3203 = vunpack.c.l.b16 %v3152
        %v3204 = vunpack.c.h.b16 %v3152
        %v3205 = vunpack.c.l.b16 %v3153
        %v3206 = vunpack.c.h.b16 %v3153
        %v3207 = vunpack.c.l.b16 %v3154
        %v3208 = vunpack.c.h.b16 %v3154
        %v3209 = vunpack.c.l.b16 %v3155
        %v3210 = vunpack.c.h.b16 %v3155
        %v3211 = vunpack.c.l.b16 %v3156
        %v3212 = vunpack.c.h.b16 %v3156
        %v3213 = vunpack.c.l.b16 %v3157
        %v3214 = vunpack.c.h.b16 %v3157
        %v3215 = vunpack.c.l.b16 %v3158
        %v3216 = vunpack.c.h.b16 %v3158
        %v3217 = vunpack.c.l.b16 %v3159
        %v3218 = vunpack.c.h.b16 %v3159
        %v3219 = vunpack.c.l.b16 %v3160
        %v3220 = vunpack.c.h.b16 %v3160
        %v3221 = vpack.c.b16 %v3191, %v3189
        %v3222 = vpack.c.b16 %v3192, %v3190
        %v3223 = vpack.c.b16 %v3195, %v3193
        %v3224 = vpack.c.b16 %v3196, %v3194
        %v3225 = vpack.c.b16 %v3199, %v3197
        %v3226 = vpack.c.b16 %v3200, %v3198
        %v3227 = vpack.c.b16 %v3203, %v3201
        %v3228 = vpack.c.b16 %v3204, %v3202
        %v3229 = vpack.c.b16 %v3207, %v3205
        %v3230 = vpack.c.b16 %v3208, %v3206
        %v3231 = vpack.c.b16 %v3211, %v3209
        %v3232 = vpack.c.b16 %v3212, %v3210
        %v3233 = vpack.c.b16 %v3215, %v3213
        %v3234 = vpack.c.b16 %v3216, %v3214
        %v3235 = vpack.c.b16 %v3219, %v3217
        %v3236 = vpack.c.b16 %v3220, %v3218
        %3253 = vmatprep.subr.bf16.mxu0 %v3222
        %3254 = vmatpush1.bf16.msra.mxu0 %v3221
        %3255 = vmatprep.subr.bf16.mxu0 %v3224
        %3256 = vmatpush1.bf16.msra.mxu0 %v3223
        %3257 = vmatprep.subr.bf16.mxu0 %v3226
        %3258 = vmatpush1.bf16.msra.mxu0 %v3225
        %3259 = vmatprep.subr.bf16.mxu0 %v3228
        %3260 = vmatpush1.bf16.msra.mxu0 %v3227
        %3261 = vmatprep.subr.bf16.mxu0 %v3230
        %3262 = vmatpush1.bf16.msra.mxu0 %v3229
        %3263 = vmatprep.subr.bf16.mxu0 %v3232
        %3264 = vmatpush1.bf16.msra.mxu0 %v3231
        %3265 = vmatprep.subr.bf16.mxu0 %v3234
        %3266 = vmatpush1.bf16.msra.mxu0 %v3233
        %3267 = vmatprep.subr.bf16.mxu0 %v3236
        %3268 = vmatpush1.bf16.msra.mxu0 %v3235
        %3269 = vmatprep.subr.bf16.mxu0 0
        %3270 = vmatpush1.bf16.msra.mxu0 0
        %3271 = vmatprep.subr.bf16.mxu0 0
        %3272 = vmatpush1.bf16.msra.mxu0 0
        %3273 = vmatprep.subr.bf16.mxu0 0
        %3274 = vmatpush1.bf16.msra.mxu0 0
        %3275 = vmatprep.subr.bf16.mxu0 0
        %3276 = vmatpush1.bf16.msra.mxu0 0
        %3277 = vmatprep.subr.bf16.mxu0 0
        %3278 = vmatpush1.bf16.msra.mxu0 0
        %3279 = vmatprep.subr.bf16.mxu0 0
        %3280 = vmatpush1.bf16.msra.mxu0 0
        %3281 = vmatprep.subr.bf16.mxu0 0
        %3282 = vmatpush1.bf16.msra.mxu0 0
        %3283 = vmatprep.subr.bf16.mxu0 0
        %3284 = vmatpush1.bf16.msra.mxu0 0
        %3285 = vmatprep.mubr.bf16.mxu0 0
        %3286 = vmatmul.mubr.bf16.gmra.mrb[0].mxu0 %v3129
        %v3287 = vpop.f32.mrb[0].mxu0
        %v3288 = vadd.f32 %v3166, %v3287
        %v3289 = vpop.f32.mrb[0].mxu0
        %v3290 = vadd.f32 %v3170, %v3289
        %v3291 = vpop.f32.mrb[0].mxu0
        %v3292 = vadd.f32 %v3166, %v3291
        %v3293 = vpop.f32.mrb[0].mxu0
        %v3294 = vadd.f32 %v3170, %v3293
        %3295 = vmatprep.mubr.bf16.mxu0 0
        %3296 = vmatmul.mubr.bf16.gmra.mrb[0].mxu0 %v3130
        %v3297 = vpop.f32.mrb[0].mxu0
        %v3298 = vadd.f32 %v3166, %v3297
        %v3299 = vpop.f32.mrb[0].mxu0
        %v3300 = vadd.f32 %v3170, %v3299
        %v3301 = vpop.f32.mrb[0].mxu0
        %v3302 = vadd.f32 %v3166, %v3301
        %v3303 = vpop.f32.mrb[0].mxu0
        %v3304 = vadd.f32 %v3170, %v3303
        %3305 = vmatprep.mubr.bf16.mxu0 0
        %3306 = vmatmul.mubr.bf16.gmra.mrb[0].mxu0 %v3131
        %v3307 = vpop.f32.mrb[0].mxu0
        %v3308 = vadd.f32 %v3166, %v3307
        %v3309 = vpop.f32.mrb[0].mxu0
        %v3310 = vadd.f32 %v3170, %v3309
        %v3311 = vpop.f32.mrb[0].mxu0
        %v3312 = vadd.f32 %v3166, %v3311
        %v3313 = vpop.f32.mrb[0].mxu0
        %v3314 = vadd.f32 %v3170, %v3313
        %3315 = vmatprep.mubr.bf16.mxu0 0
        %3316 = vmatmul.mubr.bf16.gmra.mrb[0].mxu0 %v3132
        %v3317 = vpop.f32.mrb[0].mxu0
        %v3318 = vadd.f32 %v3166, %v3317
        %v3319 = vpop.f32.mrb[0].mxu0
        %v3320 = vadd.f32 %v3170, %v3319
        %v3321 = vpop.f32.mrb[0].mxu0
        %v3322 = vadd.f32 %v3166, %v3321
        %v3323 = vpop.f32.mrb[0].mxu0
        %v3324 = vadd.f32 %v3170, %v3323
        %3325 = vmatprep.mubr.bf16.mxu0 0
        %3326 = vmatmul.mubr.bf16.gmra.mrb[0].mxu0 %v3133
        %v3327 = vpop.f32.mrb[0].mxu0
        %v3328 = vadd.f32 %v3166, %v3327
        %v3329 = vpop.f32.mrb[0].mxu0
        %v3330 = vadd.f32 %v3170, %v3329
        %v3331 = vpop.f32.mrb[0].mxu0
        %v3332 = vadd.f32 %v3166, %v3331
        %v3333 = vpop.f32.mrb[0].mxu0
        %v3334 = vadd.f32 %v3170, %v3333
        %3335 = vmatprep.mubr.bf16.mxu0 0
        %3336 = vmatmul.mubr.bf16.gmra.mrb[0].mxu0 %v3134
        %v3337 = vpop.f32.mrb[0].mxu0
        %v3338 = vadd.f32 %v3166, %v3337
        %v3339 = vpop.f32.mrb[0].mxu0
        %v3340 = vadd.f32 %v3170, %v3339
        %v3341 = vpop.f32.mrb[0].mxu0
        %v3342 = vadd.f32 %v3166, %v3341
        %v3343 = vpop.f32.mrb[0].mxu0
        %v3344 = vadd.f32 %v3170, %v3343
        %3345 = vmatprep.mubr.bf16.mxu0 0
        %3346 = vmatmul.mubr.bf16.gmra.mrb[0].mxu0 %v3135
        %v3347 = vpop.f32.mrb[0].mxu0
        %v3348 = vadd.f32 %v3166, %v3347
        %v3349 = vpop.f32.mrb[0].mxu0
        %v3350 = vadd.f32 %v3170, %v3349
        %v3351 = vpop.f32.mrb[0].mxu0
        %v3352 = vadd.f32 %v3166, %v3351
        %v3353 = vpop.f32.mrb[0].mxu0
        %v3354 = vadd.f32 %v3170, %v3353
        %3355 = vmatprep.mubr.bf16.mxu0 0
        %3356 = vmatmul.mubr.bf16.gmra.mrb[0].mxu0 %v3136
        %v3357 = vpop.f32.mrb[0].mxu0
        %v3358 = vadd.f32 %v3166, %v3357
        %v3359 = vpop.f32.mrb[0].mxu0
        %v3360 = vadd.f32 %v3170, %v3359
        %v3361 = vpop.f32.mrb[0].mxu0
        %v3362 = vadd.f32 %v3166, %v3361
        %v3363 = vpop.f32.mrb[0].mxu0
        %v3364 = vadd.f32 %v3170, %v3363
        %3365 = vmatprep.mubr.bf16.mxu0 0
        %3366 = vmatmul.mubr.bf16.gmra.mrb[0].mxu0 %v3137
        %v3367 = vpop.f32.mrb[0].mxu0
        %v3368 = vadd.f32 %v3166, %v3367
        %v3369 = vpop.f32.mrb[0].mxu0
        %v3370 = vadd.f32 %v3170, %v3369
        %v3371 = vpop.f32.mrb[0].mxu0
        %v3372 = vadd.f32 %v3166, %v3371
        %v3373 = vpop.f32.mrb[0].mxu0
        %v3374 = vadd.f32 %v3170, %v3373
        %3375 = vmatprep.mubr.bf16.mxu0 0
        %3376 = vmatmul.mubr.bf16.gmra.mrb[0].mxu0 %v3138
        %v3377 = vpop.f32.mrb[0].mxu0
        %v3378 = vadd.f32 %v3166, %v3377
        %v3379 = vpop.f32.mrb[0].mxu0
        %v3380 = vadd.f32 %v3170, %v3379
        %v3381 = vpop.f32.mrb[0].mxu0
        %v3382 = vadd.f32 %v3166, %v3381
        %v3383 = vpop.f32.mrb[0].mxu0
        %v3384 = vadd.f32 %v3170, %v3383
        %3385 = vmatprep.mubr.bf16.mxu0 0
        %3386 = vmatmul.mubr.bf16.gmra.mrb[0].mxu0 %v3139
        %v3387 = vpop.f32.mrb[0].mxu0
        %v3388 = vadd.f32 %v3166, %v3387
        %v3389 = vpop.f32.mrb[0].mxu0
        %v3390 = vadd.f32 %v3170, %v3389
        %v3391 = vpop.f32.mrb[0].mxu0
        %v3392 = vadd.f32 %v3166, %v3391
        %v3393 = vpop.f32.mrb[0].mxu0
        %v3394 = vadd.f32 %v3170, %v3393
        %3395 = vmatprep.mubr.bf16.mxu0 0
        %3396 = vmatmul.mubr.bf16.gmra.mrb[0].mxu0 %v3140
        %v3397 = vpop.f32.mrb[0].mxu0
        %v3398 = vadd.f32 %v3166, %v3397
        %v3399 = vpop.f32.mrb[0].mxu0
        %v3400 = vadd.f32 %v3170, %v3399
        %v3401 = vpop.f32.mrb[0].mxu0
        %v3402 = vadd.f32 %v3166, %v3401
        %v3403 = vpop.f32.mrb[0].mxu0
        %v3404 = vadd.f32 %v3170, %v3403
        %3405 = vmatprep.mubr.bf16.mxu0 0
        %3406 = vmatmul.mubr.bf16.gmra.mrb[0].mxu0 %v3141
        %v3407 = vpop.f32.mrb[0].mxu0
        %v3408 = vadd.f32 %v3166, %v3407
        %v3409 = vpop.f32.mrb[0].mxu0
        %v3410 = vadd.f32 %v3170, %v3409
        %v3411 = vpop.f32.mrb[0].mxu0
        %v3412 = vadd.f32 %v3166, %v3411
        %v3413 = vpop.f32.mrb[0].mxu0
        %v3414 = vadd.f32 %v3170, %v3413
        %3415 = vmatprep.mubr.bf16.mxu0 0
        %3416 = vmatmul.mubr.bf16.gmra.mrb[0].mxu0 %v3142
        %v3417 = vpop.f32.mrb[0].mxu0
        %v3418 = vadd.f32 %v3166, %v3417
        %v3419 = vpop.f32.mrb[0].mxu0
        %v3420 = vadd.f32 %v3170, %v3419
        %v3421 = vpop.f32.mrb[0].mxu0
        %v3422 = vadd.f32 %v3166, %v3421
        %v3423 = vpop.f32.mrb[0].mxu0
        %v3424 = vadd.f32 %v3170, %v3423
        %3425 = vmatprep.mubr.bf16.mxu0 0
        %3426 = vmatmul.mubr.bf16.gmra.mrb[0].mxu0 %v3143
        %v3427 = vpop.f32.mrb[0].mxu0
        %v3428 = vadd.f32 %v3166, %v3427
        %v3429 = vpop.f32.mrb[0].mxu0
        %v3430 = vadd.f32 %v3170, %v3429
        %v3431 = vpop.f32.mrb[0].mxu0
        %v3432 = vadd.f32 %v3166, %v3431
        %v3433 = vpop.f32.mrb[0].mxu0
        %v3434 = vadd.f32 %v3170, %v3433
        %3435 = vmatprep.mubr.bf16.mxu0 0
        %3436 = vmatmul.mubr.bf16.gmra.mrb[0].mxu0 %v3144
        %v3437 = vpop.f32.mrb[0].mxu0
        %v3438 = vadd.f32 %v3166, %v3437
        %v3439 = vpop.f32.mrb[0].mxu0
        %v3440 = vadd.f32 %v3170, %v3439
        %v3441 = vpop.f32.mrb[0].mxu0
        %v3442 = vadd.f32 %v3166, %v3441
        %v3443 = vpop.f32.mrb[0].mxu0
        %v3444 = vadd.f32 %v3170, %v3443
        %3445 = vdwg.mxu0
        %v3446 = vxor.u32 %v3288, 2147483648
        %v3447 = vxor.u32 %v3292, 2147483648
        %v3448 = vxor.u32 %v3298, 2147483648
        %v3449 = vxor.u32 %v3302, 2147483648
        %v3450 = vxor.u32 %v3308, 2147483648
        %v3451 = vxor.u32 %v3312, 2147483648
        %v3452 = vxor.u32 %v3318, 2147483648
        %v3453 = vxor.u32 %v3322, 2147483648
        %v3454 = vxor.u32 %v3328, 2147483648
        %v3455 = vxor.u32 %v3332, 2147483648
        %v3456 = vxor.u32 %v3338, 2147483648
        %v3457 = vxor.u32 %v3342, 2147483648
        %v3458 = vxor.u32 %v3348, 2147483648
        %v3459 = vxor.u32 %v3352, 2147483648
        %v3460 = vxor.u32 %v3358, 2147483648
        %v3461 = vxor.u32 %v3362, 2147483648
        %v3462 = vxor.u32 %v3368, 2147483648
        %v3463 = vxor.u32 %v3372, 2147483648
        %v3464 = vxor.u32 %v3378, 2147483648
        %v3465 = vxor.u32 %v3382, 2147483648
        %v3466 = vxor.u32 %v3388, 2147483648
        %v3467 = vxor.u32 %v3392, 2147483648
        %v3468 = vxor.u32 %v3398, 2147483648
        %v3469 = vxor.u32 %v3402, 2147483648
        %v3470 = vxor.u32 %v3408, 2147483648
        %v3471 = vxor.u32 %v3412, 2147483648
        %v3472 = vxor.u32 %v3418, 2147483648
        %v3473 = vxor.u32 %v3422, 2147483648
        %v3474 = vxor.u32 %v3428, 2147483648
        %v3475 = vxor.u32 %v3432, 2147483648
        %v3476 = vxor.u32 %v3438, 2147483648
        %v3477 = vxor.u32 %v3442, 2147483648
        %v3478 = vmul.f32 %v3446, 1.442695
        %v3479 = vpow.pop %v3478
        %v3480 = vmul.f32 %v3447, 1.442695
        %v3481 = vpow.pop %v3480
        %v3482 = vmul.f32 %v3448, 1.442695
        %v3483 = vpow.pop %v3482
        %v3484 = vmul.f32 %v3449, 1.442695
        %v3485 = vpow.pop %v3484
        %v3486 = vmul.f32 %v3450, 1.442695
        %v3487 = vpow.pop %v3486
        %v3488 = vmul.f32 %v3451, 1.442695
        %v3489 = vpow.pop %v3488
        %v3490 = vmul.f32 %v3452, 1.442695
        %v3491 = vpow.pop %v3490
        %v3492 = vmul.f32 %v3453, 1.442695
        %v3493 = vpow.pop %v3492
        %v3494 = vmul.f32 %v3454, 1.442695
        %v3495 = vpow.pop %v3494
        %v3496 = vmul.f32 %v3455, 1.442695
        %v3497 = vpow.pop %v3496
        %v3498 = vmul.f32 %v3456, 1.442695
        %v3499 = vpow.pop %v3498
        %v3500 = vmul.f32 %v3457, 1.442695
        %v3501 = vpow.pop %v3500
        %v3502 = vmul.f32 %v3458, 1.442695
        %v3503 = vpow.pop %v3502
        %v3504 = vmul.f32 %v3459, 1.442695
        %v3505 = vpow.pop %v3504
        %v3506 = vmul.f32 %v3460, 1.442695
        %v3507 = vpow.pop %v3506
        %v3508 = vmul.f32 %v3461, 1.442695
        %v3509 = vpow.pop %v3508
        %v3510 = vmul.f32 %v3462, 1.442695
        %v3511 = vpow.pop %v3510
        %v3512 = vmul.f32 %v3463, 1.442695
        %v3513 = vpow.pop %v3512
        %v3514 = vmul.f32 %v3464, 1.442695
        %v3515 = vpow.pop %v3514
        %v3516 = vmul.f32 %v3465, 1.442695
        %v3517 = vpow.pop %v3516
        %v3518 = vmul.f32 %v3466, 1.442695
        %v3519 = vpow.pop %v3518
        %v3520 = vmul.f32 %v3467, 1.442695
        %v3521 = vpow.pop %v3520
        %v3522 = vmul.f32 %v3468, 1.442695
        %v3523 = vpow.pop %v3522
        %v3524 = vmul.f32 %v3469, 1.442695
        %v3525 = vpow.pop %v3524
        %v3526 = vmul.f32 %v3470, 1.442695
        %v3527 = vpow.pop %v3526
        %v3528 = vmul.f32 %v3471, 1.442695
        %v3529 = vpow.pop %v3528
        %v3530 = vmul.f32 %v3472, 1.442695
        %v3531 = vpow.pop %v3530
        %v3532 = vmul.f32 %v3473, 1.442695
        %v3533 = vpow.pop %v3532
        %v3534 = vmul.f32 %v3474, 1.442695
        %v3535 = vpow.pop %v3534
        %v3536 = vmul.f32 %v3475, 1.442695
        %v3537 = vpow.pop %v3536
        %v3538 = vmul.f32 %v3476, 1.442695
        %v3539 = vpow.pop %v3538
        %v3540 = vmul.f32 %v3477, 1.442695
        %v3541 = vpow.pop %v3540
        %v3542 = vadd.f32 %v3479, 1.0
        %v3543 = vadd.f32 %v3481, 1.0
        %v3544 = vadd.f32 %v3483, 1.0
        %v3545 = vadd.f32 %v3485, 1.0
        %v3546 = vadd.f32 %v3487, 1.0
        %v3547 = vadd.f32 %v3489, 1.0
        %v3548 = vadd.f32 %v3491, 1.0
        %v3549 = vadd.f32 %v3493, 1.0
        %v3550 = vadd.f32 %v3495, 1.0
        %v3551 = vadd.f32 %v3497, 1.0
        %v3552 = vadd.f32 %v3499, 1.0
        %v3553 = vadd.f32 %v3501, 1.0
        %v3554 = vadd.f32 %v3503, 1.0
        %v3555 = vadd.f32 %v3505, 1.0
        %v3556 = vadd.f32 %v3507, 1.0
        %v3557 = vadd.f32 %v3509, 1.0
        %v3558 = vadd.f32 %v3511, 1.0
        %v3559 = vadd.f32 %v3513, 1.0
        %v3560 = vadd.f32 %v3515, 1.0
        %v3561 = vadd.f32 %v3517, 1.0
        %v3562 = vadd.f32 %v3519, 1.0
        %v3563 = vadd.f32 %v3521, 1.0
        %v3564 = vadd.f32 %v3523, 1.0
        %v3565 = vadd.f32 %v3525, 1.0
        %v3566 = vadd.f32 %v3527, 1.0
        %v3567 = vadd.f32 %v3529, 1.0
        %v3568 = vadd.f32 %v3531, 1.0
        %v3569 = vadd.f32 %v3533, 1.0
        %v3570 = vadd.f32 %v3535, 1.0
        %v3571 = vadd.f32 %v3537, 1.0
        %v3572 = vadd.f32 %v3539, 1.0
        %v3573 = vadd.f32 %v3541, 1.0
        %v3574 = vrcp.pop %v3542
        %v3575 = vmul.f32 1.0, %v3574
        %v3576 = vrcp.pop %v3543
        %v3577 = vmul.f32 1.0, %v3576
        %v3578 = vrcp.pop %v3544
        %v3579 = vmul.f32 1.0, %v3578
        %v3580 = vrcp.pop %v3545
        %v3581 = vmul.f32 1.0, %v3580
        %v3582 = vrcp.pop %v3546
        %v3583 = vmul.f32 1.0, %v3582
        %v3584 = vrcp.pop %v3547
        %v3585 = vmul.f32 1.0, %v3584
        %v3586 = vrcp.pop %v3548
        %v3587 = vmul.f32 1.0, %v3586
        %v3588 = vrcp.pop %v3549
        %v3589 = vmul.f32 1.0, %v3588
        %v3590 = vrcp.pop %v3550
        %v3591 = vmul.f32 1.0, %v3590
        %v3592 = vrcp.pop %v3551
        %v3593 = vmul.f32 1.0, %v3592
        %v3594 = vrcp.pop %v3552
        %v3595 = vmul.f32 1.0, %v3594
        %v3596 = vrcp.pop %v3553
        %v3597 = vmul.f32 1.0, %v3596
        %v3598 = vrcp.pop %v3554
        %v3599 = vmul.f32 1.0, %v3598
        %v3600 = vrcp.pop %v3555
        %v3601 = vmul.f32 1.0, %v3600
        %v3602 = vrcp.pop %v3556
        %v3603 = vmul.f32 1.0, %v3602
        %v3604 = vrcp.pop %v3557
        %v3605 = vmul.f32 1.0, %v3604
        %v3606 = vrcp.pop %v3558
        %v3607 = vmul.f32 1.0, %v3606
        %v3608 = vrcp.pop %v3559
        %v3609 = vmul.f32 1.0, %v3608
        %v3610 = vrcp.pop %v3560
        %v3611 = vmul.f32 1.0, %v3610
        %v3612 = vrcp.pop %v3561
        %v3613 = vmul.f32 1.0, %v3612
        %v3614 = vrcp.pop %v3562
        %v3615 = vmul.f32 1.0, %v3614
        %v3616 = vrcp.pop %v3563
        %v3617 = vmul.f32 1.0, %v3616
        %v3618 = vrcp.pop %v3564
        %v3619 = vmul.f32 1.0, %v3618
        %v3620 = vrcp.pop %v3565
        %v3621 = vmul.f32 1.0, %v3620
        %v3622 = vrcp.pop %v3566
        %v3623 = vmul.f32 1.0, %v3622
        %v3624 = vrcp.pop %v3567
        %v3625 = vmul.f32 1.0, %v3624
        %v3626 = vrcp.pop %v3568
        %v3627 = vmul.f32 1.0, %v3626
        %v3628 = vrcp.pop %v3569
        %v3629 = vmul.f32 1.0, %v3628
        %v3630 = vrcp.pop %v3570
        %v3631 = vmul.f32 1.0, %v3630
        %v3632 = vrcp.pop %v3571
        %v3633 = vmul.f32 1.0, %v3632
        %v3634 = vrcp.pop %v3572
        %v3635 = vmul.f32 1.0, %v3634
        %v3636 = vrcp.pop %v3573
        %v3637 = vmul.f32 1.0, %v3636
        %v3638 = vmax.f32 %v3290, 0.0
        %v3639 = vmax.f32 %v3294, 0.0
        %v3640 = vmax.f32 %v3300, 0.0
        %v3641 = vmax.f32 %v3304, 0.0
        %v3642 = vmax.f32 %v3310, 0.0
        %v3643 = vmax.f32 %v3314, 0.0
        %v3644 = vmax.f32 %v3320, 0.0
        %v3645 = vmax.f32 %v3324, 0.0
        %v3646 = vmax.f32 %v3330, 0.0
        %v3647 = vmax.f32 %v3334, 0.0
        %v3648 = vmax.f32 %v3340, 0.0
        %v3649 = vmax.f32 %v3344, 0.0
        %v3650 = vmax.f32 %v3350, 0.0
        %v3651 = vmax.f32 %v3354, 0.0
        %v3652 = vmax.f32 %v3360, 0.0
        %v3653 = vmax.f32 %v3364, 0.0
        %v3654 = vmax.f32 %v3370, 0.0
        %v3655 = vmax.f32 %v3374, 0.0
        %v3656 = vmax.f32 %v3380, 0.0
        %v3657 = vmax.f32 %v3384, 0.0
        %v3658 = vmax.f32 %v3390, 0.0
        %v3659 = vmax.f32 %v3394, 0.0
        %v3660 = vmax.f32 %v3400, 0.0
        %v3661 = vmax.f32 %v3404, 0.0
        %v3662 = vmax.f32 %v3410, 0.0
        %v3663 = vmax.f32 %v3414, 0.0
        %v3664 = vmax.f32 %v3420, 0.0
        %v3665 = vmax.f32 %v3424, 0.0
        %v3666 = vmax.f32 %v3430, 0.0
        %v3667 = vmax.f32 %v3434, 0.0
        %v3668 = vmax.f32 %v3440, 0.0
        %v3669 = vmax.f32 %v3444, 0.0
        %v3670 = vsub.f32 %v3638, %v3097
        %v3671 = vsub.f32 %v3639, %v3098
        %v3672 = vsub.f32 %v3640, %v3099
        %v3673 = vsub.f32 %v3641, %v3100
        %v3674 = vsub.f32 %v3642, %v3101
        %v3675 = vsub.f32 %v3643, %v3102
        %v3676 = vsub.f32 %v3644, %v3103
        %v3677 = vsub.f32 %v3645, %v3104
        %v3678 = vsub.f32 %v3646, %v3105
        %v3679 = vsub.f32 %v3647, %v3106
        %v3680 = vsub.f32 %v3648, %v3107
        %v3681 = vsub.f32 %v3649, %v3108
        %v3682 = vsub.f32 %v3650, %v3109
        %v3683 = vsub.f32 %v3651, %v3110
        %v3684 = vsub.f32 %v3652, %v3111
        %v3685 = vsub.f32 %v3653, %v3112
        %v3686 = vsub.f32 %v3654, %v3113
        %v3687 = vsub.f32 %v3655, %v3114
        %v3688 = vsub.f32 %v3656, %v3115
        %v3689 = vsub.f32 %v3657, %v3116
        %v3690 = vsub.f32 %v3658, %v3117
        %v3691 = vsub.f32 %v3659, %v3118
        %v3692 = vsub.f32 %v3660, %v3119
        %v3693 = vsub.f32 %v3661, %v3120
        %v3694 = vsub.f32 %v3662, %v3121
        %v3695 = vsub.f32 %v3663, %v3122
        %v3696 = vsub.f32 %v3664, %v3123
        %v3697 = vsub.f32 %v3665, %v3124
        %v3698 = vsub.f32 %v3666, %v3125
        %v3699 = vsub.f32 %v3667, %v3126
        %v3700 = vsub.f32 %v3668, %v3127
        %v3701 = vsub.f32 %v3669, %v3128
        %v3702 = vmul.f32 %v3575, %v3670
        %v3703 = vmul.f32 %v3577, %v3671
        %v3704 = vmul.f32 %v3579, %v3672
        %v3705 = vmul.f32 %v3581, %v3673
        %v3706 = vmul.f32 %v3583, %v3674
        %v3707 = vmul.f32 %v3585, %v3675
        %v3708 = vmul.f32 %v3587, %v3676
        %v3709 = vmul.f32 %v3589, %v3677
        %v3710 = vmul.f32 %v3591, %v3678
        %v3711 = vmul.f32 %v3593, %v3679
        %v3712 = vmul.f32 %v3595, %v3680
        %v3713 = vmul.f32 %v3597, %v3681
        %v3714 = vmul.f32 %v3599, %v3682
        %v3715 = vmul.f32 %v3601, %v3683
        %v3716 = vmul.f32 %v3603, %v3684
        %v3717 = vmul.f32 %v3605, %v3685
        %v3718 = vmul.f32 %v3607, %v3686
        %v3719 = vmul.f32 %v3609, %v3687
        %v3720 = vmul.f32 %v3611, %v3688
        %v3721 = vmul.f32 %v3613, %v3689
        %v3722 = vmul.f32 %v3615, %v3690
        %v3723 = vmul.f32 %v3617, %v3691
        %v3724 = vmul.f32 %v3619, %v3692
        %v3725 = vmul.f32 %v3621, %v3693
        %v3726 = vmul.f32 %v3623, %v3694
        %v3727 = vmul.f32 %v3625, %v3695
        %v3728 = vmul.f32 %v3627, %v3696
        %v3729 = vmul.f32 %v3629, %v3697
        %v3730 = vmul.f32 %v3631, %v3698
        %v3731 = vmul.f32 %v3633, %v3699
        %v3732 = vmul.f32 %v3635, %v3700
        %v3733 = vmul.f32 %v3637, %v3701
        %v3734 = vadd.f32 %v3097, %v3702
        %v3735 = vadd.f32 %v3098, %v3703
        %v3736 = vadd.f32 %v3099, %v3704
        %v3737 = vadd.f32 %v3100, %v3705
        %v3738 = vadd.f32 %v3101, %v3706
        %v3739 = vadd.f32 %v3102, %v3707
        %v3740 = vadd.f32 %v3103, %v3708
        %v3741 = vadd.f32 %v3104, %v3709
        %v3742 = vadd.f32 %v3105, %v3710
        %v3743 = vadd.f32 %v3106, %v3711
        %v3744 = vadd.f32 %v3107, %v3712
        %v3745 = vadd.f32 %v3108, %v3713
        %v3746 = vadd.f32 %v3109, %v3714
        %v3747 = vadd.f32 %v3110, %v3715
        %v3748 = vadd.f32 %v3111, %v3716
        %v3749 = vadd.f32 %v3112, %v3717
        %v3750 = vadd.f32 %v3113, %v3718
        %v3751 = vadd.f32 %v3114, %v3719
        %v3752 = vadd.f32 %v3115, %v3720
        %v3753 = vadd.f32 %v3116, %v3721
        %v3754 = vadd.f32 %v3117, %v3722
        %v3755 = vadd.f32 %v3118, %v3723
        %v3756 = vadd.f32 %v3119, %v3724
        %v3757 = vadd.f32 %v3120, %v3725
        %v3758 = vadd.f32 %v3121, %v3726
        %v3759 = vadd.f32 %v3122, %v3727
        %v3760 = vadd.f32 %v3123, %v3728
        %v3761 = vadd.f32 %v3124, %v3729
        %v3762 = vadd.f32 %v3125, %v3730
        %v3763 = vadd.f32 %v3126, %v3731
        %v3764 = vadd.f32 %v3127, %v3732
        %v3765 = vadd.f32 %v3128, %v3733
        %3766 = vst [vmem:[%s312] sm:$0xff] %v3734
        %3767 = vst [vmem:[%s312 + $0x8] sm:$0xff] %v3735
        %3768 = vst [vmem:[%s312 + $0x10] sm:$0xff] %v3736
        %3769 = vst [vmem:[%s312 + $0x18] sm:$0xff] %v3737
        %3770 = vst [vmem:[%s312 + $0x20] sm:$0xff] %v3738
        %3771 = vst [vmem:[%s312 + $0x28] sm:$0xff] %v3739
        %3772 = vst [vmem:[%s312 + $0x30] sm:$0xff] %v3740
        %3773 = vst [vmem:[%s312 + $0x38] sm:$0xff] %v3741
        %3774 = vst [vmem:[%s312 + $0x40] sm:$0xff] %v3742
        %3775 = vst [vmem:[%s312 + $0x48] sm:$0xff] %v3743
        %3776 = vst [vmem:[%s312 + $0x50] sm:$0xff] %v3744
        %3777 = vst [vmem:[%s312 + $0x58] sm:$0xff] %v3745
        %3778 = vst [vmem:[%s312 + $0x60] sm:$0xff] %v3746
        %3779 = vst [vmem:[%s312 + $0x68] sm:$0xff] %v3747
        %3780 = vst [vmem:[%s312 + $0x70] sm:$0xff] %v3748
        %3781 = vst [vmem:[%s312 + $0x78] sm:$0xff] %v3749
        %3782 = vst [vmem:[%s312 + $0x80] sm:$0xff] %v3750
        %3783 = vst [vmem:[%s312 + $0x88] sm:$0xff] %v3751
        %3784 = vst [vmem:[%s312 + $0x90] sm:$0xff] %v3752
        %3785 = vst [vmem:[%s312 + $0x98] sm:$0xff] %v3753
        %3786 = vst [vmem:[%s312 + $0xa0] sm:$0xff] %v3754
        %3787 = vst [vmem:[%s312 + $0xa8] sm:$0xff] %v3755
        %3788 = vst [vmem:[%s312 + $0xb0] sm:$0xff] %v3756
        %3789 = vst [vmem:[%s312 + $0xb8] sm:$0xff] %v3757
        %3790 = vst [vmem:[%s312 + $0xc0] sm:$0xff] %v3758
        %3791 = vst [vmem:[%s312 + $0xc8] sm:$0xff] %v3759
        %3792 = vst [vmem:[%s312 + $0xd0] sm:$0xff] %v3760
        %3793 = vst [vmem:[%s312 + $0xd8] sm:$0xff] %v3761
        %3794 = vst [vmem:[%s312 + $0xe0] sm:$0xff] %v3762
        %3795 = vst [vmem:[%s312 + $0xe8] sm:$0xff] %v3763
        %3796 = vst [vmem:[%s312 + $0xf0] sm:$0xff] %v3764
        %3797 = vst [vmem:[%s312 + $0xf8] sm:$0xff] %v3765
        %s3798 = sand.u32 %s164, 1
        %s3799 = scalar_lea.sflag [#allocation4], %s3798
        %s3800 = sand.u32 %s164, 1
        %s3801 = smul.addr %s3800, 256
        %s3802 = scalar_lea.vmem [#allocation10], %s3801
        // Predicated region
        $region61: #{tpu_custom_call.1} parent=43 // pred_check
          %p3803 = pneg %p174
        $region62: #{tpu_custom_call.1} parent=43 // pred_check_branch
          %3805 = sbr.rel (%p3803) target = $region64
        $region63: #{tpu_custom_call.1} parent=43 // pred_region
          %s3806 = smul.u32 4, %s25
          %s3808 = ssub.s32 4096, 4096
          %3809 = vsyncadd %s3799, %s3808
          %s3810 = smul.addr %s3806, 8
          %s3811 = smul.addr %s3810, 128
          %s3812 = scalar_lea.hbm %s6, %s3811
          %s3813 = sshll.u32 %s3802, 4
          %s3814 = int_to_ptr.vmem [resolvable:$true] %s3813
          %3819 = dma.vmem_to_hbm [thread:$0]  %s3814, 4096, %s3812, %s3799, 128, 128, 8
        $region64: #{tpu_custom_call.1} parent=43 // pred_fallthru
          _
      $region44: #{tpu_custom_call.1} parent=5 // pred_fallthru
        _
      %p3820 = scmp.le.s32.totalorder 2, %s20
      // Predicated region
      $region65: #{tpu_custom_call.1} parent=5 // pred_check
        %p3821 = pneg %p3820
      $region66: #{tpu_custom_call.1} parent=5 // pred_check_branch
        %3823 = sbr.rel (%p3821) target = $region68
      $region67: #{tpu_custom_call.1} parent=5 // pred_region
        %s3824 = ssub.s32 %s20, 2
        // Predicated region
        $region69: #{tpu_custom_call.1} parent=67 // pred_check
          %p3825 = pneg %p180
        $region70: #{tpu_custom_call.1} parent=67 // pred_check_branch
          %3827 = sbr.rel (%p3825) target = $region72
        $region71: #{tpu_custom_call.1} parent=67 // pred_region
          %s3828 = sand.u32 %s165, 1
          %s3829 = scalar_lea.sflag [#allocation4], %s3828
          %s3830 = sand.u32 %s165, 1
          %s3831 = smul.addr %s3830, 256
          %s3832 = scalar_lea.vmem [#allocation10], %s3831
          %3833 = dma.done %s3829, 4096
        $region72: #{tpu_custom_call.1} parent=67 // pred_fallthru
          _
      $region68: #{tpu_custom_call.1} parent=5 // pred_fallthru
        _
    $region6: #{tpu_custom_call.1} parent=1 // loop_footer
      %s24 = sadd.s32 1, %s20
    $region7: #{tpu_custom_call.1} parent=1 // loop_footer_branch
      %19 = sbr.rel target = $region3
    $region8: #{tpu_custom_call.1} parent=1 // loop_exit
      _
    %3834 = vsyncpa [#allocation3], 1
    %s3835 = scalar_lea.sflag [#allocation3], 1
    %3836 = vsyncpa %s3835, 1
    %3837 = vsyncpa [#allocation6], 1
    %3838 = vsyncpa [#allocation9], 1
    %3839 = vsyncpa [#allocation4], 1
    %s3840 = scalar_lea.sflag [#allocation4], 1
    %3841 = vsyncpa %s3840, 1

</llo_original>
